<compile_context>
chip_gen: v7x
topology: tpu7x:2x2x1
jax: 0.10.0
libtpu: 0.0.40
codegen_flags: <defaults>
</compile_context>

<pallas_src>
import jax
import jax.numpy as jnp
from jax.experimental import pallas as pl
from jax.experimental.pallas import tpu as pltpu


def se_gate_conv1x1_kernel(gate_ref, x_ref, w_ref, o_ref):
    # gate_ref: (1, Cin)  f32        x_ref: (Cin, M) f32
    # w_ref:    (TN, Cin) bf16|f32   o_ref: (TN, M)  f32
    g = gate_ref[...]                                       # (1, Cin)
    sig = pl.reciprocal(1.0 + jnp.exp(-g), approx=True)     # EUP slot (essentially free)
    # Fold the per-input-channel gate into the weight columns (pure row-broadcast,
    # no cross-lane moves):  (W * sig) @ X == W @ (sig.T * X).
    w_scaled = (w_ref[...].astype(jnp.float32) * sig).astype(jnp.bfloat16)   # (TN, Cin)
    x_bf = x_ref[...].astype(jnp.bfloat16)                                   # (Cin, M)
    o_ref[...] = jnp.dot(
        w_scaled, x_bf, preferred_element_type=jnp.float32
    ).astype(o_ref.dtype)


def _default_tile_n(cout):
    """grid=(2,) on 2-TensorCore chips (v7x) for a balanced megacore split,
    grid=(1,) on single-TC chips (v5e/v6e) to avoid per-step overhead."""
    try:
        kind = jax.devices()[0].device_kind.lower()
    except Exception:  # pragma: no cover - defensive
        kind = ""
    two_tc = ("v7" in kind) or ("tpu7" in kind)
    if two_tc and cout % 2 == 0:
        return cout // 2
    return cout


def se_gate_conv1x1(x_nchw, gate_nc11, weight, *, tile_n=None):
    """x_nchw: (1, Cin, H, W) f32; gate_nc11: (1, Cin, 1, 1) f32;
    weight: (Cout, Cin, 1, 1) or (Cout, Cin), f32 or bf16 (pre-cast bf16 preferred)."""
    N, Cin, H, W_sp = x_nchw.shape
    assert N == 1, "kernel written for N=1 (matches module's fixed input)"
    M = H * W_sp

    if weight.ndim == 4:
        Cout = weight.shape[0]
        w_mat = weight.reshape(Cout, Cin)      # pure reshape, dtype untouched
    else:
        Cout, _ = weight.shape
        w_mat = weight

    # Pure reshapes — no XLA transposes and no dtype casts in the wrapper.
    x_mat = x_nchw.reshape(Cin, M)             # (Cin, M)  f32
    gate_row = gate_nc11.reshape(1, Cin)       # (1, Cin)  f32, lane-dense

    tn = _default_tile_n(Cout) if tile_n is None else min(tile_n, Cout)
    assert Cout % tn == 0, "Cout must be a multiple of the Cout tile"
    grid = (Cout // tn,)

    flops = 2 * Cout * Cin * M
    bytes_accessed = int(
        x_mat.size * x_mat.dtype.itemsize
        + gate_row.size * gate_row.dtype.itemsize
        + w_mat.size * w_mat.dtype.itemsize
        + Cout * M * 4
    )

    out_mat = pl.pallas_call(
        se_gate_conv1x1_kernel,
        out_shape=jax.ShapeDtypeStruct((Cout, M), jnp.float32),
        grid=grid,
        in_specs=[
            pl.BlockSpec((1, Cin), lambda j: (0, 0)),    # gate: grid-constant row
            pl.BlockSpec((Cin, M), lambda j: (0, 0)),    # X:    grid-constant
            pl.BlockSpec((tn, Cin), lambda j: (j, 0)),   # W:    streamed per Cout tile
        ],
        out_specs=pl.BlockSpec((tn, M), lambda j: (j, 0)),
        compiler_params=pltpu.CompilerParams(
            dimension_semantics=("parallel",),           # split Cout tiles across TCs
        ),
        cost_estimate=pl.CostEstimate(
            flops=flops, transcendentals=Cin, bytes_accessed=bytes_accessed
        ),
    )(gate_row, x_mat, w_mat)

    # (Cout, M) -> (1, Cout, H, W): pure reshape (output already channel-major).
    return out_mat.reshape(N, Cout, H, W_sp)


if __name__ == "__main__":
    # Shapes fixed by the module: x753 (1,2304,7,7), x757 (1,2304,1,1),
    # Conv2d(2304 -> 384, 1x1, no bias).
    N, Cin, H, W, Cout = 1, 2304, 7, 7, 384

    key = jax.random.PRNGKey(0)
    k1, k2, k3 = jax.random.split(key, 3)
    x753 = jax.random.normal(k1, (N, Cin, H, W), dtype=jnp.float32)
    x757 = jax.random.normal(k2, (N, Cin, 1, 1), dtype=jnp.float32)
    bound = 1.0 / (Cin ** 0.5)
    weight = jax.random.uniform(
        k3, (Cout, Cin, 1, 1), dtype=jnp.float32, minval=-bound, maxval=bound
    )

    # "Init-time" weight prep: reshape + cast to bf16 ONCE, outside the hot path.
    w_param = weight.reshape(Cout, Cin).astype(jnp.bfloat16)

    out = se_gate_conv1x1(x753, x757, w_param)
    out = jax.block_until_ready(out)
    assert out.shape == (N, Cout, H, W)

    # f32 module reference (loose tolerance: kernel uses bf16 MXU operands, f32 accum).
    ref_f32 = jnp.einsum(
        "nchw,oc->nohw",
        x753 * jax.nn.sigmoid(x757),
        weight.reshape(Cout, Cin),
    )
    assert jnp.allclose(out, ref_f32, atol=3e-2, rtol=3e-2), "f32 reference mismatch"

    # Precision-matched reference (same operand handling as the kernel, exact sigmoid).
    sig_row = jax.nn.sigmoid(x757).reshape(1, Cin)
    w_scaled_ref = (w_param.astype(jnp.float32) * sig_row).astype(jnp.bfloat16)
    ref_match = jnp.dot(
        w_scaled_ref,
        x753.reshape(Cin, H * W).astype(jnp.bfloat16),
        preferred_element_type=jnp.float32,
    ).reshape(N, Cout, H, W)
    assert jnp.allclose(out, ref_match, atol=5e-3, rtol=5e-3), "matched reference mismatch"

    print("KERNEL_OK")
</pallas_src>

<mosaic_0001>
module attributes {stable_mosaic.version = 11 : i64} {
  func.func @se_gate_conv1x1_kernel(%arg0: i32, %arg1: memref<1x2304xf32, #tpu.memory_space<vmem>>, %arg2: memref<2304x49xf32, #tpu.memory_space<vmem>>, %arg3: memref<384x2304xbf16, #tpu.memory_space<vmem>>, %arg4: memref<384x49xf32, #tpu.memory_space<vmem>>) attributes {dimension_semantics = [#tpu.dimension_semantics<parallel>], iteration_bounds = array<i64: 1>, scalar_prefetch = 0 : i64, scratch_operands = 0 : i64, tpu.core_type = #tpu.core_type<tc>, window_params = [{pipeline_mode = #tpu.pipeline_mode<synchronous>, transform_indices = @transform_0, window_bounds = array<i64: 1, 2304>}, {pipeline_mode = #tpu.pipeline_mode<synchronous>, transform_indices = @transform_1, window_bounds = array<i64: 2304, 49>}, {transform_indices = @transform_2, window_bounds = array<i64: 384, 2304>}, {transform_indices = @transform_3, window_bounds = array<i64: 384, 49>}]} {
    %c0 = arith.constant 0 : index
    %c0_0 = arith.constant 0 : index
    %0 = vector.load %arg1[%c0, %c0_0] : memref<1x2304xf32, #tpu.memory_space<vmem>>, vector<1x2304xf32>
    %cst = arith.constant 0.000000e+00 : f32
    %1 = vector.broadcast %cst : f32 to vector<1x2304xf32>
    %2 = arith.subf %1, %0 : vector<1x2304xf32>
    %3 = math.exp %2 : vector<1x2304xf32>
    %cst_1 = arith.constant 1.000000e+00 : f32
    %4 = vector.broadcast %cst_1 : f32 to vector<1x2304xf32>
    %5 = arith.addf %4, %3 : vector<1x2304xf32>
    %6 = tpu.reciprocal %5 {approx = true} : vector<1x2304xf32> -> vector<1x2304xf32>
    %c0_2 = arith.constant 0 : index
    %c0_3 = arith.constant 0 : index
    %7 = vector.load %arg3[%c0_2, %c0_3] : memref<384x2304xbf16, #tpu.memory_space<vmem>>, vector<384x2304xbf16>
    %8 = arith.extf %7 : vector<384x2304xbf16> to vector<384x2304xf32>
    %9 = vector.broadcast %6 : vector<1x2304xf32> to vector<384x2304xf32>
    %10 = arith.mulf %8, %9 : vector<384x2304xf32>
    %11 = arith.truncf %10 : vector<384x2304xf32> to vector<384x2304xbf16>
    %c0_4 = arith.constant 0 : index
    %c0_5 = arith.constant 0 : index
    %12 = vector.load %arg2[%c0_4, %c0_5] : memref<2304x49xf32, #tpu.memory_space<vmem>>, vector<2304x49xf32>
    %13 = arith.truncf %12 : vector<2304x49xf32> to vector<2304x49xbf16>
    %cst_6 = arith.constant dense<0.000000e+00> : vector<384x49xf32>
    %14 = tpu.matmul %11, %13, %cst_6 {dimension_numbers = #tpu.dot_dimension_numbers<[1], [0], [0], [1], [0, 0, 1, 1], [], []>} : vector<384x2304xbf16>, vector<2304x49xbf16>, vector<384x49xf32> -> vector<384x49xf32>
    %c0_7 = arith.constant 0 : index
    %c0_8 = arith.constant 0 : index
    %15 = vector.load %arg4[%c0_7, %c0_8] : memref<384x49xf32, #tpu.memory_space<vmem>>, vector<384x49xf32>
    tpu.vector_store %arg4[%c0_7, %c0_8], %14 {strides = array<i32>} : memref<384x49xf32, #tpu.memory_space<vmem>>, vector<384x49xf32>,
    return
  }
  func.func @transform_0(%arg0: i32) -> (i32, i32) {
    %c0_i32 = arith.constant 0 : i32
    %c0_i32_0 = arith.constant 0 : i32
    %c0_i32_1 = arith.constant 0 : i32
    return %c0_i32, %c0_i32_0 : i32, i32
  }
  func.func @transform_1(%arg0: i32) -> (i32, i32) {
    %c0_i32 = arith.constant 0 : i32
    %c0_i32_0 = arith.constant 0 : i32
    %c0_i32_1 = arith.constant 0 : i32
    return %c0_i32, %c0_i32_0 : i32, i32
  }
  func.func @transform_2(%arg0: i32) -> (i32, i32) {
    %c0_i32 = arith.constant 0 : i32
    %c0_i32_0 = arith.constant 0 : i32
    return %arg0, %c0_i32 : i32, i32
  }
  func.func @transform_3(%arg0: i32) -> (i32, i32) {
    %c0_i32 = arith.constant 0 : i32
    %c0_i32_0 = arith.constant 0 : i32
    return %arg0, %c0_i32 : i32, i32
  }
}

</mosaic_0001>

<llo_original>
// kernel: tpu_custom_call.1
$region0: #{tpu_custom_call.1}
  #allocation0 [shape = 'u32[]', space=smem, size = 0x4, offset = 0x4, fixed_abs, tag = 'smem constant byte address 0x4 - core index']
  #allocation1 [shape = 'u32[144,128]{1,0:T(1,128)}', space=vmem, size = 0x12000, scoped, tag = 'internal scratch']
  %s0 = inlined_call_operand.hbm [shape: f32[1,2304], index: 0, kind: input, shape index: {}]
  %s1 = inlined_call_operand.vmem [shape: f32[2304,49], index: 1, kind: input, shape index: {}]
  %s2 = inlined_call_operand.hbm [shape: bf16[384,2304], index: 2, kind: input, shape index: {}]
  %s3 = inlined_call_operand.vmem [shape: f32[384,49], index: 3, kind: output, shape index: {}]
  %s4 = sld [smem:[#allocation0]]
  $region30: #{tpu_custom_call.1} parent=0
    _
  %s6 = ssub.s32 1, %s4
  %s7 = scalar_select 0, %s6, %s4
  $region1: #{tpu_custom_call.1} parent=0
    #allocation2 [shape = 'u8[9216]{0}', space=vmem, size = 0x2400, scoped, tag = 'input window, operand 0, single buffered']
    #allocation3 [shape = 's32[1]{0}', space=sflag, size = 0x4, scoped, tag = 'scoped memory for tpu_custom_call.1']
    #allocation4 [shape = 'u8[1769472]{0}', space=vmem, size = 0x1b0000, scoped, tag = 'input window, operand 2, single buffered']
    #allocation5 [shape = 's32[1]{0}', space=sflag, size = 0x4, scoped, tag = 'scoped memory for tpu_custom_call.1']
    %8 = vsyncpa [#allocation3], 0
    %9 = vsyncpa [#allocation5], 0
    // Predicated region
    $region2: #{tpu_custom_call.1} parent=1 // pred_check
      _
    $region3: #{tpu_custom_call.1} parent=1 // pred_check_branch
      %11 = sbr.rel (0) target = $region5
    $region4: #{tpu_custom_call.1} parent=1 // pred_region
      %s13 = ssub.s32 288, 288
      %14 = vsyncadd [#allocation3], %s13
      %s16 = sshll.u32 [#allocation2], 4
      %s17 = int_to_ptr.vmem [resolvable:$true] %s16
      %19 = dma.hbm_to_vmem [thread:$0]  %s0, 288, %s17, [#allocation3]
    $region5: #{tpu_custom_call.1} parent=1 // pred_fallthru
      _
    // Predicated region
    $region6: #{tpu_custom_call.1} parent=1 // pred_check
      _
    $region7: #{tpu_custom_call.1} parent=1 // pred_check_branch
      %21 = sbr.rel (0) target = $region9
    $region8: #{tpu_custom_call.1} parent=1 // pred_region
      _
    $region9: #{tpu_custom_call.1} parent=1 // pred_fallthru
      _
    // Predicated region
    $region10: #{tpu_custom_call.1} parent=1 // pred_check
      _
    $region11: #{tpu_custom_call.1} parent=1 // pred_check_branch
      %23 = sbr.rel (0) target = $region13
    $region12: #{tpu_custom_call.1} parent=1 // pred_region
      %s25 = ssub.s32 55296, 55296
      %26 = vsyncadd [#allocation5], %s25
      %s27 = sshll.u32 [#allocation4], 4
      %s28 = int_to_ptr.vmem [resolvable:$true] %s27
      %33 = dma.hbm_to_vmem [thread:$0]  %s2, 55296, %s28, [#allocation5], 1152, 1152, 72
    $region13: #{tpu_custom_call.1} parent=1 // pred_fallthru
      _
    // Predicated region
    $region14: #{tpu_custom_call.1} parent=1 // pred_check
      _
    $region15: #{tpu_custom_call.1} parent=1 // pred_check_branch
      %35 = sbr.rel (0) target = $region17
    $region16: #{tpu_custom_call.1} parent=1 // pred_region
      %36 = dma.done [#allocation3], 288
    $region17: #{tpu_custom_call.1} parent=1 // pred_fallthru
      _
    // Predicated region
    $region18: #{tpu_custom_call.1} parent=1 // pred_check
      _
    $region19: #{tpu_custom_call.1} parent=1 // pred_check_branch
      %38 = sbr.rel (0) target = $region21
    $region20: #{tpu_custom_call.1} parent=1 // pred_region
      %39 = dma.done [#allocation5], 55296
    $region21: #{tpu_custom_call.1} parent=1 // pred_fallthru
      _
    %v41 = vld [vmem:[#allocation2] sm:$0xff]
    %v42 = vld [vmem:[#allocation2 + $0x8] sm:$0xff]
    %v43 = vld [vmem:[#allocation2 + $0x10] sm:$0x3]
    %v44 = vsub.f32 0.0, %v41
    %v45 = vsub.f32 0.0, %v42
    %v46 = vsub.f32 0.0, %v43
    %v47 = vmul.f32 %v44, 1.442695
    %v48 = vpow.pop %v47
    %v49 = vmul.f32 %v45, 1.442695
    %v50 = vpow.pop %v49
    %v51 = vmul.f32 %v46, 1.442695
    %v52 = vpow.pop %v51
    %v53 = vadd.f32 %v48, 1.0
    %v54 = vadd.f32 %v50, 1.0
    %v55 = vadd.f32 %v52, 1.0
    %v56 = vrcp.pop %v53
    %v57 = vrcp.pop %v54
    %v58 = vrcp.pop %v55
    %v59 = vld [vmem:[#allocation4] sm:$0xff]
    %v60 = vld [vmem:[#allocation4 + $0x8] sm:$0xff]
    %v61 = vld [vmem:[#allocation4 + $0x10] sm:$0xff]
    %v62 = vld [vmem:[#allocation4 + $0x18] sm:$0xff]
    %v63 = vld [vmem:[#allocation4 + $0x20] sm:$0xff]
    %v64 = vld [vmem:[#allocation4 + $0x28] sm:$0xff]
    %v65 = vld [vmem:[#allocation4 + $0x30] sm:$0xff]
    %v66 = vld [vmem:[#allocation4 + $0x38] sm:$0xff]
    %v67 = vld [vmem:[#allocation4 + $0x40] sm:$0xff]
    %v68 = vld [vmem:[#allocation4 + $0x48] sm:$0xff]
    %v69 = vld [vmem:[#allocation4 + $0x50] sm:$0xff]
    %v70 = vld [vmem:[#allocation4 + $0x58] sm:$0xff]
    %v71 = vld [vmem:[#allocation4 + $0x60] sm:$0xff]
    %v72 = vld [vmem:[#allocation4 + $0x68] sm:$0xff]
    %v73 = vld [vmem:[#allocation4 + $0x70] sm:$0xff]
    %v74 = vld [vmem:[#allocation4 + $0x78] sm:$0xff]
    %v75 = vld [vmem:[#allocation4 + $0x80] sm:$0xff]
    %v76 = vld [vmem:[#allocation4 + $0x88] sm:$0xff]
    %v77 = vld [vmem:[#allocation4 + $0x90] sm:$0xff]
    %v78 = vld [vmem:[#allocation4 + $0x98] sm:$0xff]
    %v79 = vld [vmem:[#allocation4 + $0xa0] sm:$0xff]
    %v80 = vld [vmem:[#allocation4 + $0xa8] sm:$0xff]
    %v81 = vld [vmem:[#allocation4 + $0xb0] sm:$0xff]
    %v82 = vld [vmem:[#allocation4 + $0xb8] sm:$0xff]
    %v83 = vld [vmem:[#allocation4 + $0xc0] sm:$0xff]
    %v84 = vld [vmem:[#allocation4 + $0xc8] sm:$0xff]
    %v85 = vld [vmem:[#allocation4 + $0xd0] sm:$0xff]
    %v86 = vld [vmem:[#allocation4 + $0xd8] sm:$0xff]
    %v87 = vld [vmem:[#allocation4 + $0xe0] sm:$0xff]
    %v88 = vld [vmem:[#allocation4 + $0xe8] sm:$0xff]
    %v89 = vld [vmem:[#allocation4 + $0xf0] sm:$0xff]
    %v90 = vld [vmem:[#allocation4 + $0xf8] sm:$0xff]
    %v91 = vld [vmem:[#allocation4 + $0x100] sm:$0xff]
    %v92 = vld [vmem:[#allocation4 + $0x108] sm:$0xff]
    %v93 = vld [vmem:[#allocation4 + $0x110] sm:$0xff]
    %v94 = vld [vmem:[#allocation4 + $0x118] sm:$0xff]
    %v95 = vld [vmem:[#allocation4 + $0x120] sm:$0xff]
    %v96 = vld [vmem:[#allocation4 + $0x128] sm:$0xff]
    %v97 = vld [vmem:[#allocation4 + $0x130] sm:$0xff]
    %v98 = vld [vmem:[#allocation4 + $0x138] sm:$0xff]
    %v99 = vld [vmem:[#allocation4 + $0x140] sm:$0xff]
    %v100 = vld [vmem:[#allocation4 + $0x148] sm:$0xff]
    %v101 = vld [vmem:[#allocation4 + $0x150] sm:$0xff]
    %v102 = vld [vmem:[#allocation4 + $0x158] sm:$0xff]
    %v103 = vld [vmem:[#allocation4 + $0x160] sm:$0xff]
    %v104 = vld [vmem:[#allocation4 + $0x168] sm:$0xff]
    %v105 = vld [vmem:[#allocation4 + $0x170] sm:$0xff]
    %v106 = vld [vmem:[#allocation4 + $0x178] sm:$0xff]
    %v107 = vld [vmem:[#allocation4 + $0x180] sm:$0xff]
    %v108 = vld [vmem:[#allocation4 + $0x188] sm:$0xff]
    %v109 = vld [vmem:[#allocation4 + $0x190] sm:$0xff]
    %v110 = vld [vmem:[#allocation4 + $0x198] sm:$0xff]
    %v111 = vld [vmem:[#allocation4 + $0x1a0] sm:$0xff]
    %v112 = vld [vmem:[#allocation4 + $0x1a8] sm:$0xff]
    %v113 = vld [vmem:[#allocation4 + $0x1b0] sm:$0xff]
    %v114 = vld [vmem:[#allocation4 + $0x1b8] sm:$0xff]
    %v115 = vld [vmem:[#allocation4 + $0x1c0] sm:$0xff]
    %v116 = vld [vmem:[#allocation4 + $0x1c8] sm:$0xff]
    %v117 = vld [vmem:[#allocation4 + $0x1d0] sm:$0xff]
    %v118 = vld [vmem:[#allocation4 + $0x1d8] sm:$0xff]
    %v119 = vld [vmem:[#allocation4 + $0x1e0] sm:$0xff]
    %v120 = vld [vmem:[#allocation4 + $0x1e8] sm:$0xff]
    %v121 = vld [vmem:[#allocation4 + $0x1f0] sm:$0xff]
    %v122 = vld [vmem:[#allocation4 + $0x1f8] sm:$0xff]
    %v123 = vld [vmem:[#allocation4 + $0x200] sm:$0xff]
    %v124 = vld [vmem:[#allocation4 + $0x208] sm:$0xff]
    %v125 = vld [vmem:[#allocation4 + $0x210] sm:$0xff]
    %v126 = vld [vmem:[#allocation4 + $0x218] sm:$0xff]
    %v127 = vld [vmem:[#allocation4 + $0x220] sm:$0xff]
    %v128 = vld [vmem:[#allocation4 + $0x228] sm:$0xff]
    %v129 = vld [vmem:[#allocation4 + $0x230] sm:$0xff]
    %v130 = vld [vmem:[#allocation4 + $0x238] sm:$0xff]
    %v131 = vld [vmem:[#allocation4 + $0x240] sm:$0xff]
    %v132 = vld [vmem:[#allocation4 + $0x248] sm:$0xff]
    %v133 = vld [vmem:[#allocation4 + $0x250] sm:$0xff]
    %v134 = vld [vmem:[#allocation4 + $0x258] sm:$0xff]
    %v135 = vld [vmem:[#allocation4 + $0x260] sm:$0xff]
    %v136 = vld [vmem:[#allocation4 + $0x268] sm:$0xff]
    %v137 = vld [vmem:[#allocation4 + $0x270] sm:$0xff]
    %v138 = vld [vmem:[#allocation4 + $0x278] sm:$0xff]
    %v139 = vld [vmem:[#allocation4 + $0x280] sm:$0xff]
    %v140 = vld [vmem:[#allocation4 + $0x288] sm:$0xff]
    %v141 = vld [vmem:[#allocation4 + $0x290] sm:$0xff]
    %v142 = vld [vmem:[#allocation4 + $0x298] sm:$0xff]
    %v143 = vld [vmem:[#allocation4 + $0x2a0] sm:$0xff]
    %v144 = vld [vmem:[#allocation4 + $0x2a8] sm:$0xff]
    %v145 = vld [vmem:[#allocation4 + $0x2b0] sm:$0xff]
    %v146 = vld [vmem:[#allocation4 + $0x2b8] sm:$0xff]
    %v147 = vld [vmem:[#allocation4 + $0x2c0] sm:$0xff]
    %v148 = vld [vmem:[#allocation4 + $0x2c8] sm:$0xff]
    %v149 = vld [vmem:[#allocation4 + $0x2d0] sm:$0xff]
    %v150 = vld [vmem:[#allocation4 + $0x2d8] sm:$0xff]
    %v151 = vld [vmem:[#allocation4 + $0x2e0] sm:$0xff]
    %v152 = vld [vmem:[#allocation4 + $0x2e8] sm:$0xff]
    %v153 = vld [vmem:[#allocation4 + $0x2f0] sm:$0xff]
    %v154 = vld [vmem:[#allocation4 + $0x2f8] sm:$0xff]
    %v155 = vld [vmem:[#allocation4 + $0x300] sm:$0xff]
    %v156 = vld [vmem:[#allocation4 + $0x308] sm:$0xff]
    %v157 = vld [vmem:[#allocation4 + $0x310] sm:$0xff]
    %v158 = vld [vmem:[#allocation4 + $0x318] sm:$0xff]
    %v159 = vld [vmem:[#allocation4 + $0x320] sm:$0xff]
    %v160 = vld [vmem:[#allocation4 + $0x328] sm:$0xff]
    %v161 = vld [vmem:[#allocation4 + $0x330] sm:$0xff]
    %v162 = vld [vmem:[#allocation4 + $0x338] sm:$0xff]
    %v163 = vld [vmem:[#allocation4 + $0x340] sm:$0xff]
    %v164 = vld [vmem:[#allocation4 + $0x348] sm:$0xff]
    %v165 = vld [vmem:[#allocation4 + $0x350] sm:$0xff]
    %v166 = vld [vmem:[#allocation4 + $0x358] sm:$0xff]
    %v167 = vld [vmem:[#allocation4 + $0x360] sm:$0xff]
    %v168 = vld [vmem:[#allocation4 + $0x368] sm:$0xff]
    %v169 = vld [vmem:[#allocation4 + $0x370] sm:$0xff]
    %v170 = vld [vmem:[#allocation4 + $0x378] sm:$0xff]
    %v171 = vld [vmem:[#allocation4 + $0x380] sm:$0xff]
    %v172 = vld [vmem:[#allocation4 + $0x388] sm:$0xff]
    %v173 = vld [vmem:[#allocation4 + $0x390] sm:$0xff]
    %v174 = vld [vmem:[#allocation4 + $0x398] sm:$0xff]
    %v175 = vld [vmem:[#allocation4 + $0x3a0] sm:$0xff]
    %v176 = vld [vmem:[#allocation4 + $0x3a8] sm:$0xff]
    %v177 = vld [vmem:[#allocation4 + $0x3b0] sm:$0xff]
    %v178 = vld [vmem:[#allocation4 + $0x3b8] sm:$0xff]
    %v179 = vld [vmem:[#allocation4 + $0x3c0] sm:$0xff]
    %v180 = vld [vmem:[#allocation4 + $0x3c8] sm:$0xff]
    %v181 = vld [vmem:[#allocation4 + $0x3d0] sm:$0xff]
    %v182 = vld [vmem:[#allocation4 + $0x3d8] sm:$0xff]
    %v183 = vld [vmem:[#allocation4 + $0x3e0] sm:$0xff]
    %v184 = vld [vmem:[#allocation4 + $0x3e8] sm:$0xff]
    %v185 = vld [vmem:[#allocation4 + $0x3f0] sm:$0xff]
    %v186 = vld [vmem:[#allocation4 + $0x3f8] sm:$0xff]
    %v187 = vld [vmem:[#allocation4 + $0x400] sm:$0xff]
    %v188 = vld [vmem:[#allocation4 + $0x408] sm:$0xff]
    %v189 = vld [vmem:[#allocation4 + $0x410] sm:$0xff]
    %v190 = vld [vmem:[#allocation4 + $0x418] sm:$0xff]
    %v191 = vld [vmem:[#allocation4 + $0x420] sm:$0xff]
    %v192 = vld [vmem:[#allocation4 + $0x428] sm:$0xff]
    %v193 = vld [vmem:[#allocation4 + $0x430] sm:$0xff]
    %v194 = vld [vmem:[#allocation4 + $0x438] sm:$0xff]
    %v195 = vld [vmem:[#allocation4 + $0x440] sm:$0xff]
    %v196 = vld [vmem:[#allocation4 + $0x448] sm:$0xff]
    %v197 = vld [vmem:[#allocation4 + $0x450] sm:$0xff]
    %v198 = vld [vmem:[#allocation4 + $0x458] sm:$0xff]
    %v199 = vld [vmem:[#allocation4 + $0x460] sm:$0xff]
    %v200 = vld [vmem:[#allocation4 + $0x468] sm:$0xff]
    %v201 = vld [vmem:[#allocation4 + $0x470] sm:$0xff]
    %v202 = vld [vmem:[#allocation4 + $0x478] sm:$0xff]
    %v203 = vld [vmem:[#allocation4 + $0x480] sm:$0xff]
    %v204 = vld [vmem:[#allocation4 + $0x488] sm:$0xff]
    %v205 = vld [vmem:[#allocation4 + $0x490] sm:$0xff]
    %v206 = vld [vmem:[#allocation4 + $0x498] sm:$0xff]
    %v207 = vld [vmem:[#allocation4 + $0x4a0] sm:$0xff]
    %v208 = vld [vmem:[#allocation4 + $0x4a8] sm:$0xff]
    %v209 = vld [vmem:[#allocation4 + $0x4b0] sm:$0xff]
    %v210 = vld [vmem:[#allocation4 + $0x4b8] sm:$0xff]
    %v211 = vld [vmem:[#allocation4 + $0x4c0] sm:$0xff]
    %v212 = vld [vmem:[#allocation4 + $0x4c8] sm:$0xff]
    %v213 = vld [vmem:[#allocation4 + $0x4d0] sm:$0xff]
    %v214 = vld [vmem:[#allocation4 + $0x4d8] sm:$0xff]
    %v215 = vld [vmem:[#allocation4 + $0x4e0] sm:$0xff]
    %v216 = vld [vmem:[#allocation4 + $0x4e8] sm:$0xff]
    %v217 = vld [vmem:[#allocation4 + $0x4f0] sm:$0xff]
    %v218 = vld [vmem:[#allocation4 + $0x4f8] sm:$0xff]
    %v219 = vld [vmem:[#allocation4 + $0x500] sm:$0xff]
    %v220 = vld [vmem:[#allocation4 + $0x508] sm:$0xff]
    %v221 = vld [vmem:[#allocation4 + $0x510] sm:$0xff]
    %v222 = vld [vmem:[#allocation4 + $0x518] sm:$0xff]
    %v223 = vld [vmem:[#allocation4 + $0x520] sm:$0xff]
    %v224 = vld [vmem:[#allocation4 + $0x528] sm:$0xff]
    %v225 = vld [vmem:[#allocation4 + $0x530] sm:$0xff]
    %v226 = vld [vmem:[#allocation4 + $0x538] sm:$0xff]
    %v227 = vld [vmem:[#allocation4 + $0x540] sm:$0xff]
    %v228 = vld [vmem:[#allocation4 + $0x548] sm:$0xff]
    %v229 = vld [vmem:[#allocation4 + $0x550] sm:$0xff]
    %v230 = vld [vmem:[#allocation4 + $0x558] sm:$0xff]
    %v231 = vld [vmem:[#allocation4 + $0x560] sm:$0xff]
    %v232 = vld [vmem:[#allocation4 + $0x568] sm:$0xff]
    %v233 = vld [vmem:[#allocation4 + $0x570] sm:$0xff]
    %v234 = vld [vmem:[#allocation4 + $0x578] sm:$0xff]
    %v235 = vld [vmem:[#allocation4 + $0x580] sm:$0xff]
    %v236 = vld [vmem:[#allocation4 + $0x588] sm:$0xff]
    %v237 = vld [vmem:[#allocation4 + $0x590] sm:$0xff]
    %v238 = vld [vmem:[#allocation4 + $0x598] sm:$0xff]
    %v239 = vld [vmem:[#allocation4 + $0x5a0] sm:$0xff]
    %v240 = vld [vmem:[#allocation4 + $0x5a8] sm:$0xff]
    %v241 = vld [vmem:[#allocation4 + $0x5b0] sm:$0xff]
    %v242 = vld [vmem:[#allocation4 + $0x5b8] sm:$0xff]
    %v243 = vld [vmem:[#allocation4 + $0x5c0] sm:$0xff]
    %v244 = vld [vmem:[#allocation4 + $0x5c8] sm:$0xff]
    %v245 = vld [vmem:[#allocation4 + $0x5d0] sm:$0xff]
    %v246 = vld [vmem:[#allocation4 + $0x5d8] sm:$0xff]
    %v247 = vld [vmem:[#allocation4 + $0x5e0] sm:$0xff]
    %v248 = vld [vmem:[#allocation4 + $0x5e8] sm:$0xff]
    %v249 = vld [vmem:[#allocation4 + $0x5f0] sm:$0xff]
    %v250 = vld [vmem:[#allocation4 + $0x5f8] sm:$0xff]
    %v251 = vld [vmem:[#allocation4 + $0x600] sm:$0xff]
    %v252 = vld [vmem:[#allocation4 + $0x608] sm:$0xff]
    %v253 = vld [vmem:[#allocation4 + $0x610] sm:$0xff]
    %v254 = vld [vmem:[#allocation4 + $0x618] sm:$0xff]
    %v255 = vld [vmem:[#allocation4 + $0x620] sm:$0xff]
    %v256 = vld [vmem:[#allocation4 + $0x628] sm:$0xff]
    %v257 = vld [vmem:[#allocation4 + $0x630] sm:$0xff]
    %v258 = vld [vmem:[#allocation4 + $0x638] sm:$0xff]
    %v259 = vld [vmem:[#allocation4 + $0x640] sm:$0xff]
    %v260 = vld [vmem:[#allocation4 + $0x648] sm:$0xff]
    %v261 = vld [vmem:[#allocation4 + $0x650] sm:$0xff]
    %v262 = vld [vmem:[#allocation4 + $0x658] sm:$0xff]
    %v263 = vld [vmem:[#allocation4 + $0x660] sm:$0xff]
    %v264 = vld [vmem:[#allocation4 + $0x668] sm:$0xff]
    %v265 = vld [vmem:[#allocation4 + $0x670] sm:$0xff]
    %v266 = vld [vmem:[#allocation4 + $0x678] sm:$0xff]
    %v267 = vld [vmem:[#allocation4 + $0x680] sm:$0xff]
    %v268 = vld [vmem:[#allocation4 + $0x688] sm:$0xff]
    %v269 = vld [vmem:[#allocation4 + $0x690] sm:$0xff]
    %v270 = vld [vmem:[#allocation4 + $0x698] sm:$0xff]
    %v271 = vld [vmem:[#allocation4 + $0x6a0] sm:$0xff]
    %v272 = vld [vmem:[#allocation4 + $0x6a8] sm:$0xff]
    %v273 = vld [vmem:[#allocation4 + $0x6b0] sm:$0xff]
    %v274 = vld [vmem:[#allocation4 + $0x6b8] sm:$0xff]
    %v275 = vld [vmem:[#allocation4 + $0x6c0] sm:$0xff]
    %v276 = vld [vmem:[#allocation4 + $0x6c8] sm:$0xff]
    %v277 = vld [vmem:[#allocation4 + $0x6d0] sm:$0xff]
    %v278 = vld [vmem:[#allocation4 + $0x6d8] sm:$0xff]
    %v279 = vld [vmem:[#allocation4 + $0x6e0] sm:$0xff]
    %v280 = vld [vmem:[#allocation4 + $0x6e8] sm:$0xff]
    %v281 = vld [vmem:[#allocation4 + $0x6f0] sm:$0xff]
    %v282 = vld [vmem:[#allocation4 + $0x6f8] sm:$0xff]
    %v283 = vld [vmem:[#allocation4 + $0x700] sm:$0xff]
    %v284 = vld [vmem:[#allocation4 + $0x708] sm:$0xff]
    %v285 = vld [vmem:[#allocation4 + $0x710] sm:$0xff]
    %v286 = vld [vmem:[#allocation4 + $0x718] sm:$0xff]
    %v287 = vld [vmem:[#allocation4 + $0x720] sm:$0xff]
    %v288 = vld [vmem:[#allocation4 + $0x728] sm:$0xff]
    %v289 = vld [vmem:[#allocation4 + $0x730] sm:$0xff]
    %v290 = vld [vmem:[#allocation4 + $0x738] sm:$0xff]
    %v291 = vld [vmem:[#allocation4 + $0x740] sm:$0xff]
    %v292 = vld [vmem:[#allocation4 + $0x748] sm:$0xff]
    %v293 = vld [vmem:[#allocation4 + $0x750] sm:$0xff]
    %v294 = vld [vmem:[#allocation4 + $0x758] sm:$0xff]
    %v295 = vld [vmem:[#allocation4 + $0x760] sm:$0xff]
    %v296 = vld [vmem:[#allocation4 + $0x768] sm:$0xff]
    %v297 = vld [vmem:[#allocation4 + $0x770] sm:$0xff]
    %v298 = vld [vmem:[#allocation4 + $0x778] sm:$0xff]
    %v299 = vld [vmem:[#allocation4 + $0x780] sm:$0xff]
    %v300 = vld [vmem:[#allocation4 + $0x788] sm:$0xff]
    %v301 = vld [vmem:[#allocation4 + $0x790] sm:$0xff]
    %v302 = vld [vmem:[#allocation4 + $0x798] sm:$0xff]
    %v303 = vld [vmem:[#allocation4 + $0x7a0] sm:$0xff]
    %v304 = vld [vmem:[#allocation4 + $0x7a8] sm:$0xff]
    %v305 = vld [vmem:[#allocation4 + $0x7b0] sm:$0xff]
    %v306 = vld [vmem:[#allocation4 + $0x7b8] sm:$0xff]
    %v307 = vld [vmem:[#allocation4 + $0x7c0] sm:$0xff]
    %v308 = vld [vmem:[#allocation4 + $0x7c8] sm:$0xff]
    %v309 = vld [vmem:[#allocation4 + $0x7d0] sm:$0xff]
    %v310 = vld [vmem:[#allocation4 + $0x7d8] sm:$0xff]
    %v311 = vld [vmem:[#allocation4 + $0x7e0] sm:$0xff]
    %v312 = vld [vmem:[#allocation4 + $0x7e8] sm:$0xff]
    %v313 = vld [vmem:[#allocation4 + $0x7f0] sm:$0xff]
    %v314 = vld [vmem:[#allocation4 + $0x7f8] sm:$0xff]
    %v315 = vld [vmem:[#allocation4 + $0x800] sm:$0xff]
    %v316 = vld [vmem:[#allocation4 + $0x808] sm:$0xff]
    %v317 = vld [vmem:[#allocation4 + $0x810] sm:$0xff]
    %v318 = vld [vmem:[#allocation4 + $0x818] sm:$0xff]
    %v319 = vld [vmem:[#allocation4 + $0x820] sm:$0xff]
    %v320 = vld [vmem:[#allocation4 + $0x828] sm:$0xff]
    %v321 = vld [vmem:[#allocation4 + $0x830] sm:$0xff]
    %v322 = vld [vmem:[#allocation4 + $0x838] sm:$0xff]
    %v323 = vld [vmem:[#allocation4 + $0x840] sm:$0xff]
    %v324 = vld [vmem:[#allocation4 + $0x848] sm:$0xff]
    %v325 = vld [vmem:[#allocation4 + $0x850] sm:$0xff]
    %v326 = vld [vmem:[#allocation4 + $0x858] sm:$0xff]
    %v327 = vld [vmem:[#allocation4 + $0x860] sm:$0xff]
    %v328 = vld [vmem:[#allocation4 + $0x868] sm:$0xff]
    %v329 = vld [vmem:[#allocation4 + $0x870] sm:$0xff]
    %v330 = vld [vmem:[#allocation4 + $0x878] sm:$0xff]
    %v331 = vld [vmem:[#allocation4 + $0x880] sm:$0xff]
    %v332 = vld [vmem:[#allocation4 + $0x888] sm:$0xff]
    %v333 = vld [vmem:[#allocation4 + $0x890] sm:$0xff]
    %v334 = vld [vmem:[#allocation4 + $0x898] sm:$0xff]
    %v335 = vld [vmem:[#allocation4 + $0x8a0] sm:$0xff]
    %v336 = vld [vmem:[#allocation4 + $0x8a8] sm:$0xff]
    %v337 = vld [vmem:[#allocation4 + $0x8b0] sm:$0xff]
    %v338 = vld [vmem:[#allocation4 + $0x8b8] sm:$0xff]
    %v339 = vld [vmem:[#allocation4 + $0x8c0] sm:$0xff]
    %v340 = vld [vmem:[#allocation4 + $0x8c8] sm:$0xff]
    %v341 = vld [vmem:[#allocation4 + $0x8d0] sm:$0xff]
    %v342 = vld [vmem:[#allocation4 + $0x8d8] sm:$0xff]
    %v343 = vld [vmem:[#allocation4 + $0x8e0] sm:$0xff]
    %v344 = vld [vmem:[#allocation4 + $0x8e8] sm:$0xff]
    %v345 = vld [vmem:[#allocation4 + $0x8f0] sm:$0xff]
    %v346 = vld [vmem:[#allocation4 + $0x8f8] sm:$0xff]
    %v347 = vld [vmem:[#allocation4 + $0x900] sm:$0xff]
    %v348 = vld [vmem:[#allocation4 + $0x908] sm:$0xff]
    %v349 = vld [vmem:[#allocation4 + $0x910] sm:$0xff]
    %v350 = vld [vmem:[#allocation4 + $0x918] sm:$0xff]
    %v351 = vld [vmem:[#allocation4 + $0x920] sm:$0xff]
    %v352 = vld [vmem:[#allocation4 + $0x928] sm:$0xff]
    %v353 = vld [vmem:[#allocation4 + $0x930] sm:$0xff]
    %v354 = vld [vmem:[#allocation4 + $0x938] sm:$0xff]
    %v355 = vld [vmem:[#allocation4 + $0x940] sm:$0xff]
    %v356 = vld [vmem:[#allocation4 + $0x948] sm:$0xff]
    %v357 = vld [vmem:[#allocation4 + $0x950] sm:$0xff]
    %v358 = vld [vmem:[#allocation4 + $0x958] sm:$0xff]
    %v359 = vld [vmem:[#allocation4 + $0x960] sm:$0xff]
    %v360 = vld [vmem:[#allocation4 + $0x968] sm:$0xff]
    %v361 = vld [vmem:[#allocation4 + $0x970] sm:$0xff]
    %v362 = vld [vmem:[#allocation4 + $0x978] sm:$0xff]
    %v363 = vld [vmem:[#allocation4 + $0x980] sm:$0xff]
    %v364 = vld [vmem:[#allocation4 + $0x988] sm:$0xff]
    %v365 = vld [vmem:[#allocation4 + $0x990] sm:$0xff]
    %v366 = vld [vmem:[#allocation4 + $0x998] sm:$0xff]
    %v367 = vld [vmem:[#allocation4 + $0x9a0] sm:$0xff]
    %v368 = vld [vmem:[#allocation4 + $0x9a8] sm:$0xff]
    %v369 = vld [vmem:[#allocation4 + $0x9b0] sm:$0xff]
    %v370 = vld [vmem:[#allocation4 + $0x9b8] sm:$0xff]
    %v371 = vld [vmem:[#allocation4 + $0x9c0] sm:$0xff]
    %v372 = vld [vmem:[#allocation4 + $0x9c8] sm:$0xff]
    %v373 = vld [vmem:[#allocation4 + $0x9d0] sm:$0xff]
    %v374 = vld [vmem:[#allocation4 + $0x9d8] sm:$0xff]
    %v375 = vld [vmem:[#allocation4 + $0x9e0] sm:$0xff]
    %v376 = vld [vmem:[#allocation4 + $0x9e8] sm:$0xff]
    %v377 = vld [vmem:[#allocation4 + $0x9f0] sm:$0xff]
    %v378 = vld [vmem:[#allocation4 + $0x9f8] sm:$0xff]
    %v379 = vld [vmem:[#allocation4 + $0xa00] sm:$0xff]
    %v380 = vld [vmem:[#allocation4 + $0xa08] sm:$0xff]
    %v381 = vld [vmem:[#allocation4 + $0xa10] sm:$0xff]
    %v382 = vld [vmem:[#allocation4 + $0xa18] sm:$0xff]
    %v383 = vld [vmem:[#allocation4 + $0xa20] sm:$0xff]
    %v384 = vld [vmem:[#allocation4 + $0xa28] sm:$0xff]
    %v385 = vld [vmem:[#allocation4 + $0xa30] sm:$0xff]
    %v386 = vld [vmem:[#allocation4 + $0xa38] sm:$0xff]
    %v387 = vld [vmem:[#allocation4 + $0xa40] sm:$0xff]
    %v388 = vld [vmem:[#allocation4 + $0xa48] sm:$0xff]
    %v389 = vld [vmem:[#allocation4 + $0xa50] sm:$0xff]
    %v390 = vld [vmem:[#allocation4 + $0xa58] sm:$0xff]
    %v391 = vld [vmem:[#allocation4 + $0xa60] sm:$0xff]
    %v392 = vld [vmem:[#allocation4 + $0xa68] sm:$0xff]
    %v393 = vld [vmem:[#allocation4 + $0xa70] sm:$0xff]
    %v394 = vld [vmem:[#allocation4 + $0xa78] sm:$0xff]
    %v395 = vld [vmem:[#allocation4 + $0xa80] sm:$0xff]
    %v396 = vld [vmem:[#allocation4 + $0xa88] sm:$0xff]
    %v397 = vld [vmem:[#allocation4 + $0xa90] sm:$0xff]
    %v398 = vld [vmem:[#allocation4 + $0xa98] sm:$0xff]
    %v399 = vld [vmem:[#allocation4 + $0xaa0] sm:$0xff]
    %v400 = vld [vmem:[#allocation4 + $0xaa8] sm:$0xff]
    %v401 = vld [vmem:[#allocation4 + $0xab0] sm:$0xff]
    %v402 = vld [vmem:[#allocation4 + $0xab8] sm:$0xff]
    %v403 = vld [vmem:[#allocation4 + $0xac0] sm:$0xff]
    %v404 = vld [vmem:[#allocation4 + $0xac8] sm:$0xff]
    %v405 = vld [vmem:[#allocation4 + $0xad0] sm:$0xff]
    %v406 = vld [vmem:[#allocation4 + $0xad8] sm:$0xff]
    %v407 = vld [vmem:[#allocation4 + $0xae0] sm:$0xff]
    %v408 = vld [vmem:[#allocation4 + $0xae8] sm:$0xff]
    %v409 = vld [vmem:[#allocation4 + $0xaf0] sm:$0xff]
    %v410 = vld [vmem:[#allocation4 + $0xaf8] sm:$0xff]
    %v411 = vld [vmem:[#allocation4 + $0xb00] sm:$0xff]
    %v412 = vld [vmem:[#allocation4 + $0xb08] sm:$0xff]
    %v413 = vld [vmem:[#allocation4 + $0xb10] sm:$0xff]
    %v414 = vld [vmem:[#allocation4 + $0xb18] sm:$0xff]
    %v415 = vld [vmem:[#allocation4 + $0xb20] sm:$0xff]
    %v416 = vld [vmem:[#allocation4 + $0xb28] sm:$0xff]
    %v417 = vld [vmem:[#allocation4 + $0xb30] sm:$0xff]
    %v418 = vld [vmem:[#allocation4 + $0xb38] sm:$0xff]
    %v419 = vld [vmem:[#allocation4 + $0xb40] sm:$0xff]
    %v420 = vld [vmem:[#allocation4 + $0xb48] sm:$0xff]
    %v421 = vld [vmem:[#allocation4 + $0xb50] sm:$0xff]
    %v422 = vld [vmem:[#allocation4 + $0xb58] sm:$0xff]
    %v423 = vld [vmem:[#allocation4 + $0xb60] sm:$0xff]
    %v424 = vld [vmem:[#allocation4 + $0xb68] sm:$0xff]
    %v425 = vld [vmem:[#allocation4 + $0xb70] sm:$0xff]
    %v426 = vld [vmem:[#allocation4 + $0xb78] sm:$0xff]
    %v427 = vld [vmem:[#allocation4 + $0xb80] sm:$0xff]
    %v428 = vld [vmem:[#allocation4 + $0xb88] sm:$0xff]
    %v429 = vld [vmem:[#allocation4 + $0xb90] sm:$0xff]
    %v430 = vld [vmem:[#allocation4 + $0xb98] sm:$0xff]
    %v431 = vld [vmem:[#allocation4 + $0xba0] sm:$0xff]
    %v432 = vld [vmem:[#allocation4 + $0xba8] sm:$0xff]
    %v433 = vld [vmem:[#allocation4 + $0xbb0] sm:$0xff]
    %v434 = vld [vmem:[#allocation4 + $0xbb8] sm:$0xff]
    %v435 = vld [vmem:[#allocation4 + $0xbc0] sm:$0xff]
    %v436 = vld [vmem:[#allocation4 + $0xbc8] sm:$0xff]
    %v437 = vld [vmem:[#allocation4 + $0xbd0] sm:$0xff]
    %v438 = vld [vmem:[#allocation4 + $0xbd8] sm:$0xff]
    %v439 = vld [vmem:[#allocation4 + $0xbe0] sm:$0xff]
    %v440 = vld [vmem:[#allocation4 + $0xbe8] sm:$0xff]
    %v441 = vld [vmem:[#allocation4 + $0xbf0] sm:$0xff]
    %v442 = vld [vmem:[#allocation4 + $0xbf8] sm:$0xff]
    %v443 = vld [vmem:[#allocation4 + $0xc00] sm:$0xff]
    %v444 = vld [vmem:[#allocation4 + $0xc08] sm:$0xff]
    %v445 = vld [vmem:[#allocation4 + $0xc10] sm:$0xff]
    %v446 = vld [vmem:[#allocation4 + $0xc18] sm:$0xff]
    %v447 = vld [vmem:[#allocation4 + $0xc20] sm:$0xff]
    %v448 = vld [vmem:[#allocation4 + $0xc28] sm:$0xff]
    %v449 = vld [vmem:[#allocation4 + $0xc30] sm:$0xff]
    %v450 = vld [vmem:[#allocation4 + $0xc38] sm:$0xff]
    %v451 = vld [vmem:[#allocation4 + $0xc40] sm:$0xff]
    %v452 = vld [vmem:[#allocation4 + $0xc48] sm:$0xff]
    %v453 = vld [vmem:[#allocation4 + $0xc50] sm:$0xff]
    %v454 = vld [vmem:[#allocation4 + $0xc58] sm:$0xff]
    %v455 = vld [vmem:[#allocation4 + $0xc60] sm:$0xff]
    %v456 = vld [vmem:[#allocation4 + $0xc68] sm:$0xff]
    %v457 = vld [vmem:[#allocation4 + $0xc70] sm:$0xff]
    %v458 = vld [vmem:[#allocation4 + $0xc78] sm:$0xff]
    %v459 = vld [vmem:[#allocation4 + $0xc80] sm:$0xff]
    %v460 = vld [vmem:[#allocation4 + $0xc88] sm:$0xff]
    %v461 = vld [vmem:[#allocation4 + $0xc90] sm:$0xff]
    %v462 = vld [vmem:[#allocation4 + $0xc98] sm:$0xff]
    %v463 = vld [vmem:[#allocation4 + $0xca0] sm:$0xff]
    %v464 = vld [vmem:[#allocation4 + $0xca8] sm:$0xff]
    %v465 = vld [vmem:[#allocation4 + $0xcb0] sm:$0xff]
    %v466 = vld [vmem:[#allocation4 + $0xcb8] sm:$0xff]
    %v467 = vld [vmem:[#allocation4 + $0xcc0] sm:$0xff]
    %v468 = vld [vmem:[#allocation4 + $0xcc8] sm:$0xff]
    %v469 = vld [vmem:[#allocation4 + $0xcd0] sm:$0xff]
    %v470 = vld [vmem:[#allocation4 + $0xcd8] sm:$0xff]
    %v471 = vld [vmem:[#allocation4 + $0xce0] sm:$0xff]
    %v472 = vld [vmem:[#allocation4 + $0xce8] sm:$0xff]
    %v473 = vld [vmem:[#allocation4 + $0xcf0] sm:$0xff]
    %v474 = vld [vmem:[#allocation4 + $0xcf8] sm:$0xff]
    %v475 = vld [vmem:[#allocation4 + $0xd00] sm:$0xff]
    %v476 = vld [vmem:[#allocation4 + $0xd08] sm:$0xff]
    %v477 = vld [vmem:[#allocation4 + $0xd10] sm:$0xff]
    %v478 = vld [vmem:[#allocation4 + $0xd18] sm:$0xff]
    %v479 = vld [vmem:[#allocation4 + $0xd20] sm:$0xff]
    %v480 = vld [vmem:[#allocation4 + $0xd28] sm:$0xff]
    %v481 = vld [vmem:[#allocation4 + $0xd30] sm:$0xff]
    %v482 = vld [vmem:[#allocation4 + $0xd38] sm:$0xff]
    %v483 = vld [vmem:[#allocation4 + $0xd40] sm:$0xff]
    %v484 = vld [vmem:[#allocation4 + $0xd48] sm:$0xff]
    %v485 = vld [vmem:[#allocation4 + $0xd50] sm:$0xff]
    %v486 = vld [vmem:[#allocation4 + $0xd58] sm:$0xff]
    %v487 = vld [vmem:[#allocation4 + $0xd60] sm:$0xff]
    %v488 = vld [vmem:[#allocation4 + $0xd68] sm:$0xff]
    %v489 = vld [vmem:[#allocation4 + $0xd70] sm:$0xff]
    %v490 = vld [vmem:[#allocation4 + $0xd78] sm:$0xff]
    %v491 = vunpack.c.l.bf16 %v59
    %v492 = vunpack.c.h.bf16 %v59
    %v493 = vunpack.c.l.bf16 %v60
    %v494 = vunpack.c.h.bf16 %v60
    %v495 = vunpack.c.l.bf16 %v61
    %v496 = vunpack.c.h.bf16 %v61
    %v497 = vunpack.c.l.bf16 %v62
    %v498 = vunpack.c.h.bf16 %v62
    %v499 = vunpack.c.l.bf16 %v63
    %v500 = vunpack.c.h.bf16 %v63
    %v501 = vunpack.c.l.bf16 %v64
    %v502 = vunpack.c.h.bf16 %v64
    %v503 = vunpack.c.l.bf16 %v65
    %v504 = vunpack.c.h.bf16 %v65
    %v505 = vunpack.c.l.bf16 %v66
    %v506 = vunpack.c.h.bf16 %v66
    %v507 = vunpack.c.l.bf16 %v67
    %v508 = vunpack.c.h.bf16 %v67
    %v509 = vunpack.c.l.bf16 %v68
    %v510 = vunpack.c.h.bf16 %v68
    %v511 = vunpack.c.l.bf16 %v69
    %v512 = vunpack.c.h.bf16 %v69
    %v513 = vunpack.c.l.bf16 %v70
    %v514 = vunpack.c.h.bf16 %v70
    %v515 = vunpack.c.l.bf16 %v71
    %v516 = vunpack.c.h.bf16 %v71
    %v517 = vunpack.c.l.bf16 %v72
    %v518 = vunpack.c.h.bf16 %v72
    %v519 = vunpack.c.l.bf16 %v73
    %v520 = vunpack.c.h.bf16 %v73
    %v521 = vunpack.c.l.bf16 %v74
    %v522 = vunpack.c.h.bf16 %v74
    %v523 = vunpack.c.l.bf16 %v75
    %v524 = vunpack.c.h.bf16 %v75
    %v525 = vunpack.c.l.bf16 %v76
    %v526 = vunpack.c.h.bf16 %v76
    %v527 = vunpack.c.l.bf16 %v77
    %v528 = vunpack.c.h.bf16 %v77
    %v529 = vunpack.c.l.bf16 %v78
    %v530 = vunpack.c.h.bf16 %v78
    %v531 = vunpack.c.l.bf16 %v79
    %v532 = vunpack.c.h.bf16 %v79
    %v533 = vunpack.c.l.bf16 %v80
    %v534 = vunpack.c.h.bf16 %v80
    %v535 = vunpack.c.l.bf16 %v81
    %v536 = vunpack.c.h.bf16 %v81
    %v537 = vunpack.c.l.bf16 %v82
    %v538 = vunpack.c.h.bf16 %v82
    %v539 = vunpack.c.l.bf16 %v83
    %v540 = vunpack.c.h.bf16 %v83
    %v541 = vunpack.c.l.bf16 %v84
    %v542 = vunpack.c.h.bf16 %v84
    %v543 = vunpack.c.l.bf16 %v85
    %v544 = vunpack.c.h.bf16 %v85
    %v545 = vunpack.c.l.bf16 %v86
    %v546 = vunpack.c.h.bf16 %v86
    %v547 = vunpack.c.l.bf16 %v87
    %v548 = vunpack.c.h.bf16 %v87
    %v549 = vunpack.c.l.bf16 %v88
    %v550 = vunpack.c.h.bf16 %v88
    %v551 = vunpack.c.l.bf16 %v89
    %v552 = vunpack.c.h.bf16 %v89
    %v553 = vunpack.c.l.bf16 %v90
    %v554 = vunpack.c.h.bf16 %v90
    %v555 = vunpack.c.l.bf16 %v91
    %v556 = vunpack.c.h.bf16 %v91
    %v557 = vunpack.c.l.bf16 %v92
    %v558 = vunpack.c.h.bf16 %v92
    %v559 = vunpack.c.l.bf16 %v93
    %v560 = vunpack.c.h.bf16 %v93
    %v561 = vunpack.c.l.bf16 %v94
    %v562 = vunpack.c.h.bf16 %v94
    %v563 = vunpack.c.l.bf16 %v95
    %v564 = vunpack.c.h.bf16 %v95
    %v565 = vunpack.c.l.bf16 %v96
    %v566 = vunpack.c.h.bf16 %v96
    %v567 = vunpack.c.l.bf16 %v97
    %v568 = vunpack.c.h.bf16 %v97
    %v569 = vunpack.c.l.bf16 %v98
    %v570 = vunpack.c.h.bf16 %v98
    %v571 = vunpack.c.l.bf16 %v99
    %v572 = vunpack.c.h.bf16 %v99
    %v573 = vunpack.c.l.bf16 %v100
    %v574 = vunpack.c.h.bf16 %v100
    %v575 = vunpack.c.l.bf16 %v101
    %v576 = vunpack.c.h.bf16 %v101
    %v577 = vunpack.c.l.bf16 %v102
    %v578 = vunpack.c.h.bf16 %v102
    %v579 = vunpack.c.l.bf16 %v103
    %v580 = vunpack.c.h.bf16 %v103
    %v581 = vunpack.c.l.bf16 %v104
    %v582 = vunpack.c.h.bf16 %v104
    %v583 = vunpack.c.l.bf16 %v105
    %v584 = vunpack.c.h.bf16 %v105
    %v585 = vunpack.c.l.bf16 %v106
    %v586 = vunpack.c.h.bf16 %v106
    %v587 = vunpack.c.l.bf16 %v107
    %v588 = vunpack.c.h.bf16 %v107
    %v589 = vunpack.c.l.bf16 %v108
    %v590 = vunpack.c.h.bf16 %v108
    %v591 = vunpack.c.l.bf16 %v109
    %v592 = vunpack.c.h.bf16 %v109
    %v593 = vunpack.c.l.bf16 %v110
    %v594 = vunpack.c.h.bf16 %v110
    %v595 = vunpack.c.l.bf16 %v111
    %v596 = vunpack.c.h.bf16 %v111
    %v597 = vunpack.c.l.bf16 %v112
    %v598 = vunpack.c.h.bf16 %v112
    %v599 = vunpack.c.l.bf16 %v113
    %v600 = vunpack.c.h.bf16 %v113
    %v601 = vunpack.c.l.bf16 %v114
    %v602 = vunpack.c.h.bf16 %v114
    %v603 = vunpack.c.l.bf16 %v115
    %v604 = vunpack.c.h.bf16 %v115
    %v605 = vunpack.c.l.bf16 %v116
    %v606 = vunpack.c.h.bf16 %v116
    %v607 = vunpack.c.l.bf16 %v117
    %v608 = vunpack.c.h.bf16 %v117
    %v609 = vunpack.c.l.bf16 %v118
    %v610 = vunpack.c.h.bf16 %v118
    %v611 = vunpack.c.l.bf16 %v119
    %v612 = vunpack.c.h.bf16 %v119
    %v613 = vunpack.c.l.bf16 %v120
    %v614 = vunpack.c.h.bf16 %v120
    %v615 = vunpack.c.l.bf16 %v121
    %v616 = vunpack.c.h.bf16 %v121
    %v617 = vunpack.c.l.bf16 %v122
    %v618 = vunpack.c.h.bf16 %v122
    %v619 = vunpack.c.l.bf16 %v123
    %v620 = vunpack.c.h.bf16 %v123
    %v621 = vunpack.c.l.bf16 %v124
    %v622 = vunpack.c.h.bf16 %v124
    %v623 = vunpack.c.l.bf16 %v125
    %v624 = vunpack.c.h.bf16 %v125
    %v625 = vunpack.c.l.bf16 %v126
    %v626 = vunpack.c.h.bf16 %v126
    %v627 = vunpack.c.l.bf16 %v127
    %v628 = vunpack.c.h.bf16 %v127
    %v629 = vunpack.c.l.bf16 %v128
    %v630 = vunpack.c.h.bf16 %v128
    %v631 = vunpack.c.l.bf16 %v129
    %v632 = vunpack.c.h.bf16 %v129
    %v633 = vunpack.c.l.bf16 %v130
    %v634 = vunpack.c.h.bf16 %v130
    %v635 = vunpack.c.l.bf16 %v131
    %v636 = vunpack.c.h.bf16 %v131
    %v637 = vunpack.c.l.bf16 %v132
    %v638 = vunpack.c.h.bf16 %v132
    %v639 = vunpack.c.l.bf16 %v133
    %v640 = vunpack.c.h.bf16 %v133
    %v641 = vunpack.c.l.bf16 %v134
    %v642 = vunpack.c.h.bf16 %v134
    %v643 = vunpack.c.l.bf16 %v135
    %v644 = vunpack.c.h.bf16 %v135
    %v645 = vunpack.c.l.bf16 %v136
    %v646 = vunpack.c.h.bf16 %v136
    %v647 = vunpack.c.l.bf16 %v137
    %v648 = vunpack.c.h.bf16 %v137
    %v649 = vunpack.c.l.bf16 %v138
    %v650 = vunpack.c.h.bf16 %v138
    %v651 = vunpack.c.l.bf16 %v139
    %v652 = vunpack.c.h.bf16 %v139
    %v653 = vunpack.c.l.bf16 %v140
    %v654 = vunpack.c.h.bf16 %v140
    %v655 = vunpack.c.l.bf16 %v141
    %v656 = vunpack.c.h.bf16 %v141
    %v657 = vunpack.c.l.bf16 %v142
    %v658 = vunpack.c.h.bf16 %v142
    %v659 = vunpack.c.l.bf16 %v143
    %v660 = vunpack.c.h.bf16 %v143
    %v661 = vunpack.c.l.bf16 %v144
    %v662 = vunpack.c.h.bf16 %v144
    %v663 = vunpack.c.l.bf16 %v145
    %v664 = vunpack.c.h.bf16 %v145
    %v665 = vunpack.c.l.bf16 %v146
    %v666 = vunpack.c.h.bf16 %v146
    %v667 = vunpack.c.l.bf16 %v147
    %v668 = vunpack.c.h.bf16 %v147
    %v669 = vunpack.c.l.bf16 %v148
    %v670 = vunpack.c.h.bf16 %v148
    %v671 = vunpack.c.l.bf16 %v149
    %v672 = vunpack.c.h.bf16 %v149
    %v673 = vunpack.c.l.bf16 %v150
    %v674 = vunpack.c.h.bf16 %v150
    %v675 = vunpack.c.l.bf16 %v151
    %v676 = vunpack.c.h.bf16 %v151
    %v677 = vunpack.c.l.bf16 %v152
    %v678 = vunpack.c.h.bf16 %v152
    %v679 = vunpack.c.l.bf16 %v153
    %v680 = vunpack.c.h.bf16 %v153
    %v681 = vunpack.c.l.bf16 %v154
    %v682 = vunpack.c.h.bf16 %v154
    %v683 = vunpack.c.l.bf16 %v155
    %v684 = vunpack.c.h.bf16 %v155
    %v685 = vunpack.c.l.bf16 %v156
    %v686 = vunpack.c.h.bf16 %v156
    %v687 = vunpack.c.l.bf16 %v157
    %v688 = vunpack.c.h.bf16 %v157
    %v689 = vunpack.c.l.bf16 %v158
    %v690 = vunpack.c.h.bf16 %v158
    %v691 = vunpack.c.l.bf16 %v159
    %v692 = vunpack.c.h.bf16 %v159
    %v693 = vunpack.c.l.bf16 %v160
    %v694 = vunpack.c.h.bf16 %v160
    %v695 = vunpack.c.l.bf16 %v161
    %v696 = vunpack.c.h.bf16 %v161
    %v697 = vunpack.c.l.bf16 %v162
    %v698 = vunpack.c.h.bf16 %v162
    %v699 = vunpack.c.l.bf16 %v163
    %v700 = vunpack.c.h.bf16 %v163
    %v701 = vunpack.c.l.bf16 %v164
    %v702 = vunpack.c.h.bf16 %v164
    %v703 = vunpack.c.l.bf16 %v165
    %v704 = vunpack.c.h.bf16 %v165
    %v705 = vunpack.c.l.bf16 %v166
    %v706 = vunpack.c.h.bf16 %v166
    %v707 = vunpack.c.l.bf16 %v167
    %v708 = vunpack.c.h.bf16 %v167
    %v709 = vunpack.c.l.bf16 %v168
    %v710 = vunpack.c.h.bf16 %v168
    %v711 = vunpack.c.l.bf16 %v169
    %v712 = vunpack.c.h.bf16 %v169
    %v713 = vunpack.c.l.bf16 %v170
    %v714 = vunpack.c.h.bf16 %v170
    %v715 = vunpack.c.l.bf16 %v171
    %v716 = vunpack.c.h.bf16 %v171
    %v717 = vunpack.c.l.bf16 %v172
    %v718 = vunpack.c.h.bf16 %v172
    %v719 = vunpack.c.l.bf16 %v173
    %v720 = vunpack.c.h.bf16 %v173
    %v721 = vunpack.c.l.bf16 %v174
    %v722 = vunpack.c.h.bf16 %v174
    %v723 = vunpack.c.l.bf16 %v175
    %v724 = vunpack.c.h.bf16 %v175
    %v725 = vunpack.c.l.bf16 %v176
    %v726 = vunpack.c.h.bf16 %v176
    %v727 = vunpack.c.l.bf16 %v177
    %v728 = vunpack.c.h.bf16 %v177
    %v729 = vunpack.c.l.bf16 %v178
    %v730 = vunpack.c.h.bf16 %v178
    %v731 = vunpack.c.l.bf16 %v179
    %v732 = vunpack.c.h.bf16 %v179
    %v733 = vunpack.c.l.bf16 %v180
    %v734 = vunpack.c.h.bf16 %v180
    %v735 = vunpack.c.l.bf16 %v181
    %v736 = vunpack.c.h.bf16 %v181
    %v737 = vunpack.c.l.bf16 %v182
    %v738 = vunpack.c.h.bf16 %v182
    %v739 = vunpack.c.l.bf16 %v183
    %v740 = vunpack.c.h.bf16 %v183
    %v741 = vunpack.c.l.bf16 %v184
    %v742 = vunpack.c.h.bf16 %v184
    %v743 = vunpack.c.l.bf16 %v185
    %v744 = vunpack.c.h.bf16 %v185
    %v745 = vunpack.c.l.bf16 %v186
    %v746 = vunpack.c.h.bf16 %v186
    %v747 = vunpack.c.l.bf16 %v187
    %v748 = vunpack.c.h.bf16 %v187
    %v749 = vunpack.c.l.bf16 %v188
    %v750 = vunpack.c.h.bf16 %v188
    %v751 = vunpack.c.l.bf16 %v189
    %v752 = vunpack.c.h.bf16 %v189
    %v753 = vunpack.c.l.bf16 %v190
    %v754 = vunpack.c.h.bf16 %v190
    %v755 = vunpack.c.l.bf16 %v191
    %v756 = vunpack.c.h.bf16 %v191
    %v757 = vunpack.c.l.bf16 %v192
    %v758 = vunpack.c.h.bf16 %v192
    %v759 = vunpack.c.l.bf16 %v193
    %v760 = vunpack.c.h.bf16 %v193
    %v761 = vunpack.c.l.bf16 %v194
    %v762 = vunpack.c.h.bf16 %v194
    %v763 = vunpack.c.l.bf16 %v195
    %v764 = vunpack.c.h.bf16 %v195
    %v765 = vunpack.c.l.bf16 %v196
    %v766 = vunpack.c.h.bf16 %v196
    %v767 = vunpack.c.l.bf16 %v197
    %v768 = vunpack.c.h.bf16 %v197
    %v769 = vunpack.c.l.bf16 %v198
    %v770 = vunpack.c.h.bf16 %v198
    %v771 = vunpack.c.l.bf16 %v199
    %v772 = vunpack.c.h.bf16 %v199
    %v773 = vunpack.c.l.bf16 %v200
    %v774 = vunpack.c.h.bf16 %v200
    %v775 = vunpack.c.l.bf16 %v201
    %v776 = vunpack.c.h.bf16 %v201
    %v777 = vunpack.c.l.bf16 %v202
    %v778 = vunpack.c.h.bf16 %v202
    %v779 = vunpack.c.l.bf16 %v203
    %v780 = vunpack.c.h.bf16 %v203
    %v781 = vunpack.c.l.bf16 %v204
    %v782 = vunpack.c.h.bf16 %v204
    %v783 = vunpack.c.l.bf16 %v205
    %v784 = vunpack.c.h.bf16 %v205
    %v785 = vunpack.c.l.bf16 %v206
    %v786 = vunpack.c.h.bf16 %v206
    %v787 = vunpack.c.l.bf16 %v207
    %v788 = vunpack.c.h.bf16 %v207
    %v789 = vunpack.c.l.bf16 %v208
    %v790 = vunpack.c.h.bf16 %v208
    %v791 = vunpack.c.l.bf16 %v209
    %v792 = vunpack.c.h.bf16 %v209
    %v793 = vunpack.c.l.bf16 %v210
    %v794 = vunpack.c.h.bf16 %v210
    %v795 = vunpack.c.l.bf16 %v211
    %v796 = vunpack.c.h.bf16 %v211
    %v797 = vunpack.c.l.bf16 %v212
    %v798 = vunpack.c.h.bf16 %v212
    %v799 = vunpack.c.l.bf16 %v213
    %v800 = vunpack.c.h.bf16 %v213
    %v801 = vunpack.c.l.bf16 %v214
    %v802 = vunpack.c.h.bf16 %v214
    %v803 = vunpack.c.l.bf16 %v215
    %v804 = vunpack.c.h.bf16 %v215
    %v805 = vunpack.c.l.bf16 %v216
    %v806 = vunpack.c.h.bf16 %v216
    %v807 = vunpack.c.l.bf16 %v217
    %v808 = vunpack.c.h.bf16 %v217
    %v809 = vunpack.c.l.bf16 %v218
    %v810 = vunpack.c.h.bf16 %v218
    %v811 = vunpack.c.l.bf16 %v219
    %v812 = vunpack.c.h.bf16 %v219
    %v813 = vunpack.c.l.bf16 %v220
    %v814 = vunpack.c.h.bf16 %v220
    %v815 = vunpack.c.l.bf16 %v221
    %v816 = vunpack.c.h.bf16 %v221
    %v817 = vunpack.c.l.bf16 %v222
    %v818 = vunpack.c.h.bf16 %v222
    %v819 = vunpack.c.l.bf16 %v223
    %v820 = vunpack.c.h.bf16 %v223
    %v821 = vunpack.c.l.bf16 %v224
    %v822 = vunpack.c.h.bf16 %v224
    %v823 = vunpack.c.l.bf16 %v225
    %v824 = vunpack.c.h.bf16 %v225
    %v825 = vunpack.c.l.bf16 %v226
    %v826 = vunpack.c.h.bf16 %v226
    %v827 = vunpack.c.l.bf16 %v227
    %v828 = vunpack.c.h.bf16 %v227
    %v829 = vunpack.c.l.bf16 %v228
    %v830 = vunpack.c.h.bf16 %v228
    %v831 = vunpack.c.l.bf16 %v229
    %v832 = vunpack.c.h.bf16 %v229
    %v833 = vunpack.c.l.bf16 %v230
    %v834 = vunpack.c.h.bf16 %v230
    %v835 = vunpack.c.l.bf16 %v231
    %v836 = vunpack.c.h.bf16 %v231
    %v837 = vunpack.c.l.bf16 %v232
    %v838 = vunpack.c.h.bf16 %v232
    %v839 = vunpack.c.l.bf16 %v233
    %v840 = vunpack.c.h.bf16 %v233
    %v841 = vunpack.c.l.bf16 %v234
    %v842 = vunpack.c.h.bf16 %v234
    %v843 = vunpack.c.l.bf16 %v235
    %v844 = vunpack.c.h.bf16 %v235
    %v845 = vunpack.c.l.bf16 %v236
    %v846 = vunpack.c.h.bf16 %v236
    %v847 = vunpack.c.l.bf16 %v237
    %v848 = vunpack.c.h.bf16 %v237
    %v849 = vunpack.c.l.bf16 %v238
    %v850 = vunpack.c.h.bf16 %v238
    %v851 = vunpack.c.l.bf16 %v239
    %v852 = vunpack.c.h.bf16 %v239
    %v853 = vunpack.c.l.bf16 %v240
    %v854 = vunpack.c.h.bf16 %v240
    %v855 = vunpack.c.l.bf16 %v241
    %v856 = vunpack.c.h.bf16 %v241
    %v857 = vunpack.c.l.bf16 %v242
    %v858 = vunpack.c.h.bf16 %v242
    %v859 = vunpack.c.l.bf16 %v243
    %v860 = vunpack.c.h.bf16 %v243
    %v861 = vunpack.c.l.bf16 %v244
    %v862 = vunpack.c.h.bf16 %v244
    %v863 = vunpack.c.l.bf16 %v245
    %v864 = vunpack.c.h.bf16 %v245
    %v865 = vunpack.c.l.bf16 %v246
    %v866 = vunpack.c.h.bf16 %v246
    %v867 = vunpack.c.l.bf16 %v247
    %v868 = vunpack.c.h.bf16 %v247
    %v869 = vunpack.c.l.bf16 %v248
    %v870 = vunpack.c.h.bf16 %v248
    %v871 = vunpack.c.l.bf16 %v249
    %v872 = vunpack.c.h.bf16 %v249
    %v873 = vunpack.c.l.bf16 %v250
    %v874 = vunpack.c.h.bf16 %v250
    %v875 = vunpack.c.l.bf16 %v251
    %v876 = vunpack.c.h.bf16 %v251
    %v877 = vunpack.c.l.bf16 %v252
    %v878 = vunpack.c.h.bf16 %v252
    %v879 = vunpack.c.l.bf16 %v253
    %v880 = vunpack.c.h.bf16 %v253
    %v881 = vunpack.c.l.bf16 %v254
    %v882 = vunpack.c.h.bf16 %v254
    %v883 = vunpack.c.l.bf16 %v255
    %v884 = vunpack.c.h.bf16 %v255
    %v885 = vunpack.c.l.bf16 %v256
    %v886 = vunpack.c.h.bf16 %v256
    %v887 = vunpack.c.l.bf16 %v257
    %v888 = vunpack.c.h.bf16 %v257
    %v889 = vunpack.c.l.bf16 %v258
    %v890 = vunpack.c.h.bf16 %v258
    %v891 = vunpack.c.l.bf16 %v259
    %v892 = vunpack.c.h.bf16 %v259
    %v893 = vunpack.c.l.bf16 %v260
    %v894 = vunpack.c.h.bf16 %v260
    %v895 = vunpack.c.l.bf16 %v261
    %v896 = vunpack.c.h.bf16 %v261
    %v897 = vunpack.c.l.bf16 %v262
    %v898 = vunpack.c.h.bf16 %v262
    %v899 = vunpack.c.l.bf16 %v263
    %v900 = vunpack.c.h.bf16 %v263
    %v901 = vunpack.c.l.bf16 %v264
    %v902 = vunpack.c.h.bf16 %v264
    %v903 = vunpack.c.l.bf16 %v265
    %v904 = vunpack.c.h.bf16 %v265
    %v905 = vunpack.c.l.bf16 %v266
    %v906 = vunpack.c.h.bf16 %v266
    %v907 = vunpack.c.l.bf16 %v267
    %v908 = vunpack.c.h.bf16 %v267
    %v909 = vunpack.c.l.bf16 %v268
    %v910 = vunpack.c.h.bf16 %v268
    %v911 = vunpack.c.l.bf16 %v269
    %v912 = vunpack.c.h.bf16 %v269
    %v913 = vunpack.c.l.bf16 %v270
    %v914 = vunpack.c.h.bf16 %v270
    %v915 = vunpack.c.l.bf16 %v271
    %v916 = vunpack.c.h.bf16 %v271
    %v917 = vunpack.c.l.bf16 %v272
    %v918 = vunpack.c.h.bf16 %v272
    %v919 = vunpack.c.l.bf16 %v273
    %v920 = vunpack.c.h.bf16 %v273
    %v921 = vunpack.c.l.bf16 %v274
    %v922 = vunpack.c.h.bf16 %v274
    %v923 = vunpack.c.l.bf16 %v275
    %v924 = vunpack.c.h.bf16 %v275
    %v925 = vunpack.c.l.bf16 %v276
    %v926 = vunpack.c.h.bf16 %v276
    %v927 = vunpack.c.l.bf16 %v277
    %v928 = vunpack.c.h.bf16 %v277
    %v929 = vunpack.c.l.bf16 %v278
    %v930 = vunpack.c.h.bf16 %v278
    %v931 = vunpack.c.l.bf16 %v279
    %v932 = vunpack.c.h.bf16 %v279
    %v933 = vunpack.c.l.bf16 %v280
    %v934 = vunpack.c.h.bf16 %v280
    %v935 = vunpack.c.l.bf16 %v281
    %v936 = vunpack.c.h.bf16 %v281
    %v937 = vunpack.c.l.bf16 %v282
    %v938 = vunpack.c.h.bf16 %v282
    %v939 = vunpack.c.l.bf16 %v283
    %v940 = vunpack.c.h.bf16 %v283
    %v941 = vunpack.c.l.bf16 %v284
    %v942 = vunpack.c.h.bf16 %v284
    %v943 = vunpack.c.l.bf16 %v285
    %v944 = vunpack.c.h.bf16 %v285
    %v945 = vunpack.c.l.bf16 %v286
    %v946 = vunpack.c.h.bf16 %v286
    %v947 = vunpack.c.l.bf16 %v287
    %v948 = vunpack.c.h.bf16 %v287
    %v949 = vunpack.c.l.bf16 %v288
    %v950 = vunpack.c.h.bf16 %v288
    %v951 = vunpack.c.l.bf16 %v289
    %v952 = vunpack.c.h.bf16 %v289
    %v953 = vunpack.c.l.bf16 %v290
    %v954 = vunpack.c.h.bf16 %v290
    %v955 = vunpack.c.l.bf16 %v291
    %v956 = vunpack.c.h.bf16 %v291
    %v957 = vunpack.c.l.bf16 %v292
    %v958 = vunpack.c.h.bf16 %v292
    %v959 = vunpack.c.l.bf16 %v293
    %v960 = vunpack.c.h.bf16 %v293
    %v961 = vunpack.c.l.bf16 %v294
    %v962 = vunpack.c.h.bf16 %v294
    %v963 = vunpack.c.l.bf16 %v295
    %v964 = vunpack.c.h.bf16 %v295
    %v965 = vunpack.c.l.bf16 %v296
    %v966 = vunpack.c.h.bf16 %v296
    %v967 = vunpack.c.l.bf16 %v297
    %v968 = vunpack.c.h.bf16 %v297
    %v969 = vunpack.c.l.bf16 %v298
    %v970 = vunpack.c.h.bf16 %v298
    %v971 = vunpack.c.l.bf16 %v299
    %v972 = vunpack.c.h.bf16 %v299
    %v973 = vunpack.c.l.bf16 %v300
    %v974 = vunpack.c.h.bf16 %v300
    %v975 = vunpack.c.l.bf16 %v301
    %v976 = vunpack.c.h.bf16 %v301
    %v977 = vunpack.c.l.bf16 %v302
    %v978 = vunpack.c.h.bf16 %v302
    %v979 = vunpack.c.l.bf16 %v303
    %v980 = vunpack.c.h.bf16 %v303
    %v981 = vunpack.c.l.bf16 %v304
    %v982 = vunpack.c.h.bf16 %v304
    %v983 = vunpack.c.l.bf16 %v305
    %v984 = vunpack.c.h.bf16 %v305
    %v985 = vunpack.c.l.bf16 %v306
    %v986 = vunpack.c.h.bf16 %v306
    %v987 = vunpack.c.l.bf16 %v307
    %v988 = vunpack.c.h.bf16 %v307
    %v989 = vunpack.c.l.bf16 %v308
    %v990 = vunpack.c.h.bf16 %v308
    %v991 = vunpack.c.l.bf16 %v309
    %v992 = vunpack.c.h.bf16 %v309
    %v993 = vunpack.c.l.bf16 %v310
    %v994 = vunpack.c.h.bf16 %v310
    %v995 = vunpack.c.l.bf16 %v311
    %v996 = vunpack.c.h.bf16 %v311
    %v997 = vunpack.c.l.bf16 %v312
    %v998 = vunpack.c.h.bf16 %v312
    %v999 = vunpack.c.l.bf16 %v313
    %v1000 = vunpack.c.h.bf16 %v313
    %v1001 = vunpack.c.l.bf16 %v314
    %v1002 = vunpack.c.h.bf16 %v314
    %v1003 = vunpack.c.l.bf16 %v315
    %v1004 = vunpack.c.h.bf16 %v315
    %v1005 = vunpack.c.l.bf16 %v316
    %v1006 = vunpack.c.h.bf16 %v316
    %v1007 = vunpack.c.l.bf16 %v317
    %v1008 = vunpack.c.h.bf16 %v317
    %v1009 = vunpack.c.l.bf16 %v318
    %v1010 = vunpack.c.h.bf16 %v318
    %v1011 = vunpack.c.l.bf16 %v319
    %v1012 = vunpack.c.h.bf16 %v319
    %v1013 = vunpack.c.l.bf16 %v320
    %v1014 = vunpack.c.h.bf16 %v320
    %v1015 = vunpack.c.l.bf16 %v321
    %v1016 = vunpack.c.h.bf16 %v321
    %v1017 = vunpack.c.l.bf16 %v322
    %v1018 = vunpack.c.h.bf16 %v322
    %v1019 = vunpack.c.l.bf16 %v323
    %v1020 = vunpack.c.h.bf16 %v323
    %v1021 = vunpack.c.l.bf16 %v324
    %v1022 = vunpack.c.h.bf16 %v324
    %v1023 = vunpack.c.l.bf16 %v325
    %v1024 = vunpack.c.h.bf16 %v325
    %v1025 = vunpack.c.l.bf16 %v326
    %v1026 = vunpack.c.h.bf16 %v326
    %v1027 = vunpack.c.l.bf16 %v327
    %v1028 = vunpack.c.h.bf16 %v327
    %v1029 = vunpack.c.l.bf16 %v328
    %v1030 = vunpack.c.h.bf16 %v328
    %v1031 = vunpack.c.l.bf16 %v329
    %v1032 = vunpack.c.h.bf16 %v329
    %v1033 = vunpack.c.l.bf16 %v330
    %v1034 = vunpack.c.h.bf16 %v330
    %v1035 = vunpack.c.l.bf16 %v331
    %v1036 = vunpack.c.h.bf16 %v331
    %v1037 = vunpack.c.l.bf16 %v332
    %v1038 = vunpack.c.h.bf16 %v332
    %v1039 = vunpack.c.l.bf16 %v333
    %v1040 = vunpack.c.h.bf16 %v333
    %v1041 = vunpack.c.l.bf16 %v334
    %v1042 = vunpack.c.h.bf16 %v334
    %v1043 = vunpack.c.l.bf16 %v335
    %v1044 = vunpack.c.h.bf16 %v335
    %v1045 = vunpack.c.l.bf16 %v336
    %v1046 = vunpack.c.h.bf16 %v336
    %v1047 = vunpack.c.l.bf16 %v337
    %v1048 = vunpack.c.h.bf16 %v337
    %v1049 = vunpack.c.l.bf16 %v338
    %v1050 = vunpack.c.h.bf16 %v338
    %v1051 = vunpack.c.l.bf16 %v339
    %v1052 = vunpack.c.h.bf16 %v339
    %v1053 = vunpack.c.l.bf16 %v340
    %v1054 = vunpack.c.h.bf16 %v340
    %v1055 = vunpack.c.l.bf16 %v341
    %v1056 = vunpack.c.h.bf16 %v341
    %v1057 = vunpack.c.l.bf16 %v342
    %v1058 = vunpack.c.h.bf16 %v342
    %v1059 = vunpack.c.l.bf16 %v343
    %v1060 = vunpack.c.h.bf16 %v343
    %v1061 = vunpack.c.l.bf16 %v344
    %v1062 = vunpack.c.h.bf16 %v344
    %v1063 = vunpack.c.l.bf16 %v345
    %v1064 = vunpack.c.h.bf16 %v345
    %v1065 = vunpack.c.l.bf16 %v346
    %v1066 = vunpack.c.h.bf16 %v346
    %v1067 = vunpack.c.l.bf16 %v347
    %v1068 = vunpack.c.h.bf16 %v347
    %v1069 = vunpack.c.l.bf16 %v348
    %v1070 = vunpack.c.h.bf16 %v348
    %v1071 = vunpack.c.l.bf16 %v349
    %v1072 = vunpack.c.h.bf16 %v349
    %v1073 = vunpack.c.l.bf16 %v350
    %v1074 = vunpack.c.h.bf16 %v350
    %v1075 = vunpack.c.l.bf16 %v351
    %v1076 = vunpack.c.h.bf16 %v351
    %v1077 = vunpack.c.l.bf16 %v352
    %v1078 = vunpack.c.h.bf16 %v352
    %v1079 = vunpack.c.l.bf16 %v353
    %v1080 = vunpack.c.h.bf16 %v353
    %v1081 = vunpack.c.l.bf16 %v354
    %v1082 = vunpack.c.h.bf16 %v354
    %v1083 = vunpack.c.l.bf16 %v355
    %v1084 = vunpack.c.h.bf16 %v355
    %v1085 = vunpack.c.l.bf16 %v356
    %v1086 = vunpack.c.h.bf16 %v356
    %v1087 = vunpack.c.l.bf16 %v357
    %v1088 = vunpack.c.h.bf16 %v357
    %v1089 = vunpack.c.l.bf16 %v358
    %v1090 = vunpack.c.h.bf16 %v358
    %v1091 = vunpack.c.l.bf16 %v359
    %v1092 = vunpack.c.h.bf16 %v359
    %v1093 = vunpack.c.l.bf16 %v360
    %v1094 = vunpack.c.h.bf16 %v360
    %v1095 = vunpack.c.l.bf16 %v361
    %v1096 = vunpack.c.h.bf16 %v361
    %v1097 = vunpack.c.l.bf16 %v362
    %v1098 = vunpack.c.h.bf16 %v362
    %v1099 = vunpack.c.l.bf16 %v363
    %v1100 = vunpack.c.h.bf16 %v363
    %v1101 = vunpack.c.l.bf16 %v364
    %v1102 = vunpack.c.h.bf16 %v364
    %v1103 = vunpack.c.l.bf16 %v365
    %v1104 = vunpack.c.h.bf16 %v365
    %v1105 = vunpack.c.l.bf16 %v366
    %v1106 = vunpack.c.h.bf16 %v366
    %v1107 = vunpack.c.l.bf16 %v367
    %v1108 = vunpack.c.h.bf16 %v367
    %v1109 = vunpack.c.l.bf16 %v368
    %v1110 = vunpack.c.h.bf16 %v368
    %v1111 = vunpack.c.l.bf16 %v369
    %v1112 = vunpack.c.h.bf16 %v369
    %v1113 = vunpack.c.l.bf16 %v370
    %v1114 = vunpack.c.h.bf16 %v370
    %v1115 = vunpack.c.l.bf16 %v371
    %v1116 = vunpack.c.h.bf16 %v371
    %v1117 = vunpack.c.l.bf16 %v372
    %v1118 = vunpack.c.h.bf16 %v372
    %v1119 = vunpack.c.l.bf16 %v373
    %v1120 = vunpack.c.h.bf16 %v373
    %v1121 = vunpack.c.l.bf16 %v374
    %v1122 = vunpack.c.h.bf16 %v374
    %v1123 = vunpack.c.l.bf16 %v375
    %v1124 = vunpack.c.h.bf16 %v375
    %v1125 = vunpack.c.l.bf16 %v376
    %v1126 = vunpack.c.h.bf16 %v376
    %v1127 = vunpack.c.l.bf16 %v377
    %v1128 = vunpack.c.h.bf16 %v377
    %v1129 = vunpack.c.l.bf16 %v378
    %v1130 = vunpack.c.h.bf16 %v378
    %v1131 = vunpack.c.l.bf16 %v379
    %v1132 = vunpack.c.h.bf16 %v379
    %v1133 = vunpack.c.l.bf16 %v380
    %v1134 = vunpack.c.h.bf16 %v380
    %v1135 = vunpack.c.l.bf16 %v381
    %v1136 = vunpack.c.h.bf16 %v381
    %v1137 = vunpack.c.l.bf16 %v382
    %v1138 = vunpack.c.h.bf16 %v382
    %v1139 = vunpack.c.l.bf16 %v383
    %v1140 = vunpack.c.h.bf16 %v383
    %v1141 = vunpack.c.l.bf16 %v384
    %v1142 = vunpack.c.h.bf16 %v384
    %v1143 = vunpack.c.l.bf16 %v385
    %v1144 = vunpack.c.h.bf16 %v385
    %v1145 = vunpack.c.l.bf16 %v386
    %v1146 = vunpack.c.h.bf16 %v386
    %v1147 = vunpack.c.l.bf16 %v387
    %v1148 = vunpack.c.h.bf16 %v387
    %v1149 = vunpack.c.l.bf16 %v388
    %v1150 = vunpack.c.h.bf16 %v388
    %v1151 = vunpack.c.l.bf16 %v389
    %v1152 = vunpack.c.h.bf16 %v389
    %v1153 = vunpack.c.l.bf16 %v390
    %v1154 = vunpack.c.h.bf16 %v390
    %v1155 = vunpack.c.l.bf16 %v391
    %v1156 = vunpack.c.h.bf16 %v391
    %v1157 = vunpack.c.l.bf16 %v392
    %v1158 = vunpack.c.h.bf16 %v392
    %v1159 = vunpack.c.l.bf16 %v393
    %v1160 = vunpack.c.h.bf16 %v393
    %v1161 = vunpack.c.l.bf16 %v394
    %v1162 = vunpack.c.h.bf16 %v394
    %v1163 = vunpack.c.l.bf16 %v395
    %v1164 = vunpack.c.h.bf16 %v395
    %v1165 = vunpack.c.l.bf16 %v396
    %v1166 = vunpack.c.h.bf16 %v396
    %v1167 = vunpack.c.l.bf16 %v397
    %v1168 = vunpack.c.h.bf16 %v397
    %v1169 = vunpack.c.l.bf16 %v398
    %v1170 = vunpack.c.h.bf16 %v398
    %v1171 = vunpack.c.l.bf16 %v399
    %v1172 = vunpack.c.h.bf16 %v399
    %v1173 = vunpack.c.l.bf16 %v400
    %v1174 = vunpack.c.h.bf16 %v400
    %v1175 = vunpack.c.l.bf16 %v401
    %v1176 = vunpack.c.h.bf16 %v401
    %v1177 = vunpack.c.l.bf16 %v402
    %v1178 = vunpack.c.h.bf16 %v402
    %v1179 = vunpack.c.l.bf16 %v403
    %v1180 = vunpack.c.h.bf16 %v403
    %v1181 = vunpack.c.l.bf16 %v404
    %v1182 = vunpack.c.h.bf16 %v404
    %v1183 = vunpack.c.l.bf16 %v405
    %v1184 = vunpack.c.h.bf16 %v405
    %v1185 = vunpack.c.l.bf16 %v406
    %v1186 = vunpack.c.h.bf16 %v406
    %v1187 = vunpack.c.l.bf16 %v407
    %v1188 = vunpack.c.h.bf16 %v407
    %v1189 = vunpack.c.l.bf16 %v408
    %v1190 = vunpack.c.h.bf16 %v408
    %v1191 = vunpack.c.l.bf16 %v409
    %v1192 = vunpack.c.h.bf16 %v409
    %v1193 = vunpack.c.l.bf16 %v410
    %v1194 = vunpack.c.h.bf16 %v410
    %v1195 = vunpack.c.l.bf16 %v411
    %v1196 = vunpack.c.h.bf16 %v411
    %v1197 = vunpack.c.l.bf16 %v412
    %v1198 = vunpack.c.h.bf16 %v412
    %v1199 = vunpack.c.l.bf16 %v413
    %v1200 = vunpack.c.h.bf16 %v413
    %v1201 = vunpack.c.l.bf16 %v414
    %v1202 = vunpack.c.h.bf16 %v414
    %v1203 = vunpack.c.l.bf16 %v415
    %v1204 = vunpack.c.h.bf16 %v415
    %v1205 = vunpack.c.l.bf16 %v416
    %v1206 = vunpack.c.h.bf16 %v416
    %v1207 = vunpack.c.l.bf16 %v417
    %v1208 = vunpack.c.h.bf16 %v417
    %v1209 = vunpack.c.l.bf16 %v418
    %v1210 = vunpack.c.h.bf16 %v418
    %v1211 = vunpack.c.l.bf16 %v419
    %v1212 = vunpack.c.h.bf16 %v419
    %v1213 = vunpack.c.l.bf16 %v420
    %v1214 = vunpack.c.h.bf16 %v420
    %v1215 = vunpack.c.l.bf16 %v421
    %v1216 = vunpack.c.h.bf16 %v421
    %v1217 = vunpack.c.l.bf16 %v422
    %v1218 = vunpack.c.h.bf16 %v422
    %v1219 = vunpack.c.l.bf16 %v423
    %v1220 = vunpack.c.h.bf16 %v423
    %v1221 = vunpack.c.l.bf16 %v424
    %v1222 = vunpack.c.h.bf16 %v424
    %v1223 = vunpack.c.l.bf16 %v425
    %v1224 = vunpack.c.h.bf16 %v425
    %v1225 = vunpack.c.l.bf16 %v426
    %v1226 = vunpack.c.h.bf16 %v426
    %v1227 = vunpack.c.l.bf16 %v427
    %v1228 = vunpack.c.h.bf16 %v427
    %v1229 = vunpack.c.l.bf16 %v428
    %v1230 = vunpack.c.h.bf16 %v428
    %v1231 = vunpack.c.l.bf16 %v429
    %v1232 = vunpack.c.h.bf16 %v429
    %v1233 = vunpack.c.l.bf16 %v430
    %v1234 = vunpack.c.h.bf16 %v430
    %v1235 = vunpack.c.l.bf16 %v431
    %v1236 = vunpack.c.h.bf16 %v431
    %v1237 = vunpack.c.l.bf16 %v432
    %v1238 = vunpack.c.h.bf16 %v432
    %v1239 = vunpack.c.l.bf16 %v433
    %v1240 = vunpack.c.h.bf16 %v433
    %v1241 = vunpack.c.l.bf16 %v434
    %v1242 = vunpack.c.h.bf16 %v434
    %v1243 = vunpack.c.l.bf16 %v435
    %v1244 = vunpack.c.h.bf16 %v435
    %v1245 = vunpack.c.l.bf16 %v436
    %v1246 = vunpack.c.h.bf16 %v436
    %v1247 = vunpack.c.l.bf16 %v437
    %v1248 = vunpack.c.h.bf16 %v437
    %v1249 = vunpack.c.l.bf16 %v438
    %v1250 = vunpack.c.h.bf16 %v438
    %v1251 = vunpack.c.l.bf16 %v439
    %v1252 = vunpack.c.h.bf16 %v439
    %v1253 = vunpack.c.l.bf16 %v440
    %v1254 = vunpack.c.h.bf16 %v440
    %v1255 = vunpack.c.l.bf16 %v441
    %v1256 = vunpack.c.h.bf16 %v441
    %v1257 = vunpack.c.l.bf16 %v442
    %v1258 = vunpack.c.h.bf16 %v442
    %v1259 = vunpack.c.l.bf16 %v443
    %v1260 = vunpack.c.h.bf16 %v443
    %v1261 = vunpack.c.l.bf16 %v444
    %v1262 = vunpack.c.h.bf16 %v444
    %v1263 = vunpack.c.l.bf16 %v445
    %v1264 = vunpack.c.h.bf16 %v445
    %v1265 = vunpack.c.l.bf16 %v446
    %v1266 = vunpack.c.h.bf16 %v446
    %v1267 = vunpack.c.l.bf16 %v447
    %v1268 = vunpack.c.h.bf16 %v447
    %v1269 = vunpack.c.l.bf16 %v448
    %v1270 = vunpack.c.h.bf16 %v448
    %v1271 = vunpack.c.l.bf16 %v449
    %v1272 = vunpack.c.h.bf16 %v449
    %v1273 = vunpack.c.l.bf16 %v450
    %v1274 = vunpack.c.h.bf16 %v450
    %v1275 = vunpack.c.l.bf16 %v451
    %v1276 = vunpack.c.h.bf16 %v451
    %v1277 = vunpack.c.l.bf16 %v452
    %v1278 = vunpack.c.h.bf16 %v452
    %v1279 = vunpack.c.l.bf16 %v453
    %v1280 = vunpack.c.h.bf16 %v453
    %v1281 = vunpack.c.l.bf16 %v454
    %v1282 = vunpack.c.h.bf16 %v454
    %v1283 = vunpack.c.l.bf16 %v455
    %v1284 = vunpack.c.h.bf16 %v455
    %v1285 = vunpack.c.l.bf16 %v456
    %v1286 = vunpack.c.h.bf16 %v456
    %v1287 = vunpack.c.l.bf16 %v457
    %v1288 = vunpack.c.h.bf16 %v457
    %v1289 = vunpack.c.l.bf16 %v458
    %v1290 = vunpack.c.h.bf16 %v458
    %v1291 = vunpack.c.l.bf16 %v459
    %v1292 = vunpack.c.h.bf16 %v459
    %v1293 = vunpack.c.l.bf16 %v460
    %v1294 = vunpack.c.h.bf16 %v460
    %v1295 = vunpack.c.l.bf16 %v461
    %v1296 = vunpack.c.h.bf16 %v461
    %v1297 = vunpack.c.l.bf16 %v462
    %v1298 = vunpack.c.h.bf16 %v462
    %v1299 = vunpack.c.l.bf16 %v463
    %v1300 = vunpack.c.h.bf16 %v463
    %v1301 = vunpack.c.l.bf16 %v464
    %v1302 = vunpack.c.h.bf16 %v464
    %v1303 = vunpack.c.l.bf16 %v465
    %v1304 = vunpack.c.h.bf16 %v465
    %v1305 = vunpack.c.l.bf16 %v466
    %v1306 = vunpack.c.h.bf16 %v466
    %v1307 = vunpack.c.l.bf16 %v467
    %v1308 = vunpack.c.h.bf16 %v467
    %v1309 = vunpack.c.l.bf16 %v468
    %v1310 = vunpack.c.h.bf16 %v468
    %v1311 = vunpack.c.l.bf16 %v469
    %v1312 = vunpack.c.h.bf16 %v469
    %v1313 = vunpack.c.l.bf16 %v470
    %v1314 = vunpack.c.h.bf16 %v470
    %v1315 = vunpack.c.l.bf16 %v471
    %v1316 = vunpack.c.h.bf16 %v471
    %v1317 = vunpack.c.l.bf16 %v472
    %v1318 = vunpack.c.h.bf16 %v472
    %v1319 = vunpack.c.l.bf16 %v473
    %v1320 = vunpack.c.h.bf16 %v473
    %v1321 = vunpack.c.l.bf16 %v474
    %v1322 = vunpack.c.h.bf16 %v474
    %v1323 = vunpack.c.l.bf16 %v475
    %v1324 = vunpack.c.h.bf16 %v475
    %v1325 = vunpack.c.l.bf16 %v476
    %v1326 = vunpack.c.h.bf16 %v476
    %v1327 = vunpack.c.l.bf16 %v477
    %v1328 = vunpack.c.h.bf16 %v477
    %v1329 = vunpack.c.l.bf16 %v478
    %v1330 = vunpack.c.h.bf16 %v478
    %v1331 = vunpack.c.l.bf16 %v479
    %v1332 = vunpack.c.h.bf16 %v479
    %v1333 = vunpack.c.l.bf16 %v480
    %v1334 = vunpack.c.h.bf16 %v480
    %v1335 = vunpack.c.l.bf16 %v481
    %v1336 = vunpack.c.h.bf16 %v481
    %v1337 = vunpack.c.l.bf16 %v482
    %v1338 = vunpack.c.h.bf16 %v482
    %v1339 = vunpack.c.l.bf16 %v483
    %v1340 = vunpack.c.h.bf16 %v483
    %v1341 = vunpack.c.l.bf16 %v484
    %v1342 = vunpack.c.h.bf16 %v484
    %v1343 = vunpack.c.l.bf16 %v485
    %v1344 = vunpack.c.h.bf16 %v485
    %v1345 = vunpack.c.l.bf16 %v486
    %v1346 = vunpack.c.h.bf16 %v486
    %v1347 = vunpack.c.l.bf16 %v487
    %v1348 = vunpack.c.h.bf16 %v487
    %v1349 = vunpack.c.l.bf16 %v488
    %v1350 = vunpack.c.h.bf16 %v488
    %v1351 = vunpack.c.l.bf16 %v489
    %v1352 = vunpack.c.h.bf16 %v489
    %v1353 = vunpack.c.l.bf16 %v490
    %v1354 = vunpack.c.h.bf16 %v490
    %v1358 = vlaneseq
    %v1359 = vshrl.u32 %v1358, 7
    %v1360 = vsub.s32 0, %v1359
    %v1361 = vrot.slane %v56, %v1360
    %v1362 = vlaneseq
    %v1363 = vshrl.u32 %v1362, 7
    %v1364 = vsub.s32 1, %v1363
    %v1365 = vrot.slane %v56, %v1364
    %v1366 = vlaneseq
    %v1367 = vshrl.u32 %v1366, 7
    %v1368 = vsub.s32 2, %v1367
    %v1369 = vrot.slane %v56, %v1368
    %v1370 = vlaneseq
    %v1371 = vshrl.u32 %v1370, 7
    %v1372 = vsub.s32 3, %v1371
    %v1373 = vrot.slane %v56, %v1372
    %v1374 = vlaneseq
    %v1375 = vshrl.u32 %v1374, 7
    %v1376 = vsub.s32 4, %v1375
    %v1377 = vrot.slane %v56, %v1376
    %v1378 = vlaneseq
    %v1379 = vshrl.u32 %v1378, 7
    %v1380 = vsub.s32 5, %v1379
    %v1381 = vrot.slane %v56, %v1380
    %v1382 = vlaneseq
    %v1383 = vshrl.u32 %v1382, 7
    %v1384 = vsub.s32 6, %v1383
    %v1385 = vrot.slane %v56, %v1384
    %v1386 = vlaneseq
    %v1387 = vshrl.u32 %v1386, 7
    %v1388 = vsub.s32 7, %v1387
    %v1389 = vrot.slane %v56, %v1388
    %v1390 = vlaneseq
    %v1391 = vshrl.u32 %v1390, 7
    %v1392 = vsub.s32 0, %v1391
    %v1393 = vrot.slane %v57, %v1392
    %v1394 = vlaneseq
    %v1395 = vshrl.u32 %v1394, 7
    %v1396 = vsub.s32 1, %v1395
    %v1397 = vrot.slane %v57, %v1396
    %v1398 = vlaneseq
    %v1399 = vshrl.u32 %v1398, 7
    %v1400 = vsub.s32 2, %v1399
    %v1401 = vrot.slane %v57, %v1400
    %v1402 = vlaneseq
    %v1403 = vshrl.u32 %v1402, 7
    %v1404 = vsub.s32 3, %v1403
    %v1405 = vrot.slane %v57, %v1404
    %v1406 = vlaneseq
    %v1407 = vshrl.u32 %v1406, 7
    %v1408 = vsub.s32 4, %v1407
    %v1409 = vrot.slane %v57, %v1408
    %v1410 = vlaneseq
    %v1411 = vshrl.u32 %v1410, 7
    %v1412 = vsub.s32 5, %v1411
    %v1413 = vrot.slane %v57, %v1412
    %v1414 = vlaneseq
    %v1415 = vshrl.u32 %v1414, 7
    %v1416 = vsub.s32 6, %v1415
    %v1417 = vrot.slane %v57, %v1416
    %v1418 = vlaneseq
    %v1419 = vshrl.u32 %v1418, 7
    %v1420 = vsub.s32 7, %v1419
    %v1421 = vrot.slane %v57, %v1420
    %v1422 = vlaneseq
    %v1423 = vshrl.u32 %v1422, 7
    %v1424 = vsub.s32 0, %v1423
    %v1425 = vrot.slane %v58, %v1424
    %v1426 = vlaneseq
    %v1427 = vshrl.u32 %v1426, 7
    %v1428 = vsub.s32 1, %v1427
    %v1429 = vrot.slane %v58, %v1428
    %v1448 = vmul.f32 %v491, %v1361
    %v1449 = vmul.f32 %v492, %v1365
    %v1450 = vmul.f32 %v493, %v1369
    %v1451 = vmul.f32 %v494, %v1373
    %v1452 = vmul.f32 %v495, %v1377
    %v1453 = vmul.f32 %v496, %v1381
    %v1454 = vmul.f32 %v497, %v1385
    %v1455 = vmul.f32 %v498, %v1389
    %v1456 = vmul.f32 %v499, %v1393
    %v1457 = vmul.f32 %v500, %v1397
    %v1458 = vmul.f32 %v501, %v1401
    %v1459 = vmul.f32 %v502, %v1405
    %v1460 = vmul.f32 %v503, %v1409
    %v1461 = vmul.f32 %v504, %v1413
    %v1462 = vmul.f32 %v505, %v1417
    %v1463 = vmul.f32 %v506, %v1421
    %v1464 = vmul.f32 %v507, %v1425
    %v1465 = vmul.f32 %v508, %v1429
    %v1466 = vmul.f32 %v509, %v1361
    %v1467 = vmul.f32 %v510, %v1365
    %v1468 = vmul.f32 %v511, %v1369
    %v1469 = vmul.f32 %v512, %v1373
    %v1470 = vmul.f32 %v513, %v1377
    %v1471 = vmul.f32 %v514, %v1381
    %v1472 = vmul.f32 %v515, %v1385
    %v1473 = vmul.f32 %v516, %v1389
    %v1474 = vmul.f32 %v517, %v1393
    %v1475 = vmul.f32 %v518, %v1397
    %v1476 = vmul.f32 %v519, %v1401
    %v1477 = vmul.f32 %v520, %v1405
    %v1478 = vmul.f32 %v521, %v1409
    %v1479 = vmul.f32 %v522, %v1413
    %v1480 = vmul.f32 %v523, %v1417
    %v1481 = vmul.f32 %v524, %v1421
    %v1482 = vmul.f32 %v525, %v1425
    %v1483 = vmul.f32 %v526, %v1429
    %v1484 = vmul.f32 %v527, %v1361
    %v1485 = vmul.f32 %v528, %v1365
    %v1486 = vmul.f32 %v529, %v1369
    %v1487 = vmul.f32 %v530, %v1373
    %v1488 = vmul.f32 %v531, %v1377
    %v1489 = vmul.f32 %v532, %v1381
    %v1490 = vmul.f32 %v533, %v1385
    %v1491 = vmul.f32 %v534, %v1389
    %v1492 = vmul.f32 %v535, %v1393
    %v1493 = vmul.f32 %v536, %v1397
    %v1494 = vmul.f32 %v537, %v1401
    %v1495 = vmul.f32 %v538, %v1405
    %v1496 = vmul.f32 %v539, %v1409
    %v1497 = vmul.f32 %v540, %v1413
    %v1498 = vmul.f32 %v541, %v1417
    %v1499 = vmul.f32 %v542, %v1421
    %v1500 = vmul.f32 %v543, %v1425
    %v1501 = vmul.f32 %v544, %v1429
    %v1502 = vmul.f32 %v545, %v1361
    %v1503 = vmul.f32 %v546, %v1365
    %v1504 = vmul.f32 %v547, %v1369
    %v1505 = vmul.f32 %v548, %v1373
    %v1506 = vmul.f32 %v549, %v1377
    %v1507 = vmul.f32 %v550, %v1381
    %v1508 = vmul.f32 %v551, %v1385
    %v1509 = vmul.f32 %v552, %v1389
    %v1510 = vmul.f32 %v553, %v1393
    %v1511 = vmul.f32 %v554, %v1397
    %v1512 = vmul.f32 %v555, %v1401
    %v1513 = vmul.f32 %v556, %v1405
    %v1514 = vmul.f32 %v557, %v1409
    %v1515 = vmul.f32 %v558, %v1413
    %v1516 = vmul.f32 %v559, %v1417
    %v1517 = vmul.f32 %v560, %v1421
    %v1518 = vmul.f32 %v561, %v1425
    %v1519 = vmul.f32 %v562, %v1429
    %v1520 = vmul.f32 %v563, %v1361
    %v1521 = vmul.f32 %v564, %v1365
    %v1522 = vmul.f32 %v565, %v1369
    %v1523 = vmul.f32 %v566, %v1373
    %v1524 = vmul.f32 %v567, %v1377
    %v1525 = vmul.f32 %v568, %v1381
    %v1526 = vmul.f32 %v569, %v1385
    %v1527 = vmul.f32 %v570, %v1389
    %v1528 = vmul.f32 %v571, %v1393
    %v1529 = vmul.f32 %v572, %v1397
    %v1530 = vmul.f32 %v573, %v1401
    %v1531 = vmul.f32 %v574, %v1405
    %v1532 = vmul.f32 %v575, %v1409
    %v1533 = vmul.f32 %v576, %v1413
    %v1534 = vmul.f32 %v577, %v1417
    %v1535 = vmul.f32 %v578, %v1421
    %v1536 = vmul.f32 %v579, %v1425
    %v1537 = vmul.f32 %v580, %v1429
    %v1538 = vmul.f32 %v581, %v1361
    %v1539 = vmul.f32 %v582, %v1365
    %v1540 = vmul.f32 %v583, %v1369
    %v1541 = vmul.f32 %v584, %v1373
    %v1542 = vmul.f32 %v585, %v1377
    %v1543 = vmul.f32 %v586, %v1381
    %v1544 = vmul.f32 %v587, %v1385
    %v1545 = vmul.f32 %v588, %v1389
    %v1546 = vmul.f32 %v589, %v1393
    %v1547 = vmul.f32 %v590, %v1397
    %v1548 = vmul.f32 %v591, %v1401
    %v1549 = vmul.f32 %v592, %v1405
    %v1550 = vmul.f32 %v593, %v1409
    %v1551 = vmul.f32 %v594, %v1413
    %v1552 = vmul.f32 %v595, %v1417
    %v1553 = vmul.f32 %v596, %v1421
    %v1554 = vmul.f32 %v597, %v1425
    %v1555 = vmul.f32 %v598, %v1429
    %v1556 = vmul.f32 %v599, %v1361
    %v1557 = vmul.f32 %v600, %v1365
    %v1558 = vmul.f32 %v601, %v1369
    %v1559 = vmul.f32 %v602, %v1373
    %v1560 = vmul.f32 %v603, %v1377
    %v1561 = vmul.f32 %v604, %v1381
    %v1562 = vmul.f32 %v605, %v1385
    %v1563 = vmul.f32 %v606, %v1389
    %v1564 = vmul.f32 %v607, %v1393
    %v1565 = vmul.f32 %v608, %v1397
    %v1566 = vmul.f32 %v609, %v1401
    %v1567 = vmul.f32 %v610, %v1405
    %v1568 = vmul.f32 %v611, %v1409
    %v1569 = vmul.f32 %v612, %v1413
    %v1570 = vmul.f32 %v613, %v1417
    %v1571 = vmul.f32 %v614, %v1421
    %v1572 = vmul.f32 %v615, %v1425
    %v1573 = vmul.f32 %v616, %v1429
    %v1574 = vmul.f32 %v617, %v1361
    %v1575 = vmul.f32 %v618, %v1365
    %v1576 = vmul.f32 %v619, %v1369
    %v1577 = vmul.f32 %v620, %v1373
    %v1578 = vmul.f32 %v621, %v1377
    %v1579 = vmul.f32 %v622, %v1381
    %v1580 = vmul.f32 %v623, %v1385
    %v1581 = vmul.f32 %v624, %v1389
    %v1582 = vmul.f32 %v625, %v1393
    %v1583 = vmul.f32 %v626, %v1397
    %v1584 = vmul.f32 %v627, %v1401
    %v1585 = vmul.f32 %v628, %v1405
    %v1586 = vmul.f32 %v629, %v1409
    %v1587 = vmul.f32 %v630, %v1413
    %v1588 = vmul.f32 %v631, %v1417
    %v1589 = vmul.f32 %v632, %v1421
    %v1590 = vmul.f32 %v633, %v1425
    %v1591 = vmul.f32 %v634, %v1429
    %v1592 = vmul.f32 %v635, %v1361
    %v1593 = vmul.f32 %v636, %v1365
    %v1594 = vmul.f32 %v637, %v1369
    %v1595 = vmul.f32 %v638, %v1373
    %v1596 = vmul.f32 %v639, %v1377
    %v1597 = vmul.f32 %v640, %v1381
    %v1598 = vmul.f32 %v641, %v1385
    %v1599 = vmul.f32 %v642, %v1389
    %v1600 = vmul.f32 %v643, %v1393
    %v1601 = vmul.f32 %v644, %v1397
    %v1602 = vmul.f32 %v645, %v1401
    %v1603 = vmul.f32 %v646, %v1405
    %v1604 = vmul.f32 %v647, %v1409
    %v1605 = vmul.f32 %v648, %v1413
    %v1606 = vmul.f32 %v649, %v1417
    %v1607 = vmul.f32 %v650, %v1421
    %v1608 = vmul.f32 %v651, %v1425
    %v1609 = vmul.f32 %v652, %v1429
    %v1610 = vmul.f32 %v653, %v1361
    %v1611 = vmul.f32 %v654, %v1365
    %v1612 = vmul.f32 %v655, %v1369
    %v1613 = vmul.f32 %v656, %v1373
    %v1614 = vmul.f32 %v657, %v1377
    %v1615 = vmul.f32 %v658, %v1381
    %v1616 = vmul.f32 %v659, %v1385
    %v1617 = vmul.f32 %v660, %v1389
    %v1618 = vmul.f32 %v661, %v1393
    %v1619 = vmul.f32 %v662, %v1397
    %v1620 = vmul.f32 %v663, %v1401
    %v1621 = vmul.f32 %v664, %v1405
    %v1622 = vmul.f32 %v665, %v1409
    %v1623 = vmul.f32 %v666, %v1413
    %v1624 = vmul.f32 %v667, %v1417
    %v1625 = vmul.f32 %v668, %v1421
    %v1626 = vmul.f32 %v669, %v1425
    %v1627 = vmul.f32 %v670, %v1429
    %v1628 = vmul.f32 %v671, %v1361
    %v1629 = vmul.f32 %v672, %v1365
    %v1630 = vmul.f32 %v673, %v1369
    %v1631 = vmul.f32 %v674, %v1373
    %v1632 = vmul.f32 %v675, %v1377
    %v1633 = vmul.f32 %v676, %v1381
    %v1634 = vmul.f32 %v677, %v1385
    %v1635 = vmul.f32 %v678, %v1389
    %v1636 = vmul.f32 %v679, %v1393
    %v1637 = vmul.f32 %v680, %v1397
    %v1638 = vmul.f32 %v681, %v1401
    %v1639 = vmul.f32 %v682, %v1405
    %v1640 = vmul.f32 %v683, %v1409
    %v1641 = vmul.f32 %v684, %v1413
    %v1642 = vmul.f32 %v685, %v1417
    %v1643 = vmul.f32 %v686, %v1421
    %v1644 = vmul.f32 %v687, %v1425
    %v1645 = vmul.f32 %v688, %v1429
    %v1646 = vmul.f32 %v689, %v1361
    %v1647 = vmul.f32 %v690, %v1365
    %v1648 = vmul.f32 %v691, %v1369
    %v1649 = vmul.f32 %v692, %v1373
    %v1650 = vmul.f32 %v693, %v1377
    %v1651 = vmul.f32 %v694, %v1381
    %v1652 = vmul.f32 %v695, %v1385
    %v1653 = vmul.f32 %v696, %v1389
    %v1654 = vmul.f32 %v697, %v1393
    %v1655 = vmul.f32 %v698, %v1397
    %v1656 = vmul.f32 %v699, %v1401
    %v1657 = vmul.f32 %v700, %v1405
    %v1658 = vmul.f32 %v701, %v1409
    %v1659 = vmul.f32 %v702, %v1413
    %v1660 = vmul.f32 %v703, %v1417
    %v1661 = vmul.f32 %v704, %v1421
    %v1662 = vmul.f32 %v705, %v1425
    %v1663 = vmul.f32 %v706, %v1429
    %v1664 = vmul.f32 %v707, %v1361
    %v1665 = vmul.f32 %v708, %v1365
    %v1666 = vmul.f32 %v709, %v1369
    %v1667 = vmul.f32 %v710, %v1373
    %v1668 = vmul.f32 %v711, %v1377
    %v1669 = vmul.f32 %v712, %v1381
    %v1670 = vmul.f32 %v713, %v1385
    %v1671 = vmul.f32 %v714, %v1389
    %v1672 = vmul.f32 %v715, %v1393
    %v1673 = vmul.f32 %v716, %v1397
    %v1674 = vmul.f32 %v717, %v1401
    %v1675 = vmul.f32 %v718, %v1405
    %v1676 = vmul.f32 %v719, %v1409
    %v1677 = vmul.f32 %v720, %v1413
    %v1678 = vmul.f32 %v721, %v1417
    %v1679 = vmul.f32 %v722, %v1421
    %v1680 = vmul.f32 %v723, %v1425
    %v1681 = vmul.f32 %v724, %v1429
    %v1682 = vmul.f32 %v725, %v1361
    %v1683 = vmul.f32 %v726, %v1365
    %v1684 = vmul.f32 %v727, %v1369
    %v1685 = vmul.f32 %v728, %v1373
    %v1686 = vmul.f32 %v729, %v1377
    %v1687 = vmul.f32 %v730, %v1381
    %v1688 = vmul.f32 %v731, %v1385
    %v1689 = vmul.f32 %v732, %v1389
    %v1690 = vmul.f32 %v733, %v1393
    %v1691 = vmul.f32 %v734, %v1397
    %v1692 = vmul.f32 %v735, %v1401
    %v1693 = vmul.f32 %v736, %v1405
    %v1694 = vmul.f32 %v737, %v1409
    %v1695 = vmul.f32 %v738, %v1413
    %v1696 = vmul.f32 %v739, %v1417
    %v1697 = vmul.f32 %v740, %v1421
    %v1698 = vmul.f32 %v741, %v1425
    %v1699 = vmul.f32 %v742, %v1429
    %v1700 = vmul.f32 %v743, %v1361
    %v1701 = vmul.f32 %v744, %v1365
    %v1702 = vmul.f32 %v745, %v1369
    %v1703 = vmul.f32 %v746, %v1373
    %v1704 = vmul.f32 %v747, %v1377
    %v1705 = vmul.f32 %v748, %v1381
    %v1706 = vmul.f32 %v749, %v1385
    %v1707 = vmul.f32 %v750, %v1389
    %v1708 = vmul.f32 %v751, %v1393
    %v1709 = vmul.f32 %v752, %v1397
    %v1710 = vmul.f32 %v753, %v1401
    %v1711 = vmul.f32 %v754, %v1405
    %v1712 = vmul.f32 %v755, %v1409
    %v1713 = vmul.f32 %v756, %v1413
    %v1714 = vmul.f32 %v757, %v1417
    %v1715 = vmul.f32 %v758, %v1421
    %v1716 = vmul.f32 %v759, %v1425
    %v1717 = vmul.f32 %v760, %v1429
    %v1718 = vmul.f32 %v761, %v1361
    %v1719 = vmul.f32 %v762, %v1365
    %v1720 = vmul.f32 %v763, %v1369
    %v1721 = vmul.f32 %v764, %v1373
    %v1722 = vmul.f32 %v765, %v1377
    %v1723 = vmul.f32 %v766, %v1381
    %v1724 = vmul.f32 %v767, %v1385
    %v1725 = vmul.f32 %v768, %v1389
    %v1726 = vmul.f32 %v769, %v1393
    %v1727 = vmul.f32 %v770, %v1397
    %v1728 = vmul.f32 %v771, %v1401
    %v1729 = vmul.f32 %v772, %v1405
    %v1730 = vmul.f32 %v773, %v1409
    %v1731 = vmul.f32 %v774, %v1413
    %v1732 = vmul.f32 %v775, %v1417
    %v1733 = vmul.f32 %v776, %v1421
    %v1734 = vmul.f32 %v777, %v1425
    %v1735 = vmul.f32 %v778, %v1429
    %v1736 = vmul.f32 %v779, %v1361
    %v1737 = vmul.f32 %v780, %v1365
    %v1738 = vmul.f32 %v781, %v1369
    %v1739 = vmul.f32 %v782, %v1373
    %v1740 = vmul.f32 %v783, %v1377
    %v1741 = vmul.f32 %v784, %v1381
    %v1742 = vmul.f32 %v785, %v1385
    %v1743 = vmul.f32 %v786, %v1389
    %v1744 = vmul.f32 %v787, %v1393
    %v1745 = vmul.f32 %v788, %v1397
    %v1746 = vmul.f32 %v789, %v1401
    %v1747 = vmul.f32 %v790, %v1405
    %v1748 = vmul.f32 %v791, %v1409
    %v1749 = vmul.f32 %v792, %v1413
    %v1750 = vmul.f32 %v793, %v1417
    %v1751 = vmul.f32 %v794, %v1421
    %v1752 = vmul.f32 %v795, %v1425
    %v1753 = vmul.f32 %v796, %v1429
    %v1754 = vmul.f32 %v797, %v1361
    %v1755 = vmul.f32 %v798, %v1365
    %v1756 = vmul.f32 %v799, %v1369
    %v1757 = vmul.f32 %v800, %v1373
    %v1758 = vmul.f32 %v801, %v1377
    %v1759 = vmul.f32 %v802, %v1381
    %v1760 = vmul.f32 %v803, %v1385
    %v1761 = vmul.f32 %v804, %v1389
    %v1762 = vmul.f32 %v805, %v1393
    %v1763 = vmul.f32 %v806, %v1397
    %v1764 = vmul.f32 %v807, %v1401
    %v1765 = vmul.f32 %v808, %v1405
    %v1766 = vmul.f32 %v809, %v1409
    %v1767 = vmul.f32 %v810, %v1413
    %v1768 = vmul.f32 %v811, %v1417
    %v1769 = vmul.f32 %v812, %v1421
    %v1770 = vmul.f32 %v813, %v1425
    %v1771 = vmul.f32 %v814, %v1429
    %v1772 = vmul.f32 %v815, %v1361
    %v1773 = vmul.f32 %v816, %v1365
    %v1774 = vmul.f32 %v817, %v1369
    %v1775 = vmul.f32 %v818, %v1373
    %v1776 = vmul.f32 %v819, %v1377
    %v1777 = vmul.f32 %v820, %v1381
    %v1778 = vmul.f32 %v821, %v1385
    %v1779 = vmul.f32 %v822, %v1389
    %v1780 = vmul.f32 %v823, %v1393
    %v1781 = vmul.f32 %v824, %v1397
    %v1782 = vmul.f32 %v825, %v1401
    %v1783 = vmul.f32 %v826, %v1405
    %v1784 = vmul.f32 %v827, %v1409
    %v1785 = vmul.f32 %v828, %v1413
    %v1786 = vmul.f32 %v829, %v1417
    %v1787 = vmul.f32 %v830, %v1421
    %v1788 = vmul.f32 %v831, %v1425
    %v1789 = vmul.f32 %v832, %v1429
    %v1790 = vmul.f32 %v833, %v1361
    %v1791 = vmul.f32 %v834, %v1365
    %v1792 = vmul.f32 %v835, %v1369
    %v1793 = vmul.f32 %v836, %v1373
    %v1794 = vmul.f32 %v837, %v1377
    %v1795 = vmul.f32 %v838, %v1381
    %v1796 = vmul.f32 %v839, %v1385
    %v1797 = vmul.f32 %v840, %v1389
    %v1798 = vmul.f32 %v841, %v1393
    %v1799 = vmul.f32 %v842, %v1397
    %v1800 = vmul.f32 %v843, %v1401
    %v1801 = vmul.f32 %v844, %v1405
    %v1802 = vmul.f32 %v845, %v1409
    %v1803 = vmul.f32 %v846, %v1413
    %v1804 = vmul.f32 %v847, %v1417
    %v1805 = vmul.f32 %v848, %v1421
    %v1806 = vmul.f32 %v849, %v1425
    %v1807 = vmul.f32 %v850, %v1429
    %v1808 = vmul.f32 %v851, %v1361
    %v1809 = vmul.f32 %v852, %v1365
    %v1810 = vmul.f32 %v853, %v1369
    %v1811 = vmul.f32 %v854, %v1373
    %v1812 = vmul.f32 %v855, %v1377
    %v1813 = vmul.f32 %v856, %v1381
    %v1814 = vmul.f32 %v857, %v1385
    %v1815 = vmul.f32 %v858, %v1389
    %v1816 = vmul.f32 %v859, %v1393
    %v1817 = vmul.f32 %v860, %v1397
    %v1818 = vmul.f32 %v861, %v1401
    %v1819 = vmul.f32 %v862, %v1405
    %v1820 = vmul.f32 %v863, %v1409
    %v1821 = vmul.f32 %v864, %v1413
    %v1822 = vmul.f32 %v865, %v1417
    %v1823 = vmul.f32 %v866, %v1421
    %v1824 = vmul.f32 %v867, %v1425
    %v1825 = vmul.f32 %v868, %v1429
    %v1826 = vmul.f32 %v869, %v1361
    %v1827 = vmul.f32 %v870, %v1365
    %v1828 = vmul.f32 %v871, %v1369
    %v1829 = vmul.f32 %v872, %v1373
    %v1830 = vmul.f32 %v873, %v1377
    %v1831 = vmul.f32 %v874, %v1381
    %v1832 = vmul.f32 %v875, %v1385
    %v1833 = vmul.f32 %v876, %v1389
    %v1834 = vmul.f32 %v877, %v1393
    %v1835 = vmul.f32 %v878, %v1397
    %v1836 = vmul.f32 %v879, %v1401
    %v1837 = vmul.f32 %v880, %v1405
    %v1838 = vmul.f32 %v881, %v1409
    %v1839 = vmul.f32 %v882, %v1413
    %v1840 = vmul.f32 %v883, %v1417
    %v1841 = vmul.f32 %v884, %v1421
    %v1842 = vmul.f32 %v885, %v1425
    %v1843 = vmul.f32 %v886, %v1429
    %v1844 = vmul.f32 %v887, %v1361
    %v1845 = vmul.f32 %v888, %v1365
    %v1846 = vmul.f32 %v889, %v1369
    %v1847 = vmul.f32 %v890, %v1373
    %v1848 = vmul.f32 %v891, %v1377
    %v1849 = vmul.f32 %v892, %v1381
    %v1850 = vmul.f32 %v893, %v1385
    %v1851 = vmul.f32 %v894, %v1389
    %v1852 = vmul.f32 %v895, %v1393
    %v1853 = vmul.f32 %v896, %v1397
    %v1854 = vmul.f32 %v897, %v1401
    %v1855 = vmul.f32 %v898, %v1405
    %v1856 = vmul.f32 %v899, %v1409
    %v1857 = vmul.f32 %v900, %v1413
    %v1858 = vmul.f32 %v901, %v1417
    %v1859 = vmul.f32 %v902, %v1421
    %v1860 = vmul.f32 %v903, %v1425
    %v1861 = vmul.f32 %v904, %v1429
    %v1862 = vmul.f32 %v905, %v1361
    %v1863 = vmul.f32 %v906, %v1365
    %v1864 = vmul.f32 %v907, %v1369
    %v1865 = vmul.f32 %v908, %v1373
    %v1866 = vmul.f32 %v909, %v1377
    %v1867 = vmul.f32 %v910, %v1381
    %v1868 = vmul.f32 %v911, %v1385
    %v1869 = vmul.f32 %v912, %v1389
    %v1870 = vmul.f32 %v913, %v1393
    %v1871 = vmul.f32 %v914, %v1397
    %v1872 = vmul.f32 %v915, %v1401
    %v1873 = vmul.f32 %v916, %v1405
    %v1874 = vmul.f32 %v917, %v1409
    %v1875 = vmul.f32 %v918, %v1413
    %v1876 = vmul.f32 %v919, %v1417
    %v1877 = vmul.f32 %v920, %v1421
    %v1878 = vmul.f32 %v921, %v1425
    %v1879 = vmul.f32 %v922, %v1429
    %v1880 = vmul.f32 %v923, %v1361
    %v1881 = vmul.f32 %v924, %v1365
    %v1882 = vmul.f32 %v925, %v1369
    %v1883 = vmul.f32 %v926, %v1373
    %v1884 = vmul.f32 %v927, %v1377
    %v1885 = vmul.f32 %v928, %v1381
    %v1886 = vmul.f32 %v929, %v1385
    %v1887 = vmul.f32 %v930, %v1389
    %v1888 = vmul.f32 %v931, %v1393
    %v1889 = vmul.f32 %v932, %v1397
    %v1890 = vmul.f32 %v933, %v1401
    %v1891 = vmul.f32 %v934, %v1405
    %v1892 = vmul.f32 %v935, %v1409
    %v1893 = vmul.f32 %v936, %v1413
    %v1894 = vmul.f32 %v937, %v1417
    %v1895 = vmul.f32 %v938, %v1421
    %v1896 = vmul.f32 %v939, %v1425
    %v1897 = vmul.f32 %v940, %v1429
    %v1898 = vmul.f32 %v941, %v1361
    %v1899 = vmul.f32 %v942, %v1365
    %v1900 = vmul.f32 %v943, %v1369
    %v1901 = vmul.f32 %v944, %v1373
    %v1902 = vmul.f32 %v945, %v1377
    %v1903 = vmul.f32 %v946, %v1381
    %v1904 = vmul.f32 %v947, %v1385
    %v1905 = vmul.f32 %v948, %v1389
    %v1906 = vmul.f32 %v949, %v1393
    %v1907 = vmul.f32 %v950, %v1397
    %v1908 = vmul.f32 %v951, %v1401
    %v1909 = vmul.f32 %v952, %v1405
    %v1910 = vmul.f32 %v953, %v1409
    %v1911 = vmul.f32 %v954, %v1413
    %v1912 = vmul.f32 %v955, %v1417
    %v1913 = vmul.f32 %v956, %v1421
    %v1914 = vmul.f32 %v957, %v1425
    %v1915 = vmul.f32 %v958, %v1429
    %v1916 = vmul.f32 %v959, %v1361
    %v1917 = vmul.f32 %v960, %v1365
    %v1918 = vmul.f32 %v961, %v1369
    %v1919 = vmul.f32 %v962, %v1373
    %v1920 = vmul.f32 %v963, %v1377
    %v1921 = vmul.f32 %v964, %v1381
    %v1922 = vmul.f32 %v965, %v1385
    %v1923 = vmul.f32 %v966, %v1389
    %v1924 = vmul.f32 %v967, %v1393
    %v1925 = vmul.f32 %v968, %v1397
    %v1926 = vmul.f32 %v969, %v1401
    %v1927 = vmul.f32 %v970, %v1405
    %v1928 = vmul.f32 %v971, %v1409
    %v1929 = vmul.f32 %v972, %v1413
    %v1930 = vmul.f32 %v973, %v1417
    %v1931 = vmul.f32 %v974, %v1421
    %v1932 = vmul.f32 %v975, %v1425
    %v1933 = vmul.f32 %v976, %v1429
    %v1934 = vmul.f32 %v977, %v1361
    %v1935 = vmul.f32 %v978, %v1365
    %v1936 = vmul.f32 %v979, %v1369
    %v1937 = vmul.f32 %v980, %v1373
    %v1938 = vmul.f32 %v981, %v1377
    %v1939 = vmul.f32 %v982, %v1381
    %v1940 = vmul.f32 %v983, %v1385
    %v1941 = vmul.f32 %v984, %v1389
    %v1942 = vmul.f32 %v985, %v1393
    %v1943 = vmul.f32 %v986, %v1397
    %v1944 = vmul.f32 %v987, %v1401
    %v1945 = vmul.f32 %v988, %v1405
    %v1946 = vmul.f32 %v989, %v1409
    %v1947 = vmul.f32 %v990, %v1413
    %v1948 = vmul.f32 %v991, %v1417
    %v1949 = vmul.f32 %v992, %v1421
    %v1950 = vmul.f32 %v993, %v1425
    %v1951 = vmul.f32 %v994, %v1429
    %v1952 = vmul.f32 %v995, %v1361
    %v1953 = vmul.f32 %v996, %v1365
    %v1954 = vmul.f32 %v997, %v1369
    %v1955 = vmul.f32 %v998, %v1373
    %v1956 = vmul.f32 %v999, %v1377
    %v1957 = vmul.f32 %v1000, %v1381
    %v1958 = vmul.f32 %v1001, %v1385
    %v1959 = vmul.f32 %v1002, %v1389
    %v1960 = vmul.f32 %v1003, %v1393
    %v1961 = vmul.f32 %v1004, %v1397
    %v1962 = vmul.f32 %v1005, %v1401
    %v1963 = vmul.f32 %v1006, %v1405
    %v1964 = vmul.f32 %v1007, %v1409
    %v1965 = vmul.f32 %v1008, %v1413
    %v1966 = vmul.f32 %v1009, %v1417
    %v1967 = vmul.f32 %v1010, %v1421
    %v1968 = vmul.f32 %v1011, %v1425
    %v1969 = vmul.f32 %v1012, %v1429
    %v1970 = vmul.f32 %v1013, %v1361
    %v1971 = vmul.f32 %v1014, %v1365
    %v1972 = vmul.f32 %v1015, %v1369
    %v1973 = vmul.f32 %v1016, %v1373
    %v1974 = vmul.f32 %v1017, %v1377
    %v1975 = vmul.f32 %v1018, %v1381
    %v1976 = vmul.f32 %v1019, %v1385
    %v1977 = vmul.f32 %v1020, %v1389
    %v1978 = vmul.f32 %v1021, %v1393
    %v1979 = vmul.f32 %v1022, %v1397
    %v1980 = vmul.f32 %v1023, %v1401
    %v1981 = vmul.f32 %v1024, %v1405
    %v1982 = vmul.f32 %v1025, %v1409
    %v1983 = vmul.f32 %v1026, %v1413
    %v1984 = vmul.f32 %v1027, %v1417
    %v1985 = vmul.f32 %v1028, %v1421
    %v1986 = vmul.f32 %v1029, %v1425
    %v1987 = vmul.f32 %v1030, %v1429
    %v1988 = vmul.f32 %v1031, %v1361
    %v1989 = vmul.f32 %v1032, %v1365
    %v1990 = vmul.f32 %v1033, %v1369
    %v1991 = vmul.f32 %v1034, %v1373
    %v1992 = vmul.f32 %v1035, %v1377
    %v1993 = vmul.f32 %v1036, %v1381
    %v1994 = vmul.f32 %v1037, %v1385
    %v1995 = vmul.f32 %v1038, %v1389
    %v1996 = vmul.f32 %v1039, %v1393
    %v1997 = vmul.f32 %v1040, %v1397
    %v1998 = vmul.f32 %v1041, %v1401
    %v1999 = vmul.f32 %v1042, %v1405
    %v2000 = vmul.f32 %v1043, %v1409
    %v2001 = vmul.f32 %v1044, %v1413
    %v2002 = vmul.f32 %v1045, %v1417
    %v2003 = vmul.f32 %v1046, %v1421
    %v2004 = vmul.f32 %v1047, %v1425
    %v2005 = vmul.f32 %v1048, %v1429
    %v2006 = vmul.f32 %v1049, %v1361
    %v2007 = vmul.f32 %v1050, %v1365
    %v2008 = vmul.f32 %v1051, %v1369
    %v2009 = vmul.f32 %v1052, %v1373
    %v2010 = vmul.f32 %v1053, %v1377
    %v2011 = vmul.f32 %v1054, %v1381
    %v2012 = vmul.f32 %v1055, %v1385
    %v2013 = vmul.f32 %v1056, %v1389
    %v2014 = vmul.f32 %v1057, %v1393
    %v2015 = vmul.f32 %v1058, %v1397
    %v2016 = vmul.f32 %v1059, %v1401
    %v2017 = vmul.f32 %v1060, %v1405
    %v2018 = vmul.f32 %v1061, %v1409
    %v2019 = vmul.f32 %v1062, %v1413
    %v2020 = vmul.f32 %v1063, %v1417
    %v2021 = vmul.f32 %v1064, %v1421
    %v2022 = vmul.f32 %v1065, %v1425
    %v2023 = vmul.f32 %v1066, %v1429
    %v2024 = vmul.f32 %v1067, %v1361
    %v2025 = vmul.f32 %v1068, %v1365
    %v2026 = vmul.f32 %v1069, %v1369
    %v2027 = vmul.f32 %v1070, %v1373
    %v2028 = vmul.f32 %v1071, %v1377
    %v2029 = vmul.f32 %v1072, %v1381
    %v2030 = vmul.f32 %v1073, %v1385
    %v2031 = vmul.f32 %v1074, %v1389
    %v2032 = vmul.f32 %v1075, %v1393
    %v2033 = vmul.f32 %v1076, %v1397
    %v2034 = vmul.f32 %v1077, %v1401
    %v2035 = vmul.f32 %v1078, %v1405
    %v2036 = vmul.f32 %v1079, %v1409
    %v2037 = vmul.f32 %v1080, %v1413
    %v2038 = vmul.f32 %v1081, %v1417
    %v2039 = vmul.f32 %v1082, %v1421
    %v2040 = vmul.f32 %v1083, %v1425
    %v2041 = vmul.f32 %v1084, %v1429
    %v2042 = vmul.f32 %v1085, %v1361
    %v2043 = vmul.f32 %v1086, %v1365
    %v2044 = vmul.f32 %v1087, %v1369
    %v2045 = vmul.f32 %v1088, %v1373
    %v2046 = vmul.f32 %v1089, %v1377
    %v2047 = vmul.f32 %v1090, %v1381
    %v2048 = vmul.f32 %v1091, %v1385
    %v2049 = vmul.f32 %v1092, %v1389
    %v2050 = vmul.f32 %v1093, %v1393
    %v2051 = vmul.f32 %v1094, %v1397
    %v2052 = vmul.f32 %v1095, %v1401
    %v2053 = vmul.f32 %v1096, %v1405
    %v2054 = vmul.f32 %v1097, %v1409
    %v2055 = vmul.f32 %v1098, %v1413
    %v2056 = vmul.f32 %v1099, %v1417
    %v2057 = vmul.f32 %v1100, %v1421
    %v2058 = vmul.f32 %v1101, %v1425
    %v2059 = vmul.f32 %v1102, %v1429
    %v2060 = vmul.f32 %v1103, %v1361
    %v2061 = vmul.f32 %v1104, %v1365
    %v2062 = vmul.f32 %v1105, %v1369
    %v2063 = vmul.f32 %v1106, %v1373
    %v2064 = vmul.f32 %v1107, %v1377
    %v2065 = vmul.f32 %v1108, %v1381
    %v2066 = vmul.f32 %v1109, %v1385
    %v2067 = vmul.f32 %v1110, %v1389
    %v2068 = vmul.f32 %v1111, %v1393
    %v2069 = vmul.f32 %v1112, %v1397
    %v2070 = vmul.f32 %v1113, %v1401
    %v2071 = vmul.f32 %v1114, %v1405
    %v2072 = vmul.f32 %v1115, %v1409
    %v2073 = vmul.f32 %v1116, %v1413
    %v2074 = vmul.f32 %v1117, %v1417
    %v2075 = vmul.f32 %v1118, %v1421
    %v2076 = vmul.f32 %v1119, %v1425
    %v2077 = vmul.f32 %v1120, %v1429
    %v2078 = vmul.f32 %v1121, %v1361
    %v2079 = vmul.f32 %v1122, %v1365
    %v2080 = vmul.f32 %v1123, %v1369
    %v2081 = vmul.f32 %v1124, %v1373
    %v2082 = vmul.f32 %v1125, %v1377
    %v2083 = vmul.f32 %v1126, %v1381
    %v2084 = vmul.f32 %v1127, %v1385
    %v2085 = vmul.f32 %v1128, %v1389
    %v2086 = vmul.f32 %v1129, %v1393
    %v2087 = vmul.f32 %v1130, %v1397
    %v2088 = vmul.f32 %v1131, %v1401
    %v2089 = vmul.f32 %v1132, %v1405
    %v2090 = vmul.f32 %v1133, %v1409
    %v2091 = vmul.f32 %v1134, %v1413
    %v2092 = vmul.f32 %v1135, %v1417
    %v2093 = vmul.f32 %v1136, %v1421
    %v2094 = vmul.f32 %v1137, %v1425
    %v2095 = vmul.f32 %v1138, %v1429
    %v2096 = vmul.f32 %v1139, %v1361
    %v2097 = vmul.f32 %v1140, %v1365
    %v2098 = vmul.f32 %v1141, %v1369
    %v2099 = vmul.f32 %v1142, %v1373
    %v2100 = vmul.f32 %v1143, %v1377
    %v2101 = vmul.f32 %v1144, %v1381
    %v2102 = vmul.f32 %v1145, %v1385
    %v2103 = vmul.f32 %v1146, %v1389
    %v2104 = vmul.f32 %v1147, %v1393
    %v2105 = vmul.f32 %v1148, %v1397
    %v2106 = vmul.f32 %v1149, %v1401
    %v2107 = vmul.f32 %v1150, %v1405
    %v2108 = vmul.f32 %v1151, %v1409
    %v2109 = vmul.f32 %v1152, %v1413
    %v2110 = vmul.f32 %v1153, %v1417
    %v2111 = vmul.f32 %v1154, %v1421
    %v2112 = vmul.f32 %v1155, %v1425
    %v2113 = vmul.f32 %v1156, %v1429
    %v2114 = vmul.f32 %v1157, %v1361
    %v2115 = vmul.f32 %v1158, %v1365
    %v2116 = vmul.f32 %v1159, %v1369
    %v2117 = vmul.f32 %v1160, %v1373
    %v2118 = vmul.f32 %v1161, %v1377
    %v2119 = vmul.f32 %v1162, %v1381
    %v2120 = vmul.f32 %v1163, %v1385
    %v2121 = vmul.f32 %v1164, %v1389
    %v2122 = vmul.f32 %v1165, %v1393
    %v2123 = vmul.f32 %v1166, %v1397
    %v2124 = vmul.f32 %v1167, %v1401
    %v2125 = vmul.f32 %v1168, %v1405
    %v2126 = vmul.f32 %v1169, %v1409
    %v2127 = vmul.f32 %v1170, %v1413
    %v2128 = vmul.f32 %v1171, %v1417
    %v2129 = vmul.f32 %v1172, %v1421
    %v2130 = vmul.f32 %v1173, %v1425
    %v2131 = vmul.f32 %v1174, %v1429
    %v2132 = vmul.f32 %v1175, %v1361
    %v2133 = vmul.f32 %v1176, %v1365
    %v2134 = vmul.f32 %v1177, %v1369
    %v2135 = vmul.f32 %v1178, %v1373
    %v2136 = vmul.f32 %v1179, %v1377
    %v2137 = vmul.f32 %v1180, %v1381
    %v2138 = vmul.f32 %v1181, %v1385
    %v2139 = vmul.f32 %v1182, %v1389
    %v2140 = vmul.f32 %v1183, %v1393
    %v2141 = vmul.f32 %v1184, %v1397
    %v2142 = vmul.f32 %v1185, %v1401
    %v2143 = vmul.f32 %v1186, %v1405
    %v2144 = vmul.f32 %v1187, %v1409
    %v2145 = vmul.f32 %v1188, %v1413
    %v2146 = vmul.f32 %v1189, %v1417
    %v2147 = vmul.f32 %v1190, %v1421
    %v2148 = vmul.f32 %v1191, %v1425
    %v2149 = vmul.f32 %v1192, %v1429
    %v2150 = vmul.f32 %v1193, %v1361
    %v2151 = vmul.f32 %v1194, %v1365
    %v2152 = vmul.f32 %v1195, %v1369
    %v2153 = vmul.f32 %v1196, %v1373
    %v2154 = vmul.f32 %v1197, %v1377
    %v2155 = vmul.f32 %v1198, %v1381
    %v2156 = vmul.f32 %v1199, %v1385
    %v2157 = vmul.f32 %v1200, %v1389
    %v2158 = vmul.f32 %v1201, %v1393
    %v2159 = vmul.f32 %v1202, %v1397
    %v2160 = vmul.f32 %v1203, %v1401
    %v2161 = vmul.f32 %v1204, %v1405
    %v2162 = vmul.f32 %v1205, %v1409
    %v2163 = vmul.f32 %v1206, %v1413
    %v2164 = vmul.f32 %v1207, %v1417
    %v2165 = vmul.f32 %v1208, %v1421
    %v2166 = vmul.f32 %v1209, %v1425
    %v2167 = vmul.f32 %v1210, %v1429
    %v2168 = vmul.f32 %v1211, %v1361
    %v2169 = vmul.f32 %v1212, %v1365
    %v2170 = vmul.f32 %v1213, %v1369
    %v2171 = vmul.f32 %v1214, %v1373
    %v2172 = vmul.f32 %v1215, %v1377
    %v2173 = vmul.f32 %v1216, %v1381
    %v2174 = vmul.f32 %v1217, %v1385
    %v2175 = vmul.f32 %v1218, %v1389
    %v2176 = vmul.f32 %v1219, %v1393
    %v2177 = vmul.f32 %v1220, %v1397
    %v2178 = vmul.f32 %v1221, %v1401
    %v2179 = vmul.f32 %v1222, %v1405
    %v2180 = vmul.f32 %v1223, %v1409
    %v2181 = vmul.f32 %v1224, %v1413
    %v2182 = vmul.f32 %v1225, %v1417
    %v2183 = vmul.f32 %v1226, %v1421
    %v2184 = vmul.f32 %v1227, %v1425
    %v2185 = vmul.f32 %v1228, %v1429
    %v2186 = vmul.f32 %v1229, %v1361
    %v2187 = vmul.f32 %v1230, %v1365
    %v2188 = vmul.f32 %v1231, %v1369
    %v2189 = vmul.f32 %v1232, %v1373
    %v2190 = vmul.f32 %v1233, %v1377
    %v2191 = vmul.f32 %v1234, %v1381
    %v2192 = vmul.f32 %v1235, %v1385
    %v2193 = vmul.f32 %v1236, %v1389
    %v2194 = vmul.f32 %v1237, %v1393
    %v2195 = vmul.f32 %v1238, %v1397
    %v2196 = vmul.f32 %v1239, %v1401
    %v2197 = vmul.f32 %v1240, %v1405
    %v2198 = vmul.f32 %v1241, %v1409
    %v2199 = vmul.f32 %v1242, %v1413
    %v2200 = vmul.f32 %v1243, %v1417
    %v2201 = vmul.f32 %v1244, %v1421
    %v2202 = vmul.f32 %v1245, %v1425
    %v2203 = vmul.f32 %v1246, %v1429
    %v2204 = vmul.f32 %v1247, %v1361
    %v2205 = vmul.f32 %v1248, %v1365
    %v2206 = vmul.f32 %v1249, %v1369
    %v2207 = vmul.f32 %v1250, %v1373
    %v2208 = vmul.f32 %v1251, %v1377
    %v2209 = vmul.f32 %v1252, %v1381
    %v2210 = vmul.f32 %v1253, %v1385
    %v2211 = vmul.f32 %v1254, %v1389
    %v2212 = vmul.f32 %v1255, %v1393
    %v2213 = vmul.f32 %v1256, %v1397
    %v2214 = vmul.f32 %v1257, %v1401
    %v2215 = vmul.f32 %v1258, %v1405
    %v2216 = vmul.f32 %v1259, %v1409
    %v2217 = vmul.f32 %v1260, %v1413
    %v2218 = vmul.f32 %v1261, %v1417
    %v2219 = vmul.f32 %v1262, %v1421
    %v2220 = vmul.f32 %v1263, %v1425
    %v2221 = vmul.f32 %v1264, %v1429
    %v2222 = vmul.f32 %v1265, %v1361
    %v2223 = vmul.f32 %v1266, %v1365
    %v2224 = vmul.f32 %v1267, %v1369
    %v2225 = vmul.f32 %v1268, %v1373
    %v2226 = vmul.f32 %v1269, %v1377
    %v2227 = vmul.f32 %v1270, %v1381
    %v2228 = vmul.f32 %v1271, %v1385
    %v2229 = vmul.f32 %v1272, %v1389
    %v2230 = vmul.f32 %v1273, %v1393
    %v2231 = vmul.f32 %v1274, %v1397
    %v2232 = vmul.f32 %v1275, %v1401
    %v2233 = vmul.f32 %v1276, %v1405
    %v2234 = vmul.f32 %v1277, %v1409
    %v2235 = vmul.f32 %v1278, %v1413
    %v2236 = vmul.f32 %v1279, %v1417
    %v2237 = vmul.f32 %v1280, %v1421
    %v2238 = vmul.f32 %v1281, %v1425
    %v2239 = vmul.f32 %v1282, %v1429
    %v2240 = vmul.f32 %v1283, %v1361
    %v2241 = vmul.f32 %v1284, %v1365
    %v2242 = vmul.f32 %v1285, %v1369
    %v2243 = vmul.f32 %v1286, %v1373
    %v2244 = vmul.f32 %v1287, %v1377
    %v2245 = vmul.f32 %v1288, %v1381
    %v2246 = vmul.f32 %v1289, %v1385
    %v2247 = vmul.f32 %v1290, %v1389
    %v2248 = vmul.f32 %v1291, %v1393
    %v2249 = vmul.f32 %v1292, %v1397
    %v2250 = vmul.f32 %v1293, %v1401
    %v2251 = vmul.f32 %v1294, %v1405
    %v2252 = vmul.f32 %v1295, %v1409
    %v2253 = vmul.f32 %v1296, %v1413
    %v2254 = vmul.f32 %v1297, %v1417
    %v2255 = vmul.f32 %v1298, %v1421
    %v2256 = vmul.f32 %v1299, %v1425
    %v2257 = vmul.f32 %v1300, %v1429
    %v2258 = vmul.f32 %v1301, %v1361
    %v2259 = vmul.f32 %v1302, %v1365
    %v2260 = vmul.f32 %v1303, %v1369
    %v2261 = vmul.f32 %v1304, %v1373
    %v2262 = vmul.f32 %v1305, %v1377
    %v2263 = vmul.f32 %v1306, %v1381
    %v2264 = vmul.f32 %v1307, %v1385
    %v2265 = vmul.f32 %v1308, %v1389
    %v2266 = vmul.f32 %v1309, %v1393
    %v2267 = vmul.f32 %v1310, %v1397
    %v2268 = vmul.f32 %v1311, %v1401
    %v2269 = vmul.f32 %v1312, %v1405
    %v2270 = vmul.f32 %v1313, %v1409
    %v2271 = vmul.f32 %v1314, %v1413
    %v2272 = vmul.f32 %v1315, %v1417
    %v2273 = vmul.f32 %v1316, %v1421
    %v2274 = vmul.f32 %v1317, %v1425
    %v2275 = vmul.f32 %v1318, %v1429
    %v2276 = vmul.f32 %v1319, %v1361
    %v2277 = vmul.f32 %v1320, %v1365
    %v2278 = vmul.f32 %v1321, %v1369
    %v2279 = vmul.f32 %v1322, %v1373
    %v2280 = vmul.f32 %v1323, %v1377
    %v2281 = vmul.f32 %v1324, %v1381
    %v2282 = vmul.f32 %v1325, %v1385
    %v2283 = vmul.f32 %v1326, %v1389
    %v2284 = vmul.f32 %v1327, %v1393
    %v2285 = vmul.f32 %v1328, %v1397
    %v2286 = vmul.f32 %v1329, %v1401
    %v2287 = vmul.f32 %v1330, %v1405
    %v2288 = vmul.f32 %v1331, %v1409
    %v2289 = vmul.f32 %v1332, %v1413
    %v2290 = vmul.f32 %v1333, %v1417
    %v2291 = vmul.f32 %v1334, %v1421
    %v2292 = vmul.f32 %v1335, %v1425
    %v2293 = vmul.f32 %v1336, %v1429
    %v2294 = vmul.f32 %v1337, %v1361
    %v2295 = vmul.f32 %v1338, %v1365
    %v2296 = vmul.f32 %v1339, %v1369
    %v2297 = vmul.f32 %v1340, %v1373
    %v2298 = vmul.f32 %v1341, %v1377
    %v2299 = vmul.f32 %v1342, %v1381
    %v2300 = vmul.f32 %v1343, %v1385
    %v2301 = vmul.f32 %v1344, %v1389
    %v2302 = vmul.f32 %v1345, %v1393
    %v2303 = vmul.f32 %v1346, %v1397
    %v2304 = vmul.f32 %v1347, %v1401
    %v2305 = vmul.f32 %v1348, %v1405
    %v2306 = vmul.f32 %v1349, %v1409
    %v2307 = vmul.f32 %v1350, %v1413
    %v2308 = vmul.f32 %v1351, %v1417
    %v2309 = vmul.f32 %v1352, %v1421
    %v2310 = vmul.f32 %v1353, %v1425
    %v2311 = vmul.f32 %v1354, %v1429
    %v2312 = vpack.c.bf16 %v1466, %v1448
    %v2313 = vpack.c.bf16 %v1467, %v1449
    %v2314 = vpack.c.bf16 %v1468, %v1450
    %v2315 = vpack.c.bf16 %v1469, %v1451
    %v2316 = vpack.c.bf16 %v1470, %v1452
    %v2317 = vpack.c.bf16 %v1471, %v1453
    %v2318 = vpack.c.bf16 %v1472, %v1454
    %v2319 = vpack.c.bf16 %v1473, %v1455
    %v2320 = vpack.c.bf16 %v1474, %v1456
    %v2321 = vpack.c.bf16 %v1475, %v1457
    %v2322 = vpack.c.bf16 %v1476, %v1458
    %v2323 = vpack.c.bf16 %v1477, %v1459
    %v2324 = vpack.c.bf16 %v1478, %v1460
    %v2325 = vpack.c.bf16 %v1479, %v1461
    %v2326 = vpack.c.bf16 %v1480, %v1462
    %v2327 = vpack.c.bf16 %v1481, %v1463
    %v2328 = vpack.c.bf16 %v1482, %v1464
    %v2329 = vpack.c.bf16 %v1483, %v1465
    %v2330 = vpack.c.bf16 %v1502, %v1484
    %v2331 = vpack.c.bf16 %v1503, %v1485
    %v2332 = vpack.c.bf16 %v1504, %v1486
    %v2333 = vpack.c.bf16 %v1505, %v1487
    %v2334 = vpack.c.bf16 %v1506, %v1488
    %v2335 = vpack.c.bf16 %v1507, %v1489
    %v2336 = vpack.c.bf16 %v1508, %v1490
    %v2337 = vpack.c.bf16 %v1509, %v1491
    %v2338 = vpack.c.bf16 %v1510, %v1492
    %v2339 = vpack.c.bf16 %v1511, %v1493
    %v2340 = vpack.c.bf16 %v1512, %v1494
    %v2341 = vpack.c.bf16 %v1513, %v1495
    %v2342 = vpack.c.bf16 %v1514, %v1496
    %v2343 = vpack.c.bf16 %v1515, %v1497
    %v2344 = vpack.c.bf16 %v1516, %v1498
    %v2345 = vpack.c.bf16 %v1517, %v1499
    %v2346 = vpack.c.bf16 %v1518, %v1500
    %v2347 = vpack.c.bf16 %v1519, %v1501
    %v2348 = vpack.c.bf16 %v1538, %v1520
    %v2349 = vpack.c.bf16 %v1539, %v1521
    %v2350 = vpack.c.bf16 %v1540, %v1522
    %v2351 = vpack.c.bf16 %v1541, %v1523
    %v2352 = vpack.c.bf16 %v1542, %v1524
    %v2353 = vpack.c.bf16 %v1543, %v1525
    %v2354 = vpack.c.bf16 %v1544, %v1526
    %v2355 = vpack.c.bf16 %v1545, %v1527
    %v2356 = vpack.c.bf16 %v1546, %v1528
    %v2357 = vpack.c.bf16 %v1547, %v1529
    %v2358 = vpack.c.bf16 %v1548, %v1530
    %v2359 = vpack.c.bf16 %v1549, %v1531
    %v2360 = vpack.c.bf16 %v1550, %v1532
    %v2361 = vpack.c.bf16 %v1551, %v1533
    %v2362 = vpack.c.bf16 %v1552, %v1534
    %v2363 = vpack.c.bf16 %v1553, %v1535
    %v2364 = vpack.c.bf16 %v1554, %v1536
    %v2365 = vpack.c.bf16 %v1555, %v1537
    %v2366 = vpack.c.bf16 %v1574, %v1556
    %v2367 = vpack.c.bf16 %v1575, %v1557
    %v2368 = vpack.c.bf16 %v1576, %v1558
    %v2369 = vpack.c.bf16 %v1577, %v1559
    %v2370 = vpack.c.bf16 %v1578, %v1560
    %v2371 = vpack.c.bf16 %v1579, %v1561
    %v2372 = vpack.c.bf16 %v1580, %v1562
    %v2373 = vpack.c.bf16 %v1581, %v1563
    %v2374 = vpack.c.bf16 %v1582, %v1564
    %v2375 = vpack.c.bf16 %v1583, %v1565
    %v2376 = vpack.c.bf16 %v1584, %v1566
    %v2377 = vpack.c.bf16 %v1585, %v1567
    %v2378 = vpack.c.bf16 %v1586, %v1568
    %v2379 = vpack.c.bf16 %v1587, %v1569
    %v2380 = vpack.c.bf16 %v1588, %v1570
    %v2381 = vpack.c.bf16 %v1589, %v1571
    %v2382 = vpack.c.bf16 %v1590, %v1572
    %v2383 = vpack.c.bf16 %v1591, %v1573
    %v2384 = vpack.c.bf16 %v1610, %v1592
    %v2385 = vpack.c.bf16 %v1611, %v1593
    %v2386 = vpack.c.bf16 %v1612, %v1594
    %v2387 = vpack.c.bf16 %v1613, %v1595
    %v2388 = vpack.c.bf16 %v1614, %v1596
    %v2389 = vpack.c.bf16 %v1615, %v1597
    %v2390 = vpack.c.bf16 %v1616, %v1598
    %v2391 = vpack.c.bf16 %v1617, %v1599
    %v2392 = vpack.c.bf16 %v1618, %v1600
    %v2393 = vpack.c.bf16 %v1619, %v1601
    %v2394 = vpack.c.bf16 %v1620, %v1602
    %v2395 = vpack.c.bf16 %v1621, %v1603
    %v2396 = vpack.c.bf16 %v1622, %v1604
    %v2397 = vpack.c.bf16 %v1623, %v1605
    %v2398 = vpack.c.bf16 %v1624, %v1606
    %v2399 = vpack.c.bf16 %v1625, %v1607
    %v2400 = vpack.c.bf16 %v1626, %v1608
    %v2401 = vpack.c.bf16 %v1627, %v1609
    %v2402 = vpack.c.bf16 %v1646, %v1628
    %v2403 = vpack.c.bf16 %v1647, %v1629
    %v2404 = vpack.c.bf16 %v1648, %v1630
    %v2405 = vpack.c.bf16 %v1649, %v1631
    %v2406 = vpack.c.bf16 %v1650, %v1632
    %v2407 = vpack.c.bf16 %v1651, %v1633
    %v2408 = vpack.c.bf16 %v1652, %v1634
    %v2409 = vpack.c.bf16 %v1653, %v1635
    %v2410 = vpack.c.bf16 %v1654, %v1636
    %v2411 = vpack.c.bf16 %v1655, %v1637
    %v2412 = vpack.c.bf16 %v1656, %v1638
    %v2413 = vpack.c.bf16 %v1657, %v1639
    %v2414 = vpack.c.bf16 %v1658, %v1640
    %v2415 = vpack.c.bf16 %v1659, %v1641
    %v2416 = vpack.c.bf16 %v1660, %v1642
    %v2417 = vpack.c.bf16 %v1661, %v1643
    %v2418 = vpack.c.bf16 %v1662, %v1644
    %v2419 = vpack.c.bf16 %v1663, %v1645
    %v2420 = vpack.c.bf16 %v1682, %v1664
    %v2421 = vpack.c.bf16 %v1683, %v1665
    %v2422 = vpack.c.bf16 %v1684, %v1666
    %v2423 = vpack.c.bf16 %v1685, %v1667
    %v2424 = vpack.c.bf16 %v1686, %v1668
    %v2425 = vpack.c.bf16 %v1687, %v1669
    %v2426 = vpack.c.bf16 %v1688, %v1670
    %v2427 = vpack.c.bf16 %v1689, %v1671
    %v2428 = vpack.c.bf16 %v1690, %v1672
    %v2429 = vpack.c.bf16 %v1691, %v1673
    %v2430 = vpack.c.bf16 %v1692, %v1674
    %v2431 = vpack.c.bf16 %v1693, %v1675
    %v2432 = vpack.c.bf16 %v1694, %v1676
    %v2433 = vpack.c.bf16 %v1695, %v1677
    %v2434 = vpack.c.bf16 %v1696, %v1678
    %v2435 = vpack.c.bf16 %v1697, %v1679
    %v2436 = vpack.c.bf16 %v1698, %v1680
    %v2437 = vpack.c.bf16 %v1699, %v1681
    %v2438 = vpack.c.bf16 %v1718, %v1700
    %v2439 = vpack.c.bf16 %v1719, %v1701
    %v2440 = vpack.c.bf16 %v1720, %v1702
    %v2441 = vpack.c.bf16 %v1721, %v1703
    %v2442 = vpack.c.bf16 %v1722, %v1704
    %v2443 = vpack.c.bf16 %v1723, %v1705
    %v2444 = vpack.c.bf16 %v1724, %v1706
    %v2445 = vpack.c.bf16 %v1725, %v1707
    %v2446 = vpack.c.bf16 %v1726, %v1708
    %v2447 = vpack.c.bf16 %v1727, %v1709
    %v2448 = vpack.c.bf16 %v1728, %v1710
    %v2449 = vpack.c.bf16 %v1729, %v1711
    %v2450 = vpack.c.bf16 %v1730, %v1712
    %v2451 = vpack.c.bf16 %v1731, %v1713
    %v2452 = vpack.c.bf16 %v1732, %v1714
    %v2453 = vpack.c.bf16 %v1733, %v1715
    %v2454 = vpack.c.bf16 %v1734, %v1716
    %v2455 = vpack.c.bf16 %v1735, %v1717
    %v2456 = vpack.c.bf16 %v1754, %v1736
    %v2457 = vpack.c.bf16 %v1755, %v1737
    %v2458 = vpack.c.bf16 %v1756, %v1738
    %v2459 = vpack.c.bf16 %v1757, %v1739
    %v2460 = vpack.c.bf16 %v1758, %v1740
    %v2461 = vpack.c.bf16 %v1759, %v1741
    %v2462 = vpack.c.bf16 %v1760, %v1742
    %v2463 = vpack.c.bf16 %v1761, %v1743
    %v2464 = vpack.c.bf16 %v1762, %v1744
    %v2465 = vpack.c.bf16 %v1763, %v1745
    %v2466 = vpack.c.bf16 %v1764, %v1746
    %v2467 = vpack.c.bf16 %v1765, %v1747
    %v2468 = vpack.c.bf16 %v1766, %v1748
    %v2469 = vpack.c.bf16 %v1767, %v1749
    %v2470 = vpack.c.bf16 %v1768, %v1750
    %v2471 = vpack.c.bf16 %v1769, %v1751
    %v2472 = vpack.c.bf16 %v1770, %v1752
    %v2473 = vpack.c.bf16 %v1771, %v1753
    %v2474 = vpack.c.bf16 %v1790, %v1772
    %v2475 = vpack.c.bf16 %v1791, %v1773
    %v2476 = vpack.c.bf16 %v1792, %v1774
    %v2477 = vpack.c.bf16 %v1793, %v1775
    %v2478 = vpack.c.bf16 %v1794, %v1776
    %v2479 = vpack.c.bf16 %v1795, %v1777
    %v2480 = vpack.c.bf16 %v1796, %v1778
    %v2481 = vpack.c.bf16 %v1797, %v1779
    %v2482 = vpack.c.bf16 %v1798, %v1780
    %v2483 = vpack.c.bf16 %v1799, %v1781
    %v2484 = vpack.c.bf16 %v1800, %v1782
    %v2485 = vpack.c.bf16 %v1801, %v1783
    %v2486 = vpack.c.bf16 %v1802, %v1784
    %v2487 = vpack.c.bf16 %v1803, %v1785
    %v2488 = vpack.c.bf16 %v1804, %v1786
    %v2489 = vpack.c.bf16 %v1805, %v1787
    %v2490 = vpack.c.bf16 %v1806, %v1788
    %v2491 = vpack.c.bf16 %v1807, %v1789
    %v2492 = vpack.c.bf16 %v1826, %v1808
    %v2493 = vpack.c.bf16 %v1827, %v1809
    %v2494 = vpack.c.bf16 %v1828, %v1810
    %v2495 = vpack.c.bf16 %v1829, %v1811
    %v2496 = vpack.c.bf16 %v1830, %v1812
    %v2497 = vpack.c.bf16 %v1831, %v1813
    %v2498 = vpack.c.bf16 %v1832, %v1814
    %v2499 = vpack.c.bf16 %v1833, %v1815
    %v2500 = vpack.c.bf16 %v1834, %v1816
    %v2501 = vpack.c.bf16 %v1835, %v1817
    %v2502 = vpack.c.bf16 %v1836, %v1818
    %v2503 = vpack.c.bf16 %v1837, %v1819
    %v2504 = vpack.c.bf16 %v1838, %v1820
    %v2505 = vpack.c.bf16 %v1839, %v1821
    %v2506 = vpack.c.bf16 %v1840, %v1822
    %v2507 = vpack.c.bf16 %v1841, %v1823
    %v2508 = vpack.c.bf16 %v1842, %v1824
    %v2509 = vpack.c.bf16 %v1843, %v1825
    %v2510 = vpack.c.bf16 %v1862, %v1844
    %v2511 = vpack.c.bf16 %v1863, %v1845
    %v2512 = vpack.c.bf16 %v1864, %v1846
    %v2513 = vpack.c.bf16 %v1865, %v1847
    %v2514 = vpack.c.bf16 %v1866, %v1848
    %v2515 = vpack.c.bf16 %v1867, %v1849
    %v2516 = vpack.c.bf16 %v1868, %v1850
    %v2517 = vpack.c.bf16 %v1869, %v1851
    %v2518 = vpack.c.bf16 %v1870, %v1852
    %v2519 = vpack.c.bf16 %v1871, %v1853
    %v2520 = vpack.c.bf16 %v1872, %v1854
    %v2521 = vpack.c.bf16 %v1873, %v1855
    %v2522 = vpack.c.bf16 %v1874, %v1856
    %v2523 = vpack.c.bf16 %v1875, %v1857
    %v2524 = vpack.c.bf16 %v1876, %v1858
    %v2525 = vpack.c.bf16 %v1877, %v1859
    %v2526 = vpack.c.bf16 %v1878, %v1860
    %v2527 = vpack.c.bf16 %v1879, %v1861
    %v2528 = vpack.c.bf16 %v1898, %v1880
    %v2529 = vpack.c.bf16 %v1899, %v1881
    %v2530 = vpack.c.bf16 %v1900, %v1882
    %v2531 = vpack.c.bf16 %v1901, %v1883
    %v2532 = vpack.c.bf16 %v1902, %v1884
    %v2533 = vpack.c.bf16 %v1903, %v1885
    %v2534 = vpack.c.bf16 %v1904, %v1886
    %v2535 = vpack.c.bf16 %v1905, %v1887
    %v2536 = vpack.c.bf16 %v1906, %v1888
    %v2537 = vpack.c.bf16 %v1907, %v1889
    %v2538 = vpack.c.bf16 %v1908, %v1890
    %v2539 = vpack.c.bf16 %v1909, %v1891
    %v2540 = vpack.c.bf16 %v1910, %v1892
    %v2541 = vpack.c.bf16 %v1911, %v1893
    %v2542 = vpack.c.bf16 %v1912, %v1894
    %v2543 = vpack.c.bf16 %v1913, %v1895
    %v2544 = vpack.c.bf16 %v1914, %v1896
    %v2545 = vpack.c.bf16 %v1915, %v1897
    %v2546 = vpack.c.bf16 %v1934, %v1916
    %v2547 = vpack.c.bf16 %v1935, %v1917
    %v2548 = vpack.c.bf16 %v1936, %v1918
    %v2549 = vpack.c.bf16 %v1937, %v1919
    %v2550 = vpack.c.bf16 %v1938, %v1920
    %v2551 = vpack.c.bf16 %v1939, %v1921
    %v2552 = vpack.c.bf16 %v1940, %v1922
    %v2553 = vpack.c.bf16 %v1941, %v1923
    %v2554 = vpack.c.bf16 %v1942, %v1924
    %v2555 = vpack.c.bf16 %v1943, %v1925
    %v2556 = vpack.c.bf16 %v1944, %v1926
    %v2557 = vpack.c.bf16 %v1945, %v1927
    %v2558 = vpack.c.bf16 %v1946, %v1928
    %v2559 = vpack.c.bf16 %v1947, %v1929
    %v2560 = vpack.c.bf16 %v1948, %v1930
    %v2561 = vpack.c.bf16 %v1949, %v1931
    %v2562 = vpack.c.bf16 %v1950, %v1932
    %v2563 = vpack.c.bf16 %v1951, %v1933
    %v2564 = vpack.c.bf16 %v1970, %v1952
    %v2565 = vpack.c.bf16 %v1971, %v1953
    %v2566 = vpack.c.bf16 %v1972, %v1954
    %v2567 = vpack.c.bf16 %v1973, %v1955
    %v2568 = vpack.c.bf16 %v1974, %v1956
    %v2569 = vpack.c.bf16 %v1975, %v1957
    %v2570 = vpack.c.bf16 %v1976, %v1958
    %v2571 = vpack.c.bf16 %v1977, %v1959
    %v2572 = vpack.c.bf16 %v1978, %v1960
    %v2573 = vpack.c.bf16 %v1979, %v1961
    %v2574 = vpack.c.bf16 %v1980, %v1962
    %v2575 = vpack.c.bf16 %v1981, %v1963
    %v2576 = vpack.c.bf16 %v1982, %v1964
    %v2577 = vpack.c.bf16 %v1983, %v1965
    %v2578 = vpack.c.bf16 %v1984, %v1966
    %v2579 = vpack.c.bf16 %v1985, %v1967
    %v2580 = vpack.c.bf16 %v1986, %v1968
    %v2581 = vpack.c.bf16 %v1987, %v1969
    %v2582 = vpack.c.bf16 %v2006, %v1988
    %v2583 = vpack.c.bf16 %v2007, %v1989
    %v2584 = vpack.c.bf16 %v2008, %v1990
    %v2585 = vpack.c.bf16 %v2009, %v1991
    %v2586 = vpack.c.bf16 %v2010, %v1992
    %v2587 = vpack.c.bf16 %v2011, %v1993
    %v2588 = vpack.c.bf16 %v2012, %v1994
    %v2589 = vpack.c.bf16 %v2013, %v1995
    %v2590 = vpack.c.bf16 %v2014, %v1996
    %v2591 = vpack.c.bf16 %v2015, %v1997
    %v2592 = vpack.c.bf16 %v2016, %v1998
    %v2593 = vpack.c.bf16 %v2017, %v1999
    %v2594 = vpack.c.bf16 %v2018, %v2000
    %v2595 = vpack.c.bf16 %v2019, %v2001
    %v2596 = vpack.c.bf16 %v2020, %v2002
    %v2597 = vpack.c.bf16 %v2021, %v2003
    %v2598 = vpack.c.bf16 %v2022, %v2004
    %v2599 = vpack.c.bf16 %v2023, %v2005
    %v2600 = vpack.c.bf16 %v2042, %v2024
    %v2601 = vpack.c.bf16 %v2043, %v2025
    %v2602 = vpack.c.bf16 %v2044, %v2026
    %v2603 = vpack.c.bf16 %v2045, %v2027
    %v2604 = vpack.c.bf16 %v2046, %v2028
    %v2605 = vpack.c.bf16 %v2047, %v2029
    %v2606 = vpack.c.bf16 %v2048, %v2030
    %v2607 = vpack.c.bf16 %v2049, %v2031
    %v2608 = vpack.c.bf16 %v2050, %v2032
    %v2609 = vpack.c.bf16 %v2051, %v2033
    %v2610 = vpack.c.bf16 %v2052, %v2034
    %v2611 = vpack.c.bf16 %v2053, %v2035
    %v2612 = vpack.c.bf16 %v2054, %v2036
    %v2613 = vpack.c.bf16 %v2055, %v2037
    %v2614 = vpack.c.bf16 %v2056, %v2038
    %v2615 = vpack.c.bf16 %v2057, %v2039
    %v2616 = vpack.c.bf16 %v2058, %v2040
    %v2617 = vpack.c.bf16 %v2059, %v2041
    %v2618 = vpack.c.bf16 %v2078, %v2060
    %v2619 = vpack.c.bf16 %v2079, %v2061
    %v2620 = vpack.c.bf16 %v2080, %v2062
    %v2621 = vpack.c.bf16 %v2081, %v2063
    %v2622 = vpack.c.bf16 %v2082, %v2064
    %v2623 = vpack.c.bf16 %v2083, %v2065
    %v2624 = vpack.c.bf16 %v2084, %v2066
    %v2625 = vpack.c.bf16 %v2085, %v2067
    %v2626 = vpack.c.bf16 %v2086, %v2068
    %v2627 = vpack.c.bf16 %v2087, %v2069
    %v2628 = vpack.c.bf16 %v2088, %v2070
    %v2629 = vpack.c.bf16 %v2089, %v2071
    %v2630 = vpack.c.bf16 %v2090, %v2072
    %v2631 = vpack.c.bf16 %v2091, %v2073
    %v2632 = vpack.c.bf16 %v2092, %v2074
    %v2633 = vpack.c.bf16 %v2093, %v2075
    %v2634 = vpack.c.bf16 %v2094, %v2076
    %v2635 = vpack.c.bf16 %v2095, %v2077
    %v2636 = vpack.c.bf16 %v2114, %v2096
    %v2637 = vpack.c.bf16 %v2115, %v2097
    %v2638 = vpack.c.bf16 %v2116, %v2098
    %v2639 = vpack.c.bf16 %v2117, %v2099
    %v2640 = vpack.c.bf16 %v2118, %v2100
    %v2641 = vpack.c.bf16 %v2119, %v2101
    %v2642 = vpack.c.bf16 %v2120, %v2102
    %v2643 = vpack.c.bf16 %v2121, %v2103
    %v2644 = vpack.c.bf16 %v2122, %v2104
    %v2645 = vpack.c.bf16 %v2123, %v2105
    %v2646 = vpack.c.bf16 %v2124, %v2106
    %v2647 = vpack.c.bf16 %v2125, %v2107
    %v2648 = vpack.c.bf16 %v2126, %v2108
    %v2649 = vpack.c.bf16 %v2127, %v2109
    %v2650 = vpack.c.bf16 %v2128, %v2110
    %v2651 = vpack.c.bf16 %v2129, %v2111
    %v2652 = vpack.c.bf16 %v2130, %v2112
    %v2653 = vpack.c.bf16 %v2131, %v2113
    %v2654 = vpack.c.bf16 %v2150, %v2132
    %v2655 = vpack.c.bf16 %v2151, %v2133
    %v2656 = vpack.c.bf16 %v2152, %v2134
    %v2657 = vpack.c.bf16 %v2153, %v2135
    %v2658 = vpack.c.bf16 %v2154, %v2136
    %v2659 = vpack.c.bf16 %v2155, %v2137
    %v2660 = vpack.c.bf16 %v2156, %v2138
    %v2661 = vpack.c.bf16 %v2157, %v2139
    %v2662 = vpack.c.bf16 %v2158, %v2140
    %v2663 = vpack.c.bf16 %v2159, %v2141
    %v2664 = vpack.c.bf16 %v2160, %v2142
    %v2665 = vpack.c.bf16 %v2161, %v2143
    %v2666 = vpack.c.bf16 %v2162, %v2144
    %v2667 = vpack.c.bf16 %v2163, %v2145
    %v2668 = vpack.c.bf16 %v2164, %v2146
    %v2669 = vpack.c.bf16 %v2165, %v2147
    %v2670 = vpack.c.bf16 %v2166, %v2148
    %v2671 = vpack.c.bf16 %v2167, %v2149
    %v2672 = vpack.c.bf16 %v2186, %v2168
    %v2673 = vpack.c.bf16 %v2187, %v2169
    %v2674 = vpack.c.bf16 %v2188, %v2170
    %v2675 = vpack.c.bf16 %v2189, %v2171
    %v2676 = vpack.c.bf16 %v2190, %v2172
    %v2677 = vpack.c.bf16 %v2191, %v2173
    %v2678 = vpack.c.bf16 %v2192, %v2174
    %v2679 = vpack.c.bf16 %v2193, %v2175
    %v2680 = vpack.c.bf16 %v2194, %v2176
    %v2681 = vpack.c.bf16 %v2195, %v2177
    %v2682 = vpack.c.bf16 %v2196, %v2178
    %v2683 = vpack.c.bf16 %v2197, %v2179
    %v2684 = vpack.c.bf16 %v2198, %v2180
    %v2685 = vpack.c.bf16 %v2199, %v2181
    %v2686 = vpack.c.bf16 %v2200, %v2182
    %v2687 = vpack.c.bf16 %v2201, %v2183
    %v2688 = vpack.c.bf16 %v2202, %v2184
    %v2689 = vpack.c.bf16 %v2203, %v2185
    %v2690 = vpack.c.bf16 %v2222, %v2204
    %v2691 = vpack.c.bf16 %v2223, %v2205
    %v2692 = vpack.c.bf16 %v2224, %v2206
    %v2693 = vpack.c.bf16 %v2225, %v2207
    %v2694 = vpack.c.bf16 %v2226, %v2208
    %v2695 = vpack.c.bf16 %v2227, %v2209
    %v2696 = vpack.c.bf16 %v2228, %v2210
    %v2697 = vpack.c.bf16 %v2229, %v2211
    %v2698 = vpack.c.bf16 %v2230, %v2212
    %v2699 = vpack.c.bf16 %v2231, %v2213
    %v2700 = vpack.c.bf16 %v2232, %v2214
    %v2701 = vpack.c.bf16 %v2233, %v2215
    %v2702 = vpack.c.bf16 %v2234, %v2216
    %v2703 = vpack.c.bf16 %v2235, %v2217
    %v2704 = vpack.c.bf16 %v2236, %v2218
    %v2705 = vpack.c.bf16 %v2237, %v2219
    %v2706 = vpack.c.bf16 %v2238, %v2220
    %v2707 = vpack.c.bf16 %v2239, %v2221
    %v2708 = vpack.c.bf16 %v2258, %v2240
    %v2709 = vpack.c.bf16 %v2259, %v2241
    %v2710 = vpack.c.bf16 %v2260, %v2242
    %v2711 = vpack.c.bf16 %v2261, %v2243
    %v2712 = vpack.c.bf16 %v2262, %v2244
    %v2713 = vpack.c.bf16 %v2263, %v2245
    %v2714 = vpack.c.bf16 %v2264, %v2246
    %v2715 = vpack.c.bf16 %v2265, %v2247
    %v2716 = vpack.c.bf16 %v2266, %v2248
    %v2717 = vpack.c.bf16 %v2267, %v2249
    %v2718 = vpack.c.bf16 %v2268, %v2250
    %v2719 = vpack.c.bf16 %v2269, %v2251
    %v2720 = vpack.c.bf16 %v2270, %v2252
    %v2721 = vpack.c.bf16 %v2271, %v2253
    %v2722 = vpack.c.bf16 %v2272, %v2254
    %v2723 = vpack.c.bf16 %v2273, %v2255
    %v2724 = vpack.c.bf16 %v2274, %v2256
    %v2725 = vpack.c.bf16 %v2275, %v2257
    %v2726 = vpack.c.bf16 %v2294, %v2276
    %v2727 = vpack.c.bf16 %v2295, %v2277
    %v2728 = vpack.c.bf16 %v2296, %v2278
    %v2729 = vpack.c.bf16 %v2297, %v2279
    %v2730 = vpack.c.bf16 %v2298, %v2280
    %v2731 = vpack.c.bf16 %v2299, %v2281
    %v2732 = vpack.c.bf16 %v2300, %v2282
    %v2733 = vpack.c.bf16 %v2301, %v2283
    %v2734 = vpack.c.bf16 %v2302, %v2284
    %v2735 = vpack.c.bf16 %v2303, %v2285
    %v2736 = vpack.c.bf16 %v2304, %v2286
    %v2737 = vpack.c.bf16 %v2305, %v2287
    %v2738 = vpack.c.bf16 %v2306, %v2288
    %v2739 = vpack.c.bf16 %v2307, %v2289
    %v2740 = vpack.c.bf16 %v2308, %v2290
    %v2741 = vpack.c.bf16 %v2309, %v2291
    %v2742 = vpack.c.bf16 %v2310, %v2292
    %v2743 = vpack.c.bf16 %v2311, %v2293
    %v2744 = vld [vmem:[%s1] sm:$0xff]
    %v2745 = vld [vmem:[%s1 + $0x8] sm:$0xff]
    %v2746 = vld [vmem:[%s1 + $0x10] sm:$0xff]
    %v2747 = vld [vmem:[%s1 + $0x18] sm:$0xff]
    %v2748 = vld [vmem:[%s1 + $0x20] sm:$0xff]
    %v2749 = vld [vmem:[%s1 + $0x28] sm:$0xff]
    %v2750 = vld [vmem:[%s1 + $0x30] sm:$0xff]
    %v2751 = vld [vmem:[%s1 + $0x38] sm:$0xff]
    %v2752 = vld [vmem:[%s1 + $0x40] sm:$0xff]
    %v2753 = vld [vmem:[%s1 + $0x48] sm:$0xff]
    %v2754 = vld [vmem:[%s1 + $0x50] sm:$0xff]
    %v2755 = vld [vmem:[%s1 + $0x58] sm:$0xff]
    %v2756 = vld [vmem:[%s1 + $0x60] sm:$0xff]
    %v2757 = vld [vmem:[%s1 + $0x68] sm:$0xff]
    %v2758 = vld [vmem:[%s1 + $0x70] sm:$0xff]
    %v2759 = vld [vmem:[%s1 + $0x78] sm:$0xff]
    %v2760 = vld [vmem:[%s1 + $0x80] sm:$0xff]
    %v2761 = vld [vmem:[%s1 + $0x88] sm:$0xff]
    %v2762 = vld [vmem:[%s1 + $0x90] sm:$0xff]
    %v2763 = vld [vmem:[%s1 + $0x98] sm:$0xff]
    %v2764 = vld [vmem:[%s1 + $0xa0] sm:$0xff]
    %v2765 = vld [vmem:[%s1 + $0xa8] sm:$0xff]
    %v2766 = vld [vmem:[%s1 + $0xb0] sm:$0xff]
    %v2767 = vld [vmem:[%s1 + $0xb8] sm:$0xff]
    %v2768 = vld [vmem:[%s1 + $0xc0] sm:$0xff]
    %v2769 = vld [vmem:[%s1 + $0xc8] sm:$0xff]
    %v2770 = vld [vmem:[%s1 + $0xd0] sm:$0xff]
    %v2771 = vld [vmem:[%s1 + $0xd8] sm:$0xff]
    %v2772 = vld [vmem:[%s1 + $0xe0] sm:$0xff]
    %v2773 = vld [vmem:[%s1 + $0xe8] sm:$0xff]
    %v2774 = vld [vmem:[%s1 + $0xf0] sm:$0xff]
    %v2775 = vld [vmem:[%s1 + $0xf8] sm:$0xff]
    %v2776 = vld [vmem:[%s1 + $0x100] sm:$0xff]
    %v2777 = vld [vmem:[%s1 + $0x108] sm:$0xff]
    %v2778 = vld [vmem:[%s1 + $0x110] sm:$0xff]
    %v2779 = vld [vmem:[%s1 + $0x118] sm:$0xff]
    %v2780 = vld [vmem:[%s1 + $0x120] sm:$0xff]
    %v2781 = vld [vmem:[%s1 + $0x128] sm:$0xff]
    %v2782 = vld [vmem:[%s1 + $0x130] sm:$0xff]
    %v2783 = vld [vmem:[%s1 + $0x138] sm:$0xff]
    %v2784 = vld [vmem:[%s1 + $0x140] sm:$0xff]
    %v2785 = vld [vmem:[%s1 + $0x148] sm:$0xff]
    %v2786 = vld [vmem:[%s1 + $0x150] sm:$0xff]
    %v2787 = vld [vmem:[%s1 + $0x158] sm:$0xff]
    %v2788 = vld [vmem:[%s1 + $0x160] sm:$0xff]
    %v2789 = vld [vmem:[%s1 + $0x168] sm:$0xff]
    %v2790 = vld [vmem:[%s1 + $0x170] sm:$0xff]
    %v2791 = vld [vmem:[%s1 + $0x178] sm:$0xff]
    %v2792 = vld [vmem:[%s1 + $0x180] sm:$0xff]
    %v2793 = vld [vmem:[%s1 + $0x188] sm:$0xff]
    %v2794 = vld [vmem:[%s1 + $0x190] sm:$0xff]
    %v2795 = vld [vmem:[%s1 + $0x198] sm:$0xff]
    %v2796 = vld [vmem:[%s1 + $0x1a0] sm:$0xff]
    %v2797 = vld [vmem:[%s1 + $0x1a8] sm:$0xff]
    %v2798 = vld [vmem:[%s1 + $0x1b0] sm:$0xff]
    %v2799 = vld [vmem:[%s1 + $0x1b8] sm:$0xff]
    %v2800 = vld [vmem:[%s1 + $0x1c0] sm:$0xff]
    %v2801 = vld [vmem:[%s1 + $0x1c8] sm:$0xff]
    %v2802 = vld [vmem:[%s1 + $0x1d0] sm:$0xff]
    %v2803 = vld [vmem:[%s1 + $0x1d8] sm:$0xff]
    %v2804 = vld [vmem:[%s1 + $0x1e0] sm:$0xff]
    %v2805 = vld [vmem:[%s1 + $0x1e8] sm:$0xff]
    %v2806 = vld [vmem:[%s1 + $0x1f0] sm:$0xff]
    %v2807 = vld [vmem:[%s1 + $0x1f8] sm:$0xff]
    %v2808 = vld [vmem:[%s1 + $0x200] sm:$0xff]
    %v2809 = vld [vmem:[%s1 + $0x208] sm:$0xff]
    %v2810 = vld [vmem:[%s1 + $0x210] sm:$0xff]
    %v2811 = vld [vmem:[%s1 + $0x218] sm:$0xff]
    %v2812 = vld [vmem:[%s1 + $0x220] sm:$0xff]
    %v2813 = vld [vmem:[%s1 + $0x228] sm:$0xff]
    %v2814 = vld [vmem:[%s1 + $0x230] sm:$0xff]
    %v2815 = vld [vmem:[%s1 + $0x238] sm:$0xff]
    %v2816 = vld [vmem:[%s1 + $0x240] sm:$0xff]
    %v2817 = vld [vmem:[%s1 + $0x248] sm:$0xff]
    %v2818 = vld [vmem:[%s1 + $0x250] sm:$0xff]
    %v2819 = vld [vmem:[%s1 + $0x258] sm:$0xff]
    %v2820 = vld [vmem:[%s1 + $0x260] sm:$0xff]
    %v2821 = vld [vmem:[%s1 + $0x268] sm:$0xff]
    %v2822 = vld [vmem:[%s1 + $0x270] sm:$0xff]
    %v2823 = vld [vmem:[%s1 + $0x278] sm:$0xff]
    %v2824 = vld [vmem:[%s1 + $0x280] sm:$0xff]
    %v2825 = vld [vmem:[%s1 + $0x288] sm:$0xff]
    %v2826 = vld [vmem:[%s1 + $0x290] sm:$0xff]
    %v2827 = vld [vmem:[%s1 + $0x298] sm:$0xff]
    %v2828 = vld [vmem:[%s1 + $0x2a0] sm:$0xff]
    %v2829 = vld [vmem:[%s1 + $0x2a8] sm:$0xff]
    %v2830 = vld [vmem:[%s1 + $0x2b0] sm:$0xff]
    %v2831 = vld [vmem:[%s1 + $0x2b8] sm:$0xff]
    %v2832 = vld [vmem:[%s1 + $0x2c0] sm:$0xff]
    %v2833 = vld [vmem:[%s1 + $0x2c8] sm:$0xff]
    %v2834 = vld [vmem:[%s1 + $0x2d0] sm:$0xff]
    %v2835 = vld [vmem:[%s1 + $0x2d8] sm:$0xff]
    %v2836 = vld [vmem:[%s1 + $0x2e0] sm:$0xff]
    %v2837 = vld [vmem:[%s1 + $0x2e8] sm:$0xff]
    %v2838 = vld [vmem:[%s1 + $0x2f0] sm:$0xff]
    %v2839 = vld [vmem:[%s1 + $0x2f8] sm:$0xff]
    %v2840 = vld [vmem:[%s1 + $0x300] sm:$0xff]
    %v2841 = vld [vmem:[%s1 + $0x308] sm:$0xff]
    %v2842 = vld [vmem:[%s1 + $0x310] sm:$0xff]
    %v2843 = vld [vmem:[%s1 + $0x318] sm:$0xff]
    %v2844 = vld [vmem:[%s1 + $0x320] sm:$0xff]
    %v2845 = vld [vmem:[%s1 + $0x328] sm:$0xff]
    %v2846 = vld [vmem:[%s1 + $0x330] sm:$0xff]
    %v2847 = vld [vmem:[%s1 + $0x338] sm:$0xff]
    %v2848 = vld [vmem:[%s1 + $0x340] sm:$0xff]
    %v2849 = vld [vmem:[%s1 + $0x348] sm:$0xff]
    %v2850 = vld [vmem:[%s1 + $0x350] sm:$0xff]
    %v2851 = vld [vmem:[%s1 + $0x358] sm:$0xff]
    %v2852 = vld [vmem:[%s1 + $0x360] sm:$0xff]
    %v2853 = vld [vmem:[%s1 + $0x368] sm:$0xff]
    %v2854 = vld [vmem:[%s1 + $0x370] sm:$0xff]
    %v2855 = vld [vmem:[%s1 + $0x378] sm:$0xff]
    %v2856 = vld [vmem:[%s1 + $0x380] sm:$0xff]
    %v2857 = vld [vmem:[%s1 + $0x388] sm:$0xff]
    %v2858 = vld [vmem:[%s1 + $0x390] sm:$0xff]
    %v2859 = vld [vmem:[%s1 + $0x398] sm:$0xff]
    %v2860 = vld [vmem:[%s1 + $0x3a0] sm:$0xff]
    %v2861 = vld [vmem:[%s1 + $0x3a8] sm:$0xff]
    %v2862 = vld [vmem:[%s1 + $0x3b0] sm:$0xff]
    %v2863 = vld [vmem:[%s1 + $0x3b8] sm:$0xff]
    %v2864 = vld [vmem:[%s1 + $0x3c0] sm:$0xff]
    %v2865 = vld [vmem:[%s1 + $0x3c8] sm:$0xff]
    %v2866 = vld [vmem:[%s1 + $0x3d0] sm:$0xff]
    %v2867 = vld [vmem:[%s1 + $0x3d8] sm:$0xff]
    %v2868 = vld [vmem:[%s1 + $0x3e0] sm:$0xff]
    %v2869 = vld [vmem:[%s1 + $0x3e8] sm:$0xff]
    %v2870 = vld [vmem:[%s1 + $0x3f0] sm:$0xff]
    %v2871 = vld [vmem:[%s1 + $0x3f8] sm:$0xff]
    %v2872 = vld [vmem:[%s1 + $0x400] sm:$0xff]
    %v2873 = vld [vmem:[%s1 + $0x408] sm:$0xff]
    %v2874 = vld [vmem:[%s1 + $0x410] sm:$0xff]
    %v2875 = vld [vmem:[%s1 + $0x418] sm:$0xff]
    %v2876 = vld [vmem:[%s1 + $0x420] sm:$0xff]
    %v2877 = vld [vmem:[%s1 + $0x428] sm:$0xff]
    %v2878 = vld [vmem:[%s1 + $0x430] sm:$0xff]
    %v2879 = vld [vmem:[%s1 + $0x438] sm:$0xff]
    %v2880 = vld [vmem:[%s1 + $0x440] sm:$0xff]
    %v2881 = vld [vmem:[%s1 + $0x448] sm:$0xff]
    %v2882 = vld [vmem:[%s1 + $0x450] sm:$0xff]
    %v2883 = vld [vmem:[%s1 + $0x458] sm:$0xff]
    %v2884 = vld [vmem:[%s1 + $0x460] sm:$0xff]
    %v2885 = vld [vmem:[%s1 + $0x468] sm:$0xff]
    %v2886 = vld [vmem:[%s1 + $0x470] sm:$0xff]
    %v2887 = vld [vmem:[%s1 + $0x478] sm:$0xff]
    %v2888 = vld [vmem:[%s1 + $0x480] sm:$0xff]
    %v2889 = vld [vmem:[%s1 + $0x488] sm:$0xff]
    %v2890 = vld [vmem:[%s1 + $0x490] sm:$0xff]
    %v2891 = vld [vmem:[%s1 + $0x498] sm:$0xff]
    %v2892 = vld [vmem:[%s1 + $0x4a0] sm:$0xff]
    %v2893 = vld [vmem:[%s1 + $0x4a8] sm:$0xff]
    %v2894 = vld [vmem:[%s1 + $0x4b0] sm:$0xff]
    %v2895 = vld [vmem:[%s1 + $0x4b8] sm:$0xff]
    %v2896 = vld [vmem:[%s1 + $0x4c0] sm:$0xff]
    %v2897 = vld [vmem:[%s1 + $0x4c8] sm:$0xff]
    %v2898 = vld [vmem:[%s1 + $0x4d0] sm:$0xff]
    %v2899 = vld [vmem:[%s1 + $0x4d8] sm:$0xff]
    %v2900 = vld [vmem:[%s1 + $0x4e0] sm:$0xff]
    %v2901 = vld [vmem:[%s1 + $0x4e8] sm:$0xff]
    %v2902 = vld [vmem:[%s1 + $0x4f0] sm:$0xff]
    %v2903 = vld [vmem:[%s1 + $0x4f8] sm:$0xff]
    %v2904 = vld [vmem:[%s1 + $0x500] sm:$0xff]
    %v2905 = vld [vmem:[%s1 + $0x508] sm:$0xff]
    %v2906 = vld [vmem:[%s1 + $0x510] sm:$0xff]
    %v2907 = vld [vmem:[%s1 + $0x518] sm:$0xff]
    %v2908 = vld [vmem:[%s1 + $0x520] sm:$0xff]
    %v2909 = vld [vmem:[%s1 + $0x528] sm:$0xff]
    %v2910 = vld [vmem:[%s1 + $0x530] sm:$0xff]
    %v2911 = vld [vmem:[%s1 + $0x538] sm:$0xff]
    %v2912 = vld [vmem:[%s1 + $0x540] sm:$0xff]
    %v2913 = vld [vmem:[%s1 + $0x548] sm:$0xff]
    %v2914 = vld [vmem:[%s1 + $0x550] sm:$0xff]
    %v2915 = vld [vmem:[%s1 + $0x558] sm:$0xff]
    %v2916 = vld [vmem:[%s1 + $0x560] sm:$0xff]
    %v2917 = vld [vmem:[%s1 + $0x568] sm:$0xff]
    %v2918 = vld [vmem:[%s1 + $0x570] sm:$0xff]
    %v2919 = vld [vmem:[%s1 + $0x578] sm:$0xff]
    %v2920 = vld [vmem:[%s1 + $0x580] sm:$0xff]
    %v2921 = vld [vmem:[%s1 + $0x588] sm:$0xff]
    %v2922 = vld [vmem:[%s1 + $0x590] sm:$0xff]
    %v2923 = vld [vmem:[%s1 + $0x598] sm:$0xff]
    %v2924 = vld [vmem:[%s1 + $0x5a0] sm:$0xff]
    %v2925 = vld [vmem:[%s1 + $0x5a8] sm:$0xff]
    %v2926 = vld [vmem:[%s1 + $0x5b0] sm:$0xff]
    %v2927 = vld [vmem:[%s1 + $0x5b8] sm:$0xff]
    %v2928 = vld [vmem:[%s1 + $0x5c0] sm:$0xff]
    %v2929 = vld [vmem:[%s1 + $0x5c8] sm:$0xff]
    %v2930 = vld [vmem:[%s1 + $0x5d0] sm:$0xff]
    %v2931 = vld [vmem:[%s1 + $0x5d8] sm:$0xff]
    %v2932 = vld [vmem:[%s1 + $0x5e0] sm:$0xff]
    %v2933 = vld [vmem:[%s1 + $0x5e8] sm:$0xff]
    %v2934 = vld [vmem:[%s1 + $0x5f0] sm:$0xff]
    %v2935 = vld [vmem:[%s1 + $0x5f8] sm:$0xff]
    %v2936 = vld [vmem:[%s1 + $0x600] sm:$0xff]
    %v2937 = vld [vmem:[%s1 + $0x608] sm:$0xff]
    %v2938 = vld [vmem:[%s1 + $0x610] sm:$0xff]
    %v2939 = vld [vmem:[%s1 + $0x618] sm:$0xff]
    %v2940 = vld [vmem:[%s1 + $0x620] sm:$0xff]
    %v2941 = vld [vmem:[%s1 + $0x628] sm:$0xff]
    %v2942 = vld [vmem:[%s1 + $0x630] sm:$0xff]
    %v2943 = vld [vmem:[%s1 + $0x638] sm:$0xff]
    %v2944 = vld [vmem:[%s1 + $0x640] sm:$0xff]
    %v2945 = vld [vmem:[%s1 + $0x648] sm:$0xff]
    %v2946 = vld [vmem:[%s1 + $0x650] sm:$0xff]
    %v2947 = vld [vmem:[%s1 + $0x658] sm:$0xff]
    %v2948 = vld [vmem:[%s1 + $0x660] sm:$0xff]
    %v2949 = vld [vmem:[%s1 + $0x668] sm:$0xff]
    %v2950 = vld [vmem:[%s1 + $0x670] sm:$0xff]
    %v2951 = vld [vmem:[%s1 + $0x678] sm:$0xff]
    %v2952 = vld [vmem:[%s1 + $0x680] sm:$0xff]
    %v2953 = vld [vmem:[%s1 + $0x688] sm:$0xff]
    %v2954 = vld [vmem:[%s1 + $0x690] sm:$0xff]
    %v2955 = vld [vmem:[%s1 + $0x698] sm:$0xff]
    %v2956 = vld [vmem:[%s1 + $0x6a0] sm:$0xff]
    %v2957 = vld [vmem:[%s1 + $0x6a8] sm:$0xff]
    %v2958 = vld [vmem:[%s1 + $0x6b0] sm:$0xff]
    %v2959 = vld [vmem:[%s1 + $0x6b8] sm:$0xff]
    %v2960 = vld [vmem:[%s1 + $0x6c0] sm:$0xff]
    %v2961 = vld [vmem:[%s1 + $0x6c8] sm:$0xff]
    %v2962 = vld [vmem:[%s1 + $0x6d0] sm:$0xff]
    %v2963 = vld [vmem:[%s1 + $0x6d8] sm:$0xff]
    %v2964 = vld [vmem:[%s1 + $0x6e0] sm:$0xff]
    %v2965 = vld [vmem:[%s1 + $0x6e8] sm:$0xff]
    %v2966 = vld [vmem:[%s1 + $0x6f0] sm:$0xff]
    %v2967 = vld [vmem:[%s1 + $0x6f8] sm:$0xff]
    %v2968 = vld [vmem:[%s1 + $0x700] sm:$0xff]
    %v2969 = vld [vmem:[%s1 + $0x708] sm:$0xff]
    %v2970 = vld [vmem:[%s1 + $0x710] sm:$0xff]
    %v2971 = vld [vmem:[%s1 + $0x718] sm:$0xff]
    %v2972 = vld [vmem:[%s1 + $0x720] sm:$0xff]
    %v2973 = vld [vmem:[%s1 + $0x728] sm:$0xff]
    %v2974 = vld [vmem:[%s1 + $0x730] sm:$0xff]
    %v2975 = vld [vmem:[%s1 + $0x738] sm:$0xff]
    %v2976 = vld [vmem:[%s1 + $0x740] sm:$0xff]
    %v2977 = vld [vmem:[%s1 + $0x748] sm:$0xff]
    %v2978 = vld [vmem:[%s1 + $0x750] sm:$0xff]
    %v2979 = vld [vmem:[%s1 + $0x758] sm:$0xff]
    %v2980 = vld [vmem:[%s1 + $0x760] sm:$0xff]
    %v2981 = vld [vmem:[%s1 + $0x768] sm:$0xff]
    %v2982 = vld [vmem:[%s1 + $0x770] sm:$0xff]
    %v2983 = vld [vmem:[%s1 + $0x778] sm:$0xff]
    %v2984 = vld [vmem:[%s1 + $0x780] sm:$0xff]
    %v2985 = vld [vmem:[%s1 + $0x788] sm:$0xff]
    %v2986 = vld [vmem:[%s1 + $0x790] sm:$0xff]
    %v2987 = vld [vmem:[%s1 + $0x798] sm:$0xff]
    %v2988 = vld [vmem:[%s1 + $0x7a0] sm:$0xff]
    %v2989 = vld [vmem:[%s1 + $0x7a8] sm:$0xff]
    %v2990 = vld [vmem:[%s1 + $0x7b0] sm:$0xff]
    %v2991 = vld [vmem:[%s1 + $0x7b8] sm:$0xff]
    %v2992 = vld [vmem:[%s1 + $0x7c0] sm:$0xff]
    %v2993 = vld [vmem:[%s1 + $0x7c8] sm:$0xff]
    %v2994 = vld [vmem:[%s1 + $0x7d0] sm:$0xff]
    %v2995 = vld [vmem:[%s1 + $0x7d8] sm:$0xff]
    %v2996 = vld [vmem:[%s1 + $0x7e0] sm:$0xff]
    %v2997 = vld [vmem:[%s1 + $0x7e8] sm:$0xff]
    %v2998 = vld [vmem:[%s1 + $0x7f0] sm:$0xff]
    %v2999 = vld [vmem:[%s1 + $0x7f8] sm:$0xff]
    %v3000 = vld [vmem:[%s1 + $0x800] sm:$0xff]
    %v3001 = vld [vmem:[%s1 + $0x808] sm:$0xff]
    %v3002 = vld [vmem:[%s1 + $0x810] sm:$0xff]
    %v3003 = vld [vmem:[%s1 + $0x818] sm:$0xff]
    %v3004 = vld [vmem:[%s1 + $0x820] sm:$0xff]
    %v3005 = vld [vmem:[%s1 + $0x828] sm:$0xff]
    %v3006 = vld [vmem:[%s1 + $0x830] sm:$0xff]
    %v3007 = vld [vmem:[%s1 + $0x838] sm:$0xff]
    %v3008 = vld [vmem:[%s1 + $0x840] sm:$0xff]
    %v3009 = vld [vmem:[%s1 + $0x848] sm:$0xff]
    %v3010 = vld [vmem:[%s1 + $0x850] sm:$0xff]
    %v3011 = vld [vmem:[%s1 + $0x858] sm:$0xff]
    %v3012 = vld [vmem:[%s1 + $0x860] sm:$0xff]
    %v3013 = vld [vmem:[%s1 + $0x868] sm:$0xff]
    %v3014 = vld [vmem:[%s1 + $0x870] sm:$0xff]
    %v3015 = vld [vmem:[%s1 + $0x878] sm:$0xff]
    %v3016 = vld [vmem:[%s1 + $0x880] sm:$0xff]
    %v3017 = vld [vmem:[%s1 + $0x888] sm:$0xff]
    %v3018 = vld [vmem:[%s1 + $0x890] sm:$0xff]
    %v3019 = vld [vmem:[%s1 + $0x898] sm:$0xff]
    %v3020 = vld [vmem:[%s1 + $0x8a0] sm:$0xff]
    %v3021 = vld [vmem:[%s1 + $0x8a8] sm:$0xff]
    %v3022 = vld [vmem:[%s1 + $0x8b0] sm:$0xff]
    %v3023 = vld [vmem:[%s1 + $0x8b8] sm:$0xff]
    %v3024 = vld [vmem:[%s1 + $0x8c0] sm:$0xff]
    %v3025 = vld [vmem:[%s1 + $0x8c8] sm:$0xff]
    %v3026 = vld [vmem:[%s1 + $0x8d0] sm:$0xff]
    %v3027 = vld [vmem:[%s1 + $0x8d8] sm:$0xff]
    %v3028 = vld [vmem:[%s1 + $0x8e0] sm:$0xff]
    %v3029 = vld [vmem:[%s1 + $0x8e8] sm:$0xff]
    %v3030 = vld [vmem:[%s1 + $0x8f0] sm:$0xff]
    %v3031 = vld [vmem:[%s1 + $0x8f8] sm:$0xff]
    %v3032 = vpack.c.bf16 %v2745, %v2744
    %v3033 = vpack.c.bf16 %v2747, %v2746
    %v3034 = vpack.c.bf16 %v2749, %v2748
    %v3035 = vpack.c.bf16 %v2751, %v2750
    %v3036 = vpack.c.bf16 %v2753, %v2752
    %v3037 = vpack.c.bf16 %v2755, %v2754
    %v3038 = vpack.c.bf16 %v2757, %v2756
    %v3039 = vpack.c.bf16 %v2759, %v2758
    %v3040 = vpack.c.bf16 %v2761, %v2760
    %v3041 = vpack.c.bf16 %v2763, %v2762
    %v3042 = vpack.c.bf16 %v2765, %v2764
    %v3043 = vpack.c.bf16 %v2767, %v2766
    %v3044 = vpack.c.bf16 %v2769, %v2768
    %v3045 = vpack.c.bf16 %v2771, %v2770
    %v3046 = vpack.c.bf16 %v2773, %v2772
    %v3047 = vpack.c.bf16 %v2775, %v2774
    %v3048 = vpack.c.bf16 %v2777, %v2776
    %v3049 = vpack.c.bf16 %v2779, %v2778
    %v3050 = vpack.c.bf16 %v2781, %v2780
    %v3051 = vpack.c.bf16 %v2783, %v2782
    %v3052 = vpack.c.bf16 %v2785, %v2784
    %v3053 = vpack.c.bf16 %v2787, %v2786
    %v3054 = vpack.c.bf16 %v2789, %v2788
    %v3055 = vpack.c.bf16 %v2791, %v2790
    %v3056 = vpack.c.bf16 %v2793, %v2792
    %v3057 = vpack.c.bf16 %v2795, %v2794
    %v3058 = vpack.c.bf16 %v2797, %v2796
    %v3059 = vpack.c.bf16 %v2799, %v2798
    %v3060 = vpack.c.bf16 %v2801, %v2800
    %v3061 = vpack.c.bf16 %v2803, %v2802
    %v3062 = vpack.c.bf16 %v2805, %v2804
    %v3063 = vpack.c.bf16 %v2807, %v2806
    %v3064 = vpack.c.bf16 %v2809, %v2808
    %v3065 = vpack.c.bf16 %v2811, %v2810
    %v3066 = vpack.c.bf16 %v2813, %v2812
    %v3067 = vpack.c.bf16 %v2815, %v2814
    %v3068 = vpack.c.bf16 %v2817, %v2816
    %v3069 = vpack.c.bf16 %v2819, %v2818
    %v3070 = vpack.c.bf16 %v2821, %v2820
    %v3071 = vpack.c.bf16 %v2823, %v2822
    %v3072 = vpack.c.bf16 %v2825, %v2824
    %v3073 = vpack.c.bf16 %v2827, %v2826
    %v3074 = vpack.c.bf16 %v2829, %v2828
    %v3075 = vpack.c.bf16 %v2831, %v2830
    %v3076 = vpack.c.bf16 %v2833, %v2832
    %v3077 = vpack.c.bf16 %v2835, %v2834
    %v3078 = vpack.c.bf16 %v2837, %v2836
    %v3079 = vpack.c.bf16 %v2839, %v2838
    %v3080 = vpack.c.bf16 %v2841, %v2840
    %v3081 = vpack.c.bf16 %v2843, %v2842
    %v3082 = vpack.c.bf16 %v2845, %v2844
    %v3083 = vpack.c.bf16 %v2847, %v2846
    %v3084 = vpack.c.bf16 %v2849, %v2848
    %v3085 = vpack.c.bf16 %v2851, %v2850
    %v3086 = vpack.c.bf16 %v2853, %v2852
    %v3087 = vpack.c.bf16 %v2855, %v2854
    %v3088 = vpack.c.bf16 %v2857, %v2856
    %v3089 = vpack.c.bf16 %v2859, %v2858
    %v3090 = vpack.c.bf16 %v2861, %v2860
    %v3091 = vpack.c.bf16 %v2863, %v2862
    %v3092 = vpack.c.bf16 %v2865, %v2864
    %v3093 = vpack.c.bf16 %v2867, %v2866
    %v3094 = vpack.c.bf16 %v2869, %v2868
    %v3095 = vpack.c.bf16 %v2871, %v2870
    %v3096 = vpack.c.bf16 %v2873, %v2872
    %v3097 = vpack.c.bf16 %v2875, %v2874
    %v3098 = vpack.c.bf16 %v2877, %v2876
    %v3099 = vpack.c.bf16 %v2879, %v2878
    %v3100 = vpack.c.bf16 %v2881, %v2880
    %v3101 = vpack.c.bf16 %v2883, %v2882
    %v3102 = vpack.c.bf16 %v2885, %v2884
    %v3103 = vpack.c.bf16 %v2887, %v2886
    %v3104 = vpack.c.bf16 %v2889, %v2888
    %v3105 = vpack.c.bf16 %v2891, %v2890
    %v3106 = vpack.c.bf16 %v2893, %v2892
    %v3107 = vpack.c.bf16 %v2895, %v2894
    %v3108 = vpack.c.bf16 %v2897, %v2896
    %v3109 = vpack.c.bf16 %v2899, %v2898
    %v3110 = vpack.c.bf16 %v2901, %v2900
    %v3111 = vpack.c.bf16 %v2903, %v2902
    %v3112 = vpack.c.bf16 %v2905, %v2904
    %v3113 = vpack.c.bf16 %v2907, %v2906
    %v3114 = vpack.c.bf16 %v2909, %v2908
    %v3115 = vpack.c.bf16 %v2911, %v2910
    %v3116 = vpack.c.bf16 %v2913, %v2912
    %v3117 = vpack.c.bf16 %v2915, %v2914
    %v3118 = vpack.c.bf16 %v2917, %v2916
    %v3119 = vpack.c.bf16 %v2919, %v2918
    %v3120 = vpack.c.bf16 %v2921, %v2920
    %v3121 = vpack.c.bf16 %v2923, %v2922
    %v3122 = vpack.c.bf16 %v2925, %v2924
    %v3123 = vpack.c.bf16 %v2927, %v2926
    %v3124 = vpack.c.bf16 %v2929, %v2928
    %v3125 = vpack.c.bf16 %v2931, %v2930
    %v3126 = vpack.c.bf16 %v2933, %v2932
    %v3127 = vpack.c.bf16 %v2935, %v2934
    %v3128 = vpack.c.bf16 %v2937, %v2936
    %v3129 = vpack.c.bf16 %v2939, %v2938
    %v3130 = vpack.c.bf16 %v2941, %v2940
    %v3131 = vpack.c.bf16 %v2943, %v2942
    %v3132 = vpack.c.bf16 %v2945, %v2944
    %v3133 = vpack.c.bf16 %v2947, %v2946
    %v3134 = vpack.c.bf16 %v2949, %v2948
    %v3135 = vpack.c.bf16 %v2951, %v2950
    %v3136 = vpack.c.bf16 %v2953, %v2952
    %v3137 = vpack.c.bf16 %v2955, %v2954
    %v3138 = vpack.c.bf16 %v2957, %v2956
    %v3139 = vpack.c.bf16 %v2959, %v2958
    %v3140 = vpack.c.bf16 %v2961, %v2960
    %v3141 = vpack.c.bf16 %v2963, %v2962
    %v3142 = vpack.c.bf16 %v2965, %v2964
    %v3143 = vpack.c.bf16 %v2967, %v2966
    %v3144 = vpack.c.bf16 %v2969, %v2968
    %v3145 = vpack.c.bf16 %v2971, %v2970
    %v3146 = vpack.c.bf16 %v2973, %v2972
    %v3147 = vpack.c.bf16 %v2975, %v2974
    %v3148 = vpack.c.bf16 %v2977, %v2976
    %v3149 = vpack.c.bf16 %v2979, %v2978
    %v3150 = vpack.c.bf16 %v2981, %v2980
    %v3151 = vpack.c.bf16 %v2983, %v2982
    %v3152 = vpack.c.bf16 %v2985, %v2984
    %v3153 = vpack.c.bf16 %v2987, %v2986
    %v3154 = vpack.c.bf16 %v2989, %v2988
    %v3155 = vpack.c.bf16 %v2991, %v2990
    %v3156 = vpack.c.bf16 %v2993, %v2992
    %v3157 = vpack.c.bf16 %v2995, %v2994
    %v3158 = vpack.c.bf16 %v2997, %v2996
    %v3159 = vpack.c.bf16 %v2999, %v2998
    %v3160 = vpack.c.bf16 %v3001, %v3000
    %v3161 = vpack.c.bf16 %v3003, %v3002
    %v3162 = vpack.c.bf16 %v3005, %v3004
    %v3163 = vpack.c.bf16 %v3007, %v3006
    %v3164 = vpack.c.bf16 %v3009, %v3008
    %v3165 = vpack.c.bf16 %v3011, %v3010
    %v3166 = vpack.c.bf16 %v3013, %v3012
    %v3167 = vpack.c.bf16 %v3015, %v3014
    %v3168 = vpack.c.bf16 %v3017, %v3016
    %v3169 = vpack.c.bf16 %v3019, %v3018
    %v3170 = vpack.c.bf16 %v3021, %v3020
    %v3171 = vpack.c.bf16 %v3023, %v3022
    %v3172 = vpack.c.bf16 %v3025, %v3024
    %v3173 = vpack.c.bf16 %v3027, %v3026
    %v3174 = vpack.c.bf16 %v3029, %v3028
    %v3175 = vpack.c.bf16 %v3031, %v3030
    %3176 = vmatprep.subr.bf16.mxu0 0
    %3177 = vmatpush1.bf16.msra.mxu0 %v3032
    %3178 = vmatprep.subr.bf16.mxu0 0
    %3179 = vmatpush1.bf16.msra.mxu0 %v3033
    %3180 = vmatprep.subr.bf16.mxu0 0
    %3181 = vmatpush1.bf16.msra.mxu0 %v3034
    %3182 = vmatprep.subr.bf16.mxu0 0
    %3183 = vmatpush1.bf16.msra.mxu0 %v3035
    %3184 = vmatprep.subr.bf16.mxu0 0
    %3185 = vmatpush1.bf16.msra.mxu0 %v3036
    %3186 = vmatprep.subr.bf16.mxu0 0
    %3187 = vmatpush1.bf16.msra.mxu0 %v3037
    %3188 = vmatprep.subr.bf16.mxu0 0
    %3189 = vmatpush1.bf16.msra.mxu0 %v3038
    %3190 = vmatprep.subr.bf16.mxu0 0
    %3191 = vmatpush1.bf16.msra.mxu0 %v3039
    %3192 = vmatprep.subr.bf16.mxu0 0
    %3193 = vmatpush1.bf16.msra.mxu0 %v3040
    %3194 = vmatprep.subr.bf16.mxu0 0
    %3195 = vmatpush1.bf16.msra.mxu0 %v3041
    %3196 = vmatprep.subr.bf16.mxu0 0
    %3197 = vmatpush1.bf16.msra.mxu0 %v3042
    %3198 = vmatprep.subr.bf16.mxu0 0
    %3199 = vmatpush1.bf16.msra.mxu0 %v3043
    %3200 = vmatprep.subr.bf16.mxu0 0
    %3201 = vmatpush1.bf16.msra.mxu0 %v3044
    %3202 = vmatprep.subr.bf16.mxu0 0
    %3203 = vmatpush1.bf16.msra.mxu0 %v3045
    %3204 = vmatprep.subr.bf16.mxu0 0
    %3205 = vmatpush1.bf16.msra.mxu0 %v3046
    %3206 = vmatprep.subr.bf16.mxu0 0
    %3207 = vmatpush1.bf16.msra.mxu0 %v3047
    %3208 = vmatprep.mubr.bf16.mxu0 %v2313
    %3209 = vmatmul.mubr.bf16.gmra.mrb[0].mxu0 %v2312
    %v3210 = vpop.f32.mrb[0].mxu0
    %v3211 = vadd.f32 0.0, %v3210
    %v3212 = vpop.f32.mrb[0].mxu0
    %v3213 = vpop.f32.mrb[0].mxu0
    %v3214 = vadd.f32 0.0, %v3213
    %v3215 = vpop.f32.mrb[0].mxu0
    %3216 = vmatprep.mubr.bf16.mxu0 %v2331
    %3217 = vmatmul.mubr.bf16.gmra.mrb[0].mxu0 %v2330
    %v3218 = vpop.f32.mrb[0].mxu0
    %v3219 = vadd.f32 0.0, %v3218
    %v3220 = vpop.f32.mrb[0].mxu0
    %v3221 = vpop.f32.mrb[0].mxu0
    %v3222 = vadd.f32 0.0, %v3221
    %v3223 = vpop.f32.mrb[0].mxu0
    %3224 = vmatprep.mubr.bf16.mxu0 %v2349
    %3225 = vmatmul.mubr.bf16.gmra.mrb[0].mxu0 %v2348
    %v3226 = vpop.f32.mrb[0].mxu0
    %v3227 = vadd.f32 0.0, %v3226
    %v3228 = vpop.f32.mrb[0].mxu0
    %v3229 = vpop.f32.mrb[0].mxu0
    %v3230 = vadd.f32 0.0, %v3229
    %v3231 = vpop.f32.mrb[0].mxu0
    %3232 = vmatprep.mubr.bf16.mxu0 %v2367
    %3233 = vmatmul.mubr.bf16.gmra.mrb[0].mxu0 %v2366
    %v3234 = vpop.f32.mrb[0].mxu0
    %v3235 = vadd.f32 0.0, %v3234
    %v3236 = vpop.f32.mrb[0].mxu0
    %v3237 = vpop.f32.mrb[0].mxu0
    %v3238 = vadd.f32 0.0, %v3237
    %v3239 = vpop.f32.mrb[0].mxu0
    %3240 = vmatprep.mubr.bf16.mxu0 %v2385
    %3241 = vmatmul.mubr.bf16.gmra.mrb[0].mxu0 %v2384
    %v3242 = vpop.f32.mrb[0].mxu0
    %v3243 = vadd.f32 0.0, %v3242
    %v3244 = vpop.f32.mrb[0].mxu0
    %v3245 = vpop.f32.mrb[0].mxu0
    %v3246 = vadd.f32 0.0, %v3245
    %v3247 = vpop.f32.mrb[0].mxu0
    %3248 = vmatprep.mubr.bf16.mxu0 %v2403
    %3249 = vmatmul.mubr.bf16.gmra.mrb[0].mxu0 %v2402
    %v3250 = vpop.f32.mrb[0].mxu0
    %v3251 = vadd.f32 0.0, %v3250
    %v3252 = vpop.f32.mrb[0].mxu0
    %v3253 = vpop.f32.mrb[0].mxu0
    %v3254 = vadd.f32 0.0, %v3253
    %v3255 = vpop.f32.mrb[0].mxu0
    %3256 = vmatprep.mubr.bf16.mxu0 %v2421
    %3257 = vmatmul.mubr.bf16.gmra.mrb[0].mxu0 %v2420
    %v3258 = vpop.f32.mrb[0].mxu0
    %v3259 = vadd.f32 0.0, %v3258
    %v3260 = vpop.f32.mrb[0].mxu0
    %v3261 = vpop.f32.mrb[0].mxu0
    %v3262 = vadd.f32 0.0, %v3261
    %v3263 = vpop.f32.mrb[0].mxu0
    %3264 = vmatprep.mubr.bf16.mxu0 %v2439
    %3265 = vmatmul.mubr.bf16.gmra.mrb[0].mxu0 %v2438
    %v3266 = vpop.f32.mrb[0].mxu0
    %v3267 = vadd.f32 0.0, %v3266
    %v3268 = vpop.f32.mrb[0].mxu0
    %v3269 = vpop.f32.mrb[0].mxu0
    %v3270 = vadd.f32 0.0, %v3269
    %v3271 = vpop.f32.mrb[0].mxu0
    %3272 = vmatprep.mubr.bf16.mxu0 %v2457
    %3273 = vmatmul.mubr.bf16.gmra.mrb[0].mxu0 %v2456
    %v3274 = vpop.f32.mrb[0].mxu0
    %v3275 = vadd.f32 0.0, %v3274
    %v3276 = vpop.f32.mrb[0].mxu0
    %v3277 = vpop.f32.mrb[0].mxu0
    %v3278 = vadd.f32 0.0, %v3277
    %v3279 = vpop.f32.mrb[0].mxu0
    %3280 = vmatprep.mubr.bf16.mxu0 %v2475
    %3281 = vmatmul.mubr.bf16.gmra.mrb[0].mxu0 %v2474
    %v3282 = vpop.f32.mrb[0].mxu0
    %v3283 = vadd.f32 0.0, %v3282
    %v3284 = vpop.f32.mrb[0].mxu0
    %v3285 = vpop.f32.mrb[0].mxu0
    %v3286 = vadd.f32 0.0, %v3285
    %v3287 = vpop.f32.mrb[0].mxu0
    %3288 = vmatprep.mubr.bf16.mxu0 %v2493
    %3289 = vmatmul.mubr.bf16.gmra.mrb[0].mxu0 %v2492
    %v3290 = vpop.f32.mrb[0].mxu0
    %v3291 = vadd.f32 0.0, %v3290
    %v3292 = vpop.f32.mrb[0].mxu0
    %v3293 = vpop.f32.mrb[0].mxu0
    %v3294 = vadd.f32 0.0, %v3293
    %v3295 = vpop.f32.mrb[0].mxu0
    %3296 = vmatprep.mubr.bf16.mxu0 %v2511
    %3297 = vmatmul.mubr.bf16.gmra.mrb[0].mxu0 %v2510
    %v3298 = vpop.f32.mrb[0].mxu0
    %v3299 = vadd.f32 0.0, %v3298
    %v3300 = vpop.f32.mrb[0].mxu0
    %v3301 = vpop.f32.mrb[0].mxu0
    %v3302 = vadd.f32 0.0, %v3301
    %v3303 = vpop.f32.mrb[0].mxu0
    %3304 = vmatprep.mubr.bf16.mxu0 %v2529
    %3305 = vmatmul.mubr.bf16.gmra.mrb[0].mxu0 %v2528
    %v3306 = vpop.f32.mrb[0].mxu0
    %v3307 = vadd.f32 0.0, %v3306
    %v3308 = vpop.f32.mrb[0].mxu0
    %v3309 = vpop.f32.mrb[0].mxu0
    %v3310 = vadd.f32 0.0, %v3309
    %v3311 = vpop.f32.mrb[0].mxu0
    %3312 = vmatprep.mubr.bf16.mxu0 %v2547
    %3313 = vmatmul.mubr.bf16.gmra.mrb[0].mxu0 %v2546
    %v3314 = vpop.f32.mrb[0].mxu0
    %v3315 = vadd.f32 0.0, %v3314
    %v3316 = vpop.f32.mrb[0].mxu0
    %v3317 = vpop.f32.mrb[0].mxu0
    %v3318 = vadd.f32 0.0, %v3317
    %v3319 = vpop.f32.mrb[0].mxu0
    %3320 = vmatprep.mubr.bf16.mxu0 %v2565
    %3321 = vmatmul.mubr.bf16.gmra.mrb[0].mxu0 %v2564
    %v3322 = vpop.f32.mrb[0].mxu0
    %v3323 = vadd.f32 0.0, %v3322
    %v3324 = vpop.f32.mrb[0].mxu0
    %v3325 = vpop.f32.mrb[0].mxu0
    %v3326 = vadd.f32 0.0, %v3325
    %v3327 = vpop.f32.mrb[0].mxu0
    %3328 = vmatprep.mubr.bf16.mxu0 %v2583
    %3329 = vmatmul.mubr.bf16.gmra.mrb[0].mxu0 %v2582
    %v3330 = vpop.f32.mrb[0].mxu0
    %v3331 = vadd.f32 0.0, %v3330
    %v3332 = vpop.f32.mrb[0].mxu0
    %v3333 = vpop.f32.mrb[0].mxu0
    %v3334 = vadd.f32 0.0, %v3333
    %v3335 = vpop.f32.mrb[0].mxu0
    %3336 = vmatprep.mubr.bf16.mxu0 %v2601
    %3337 = vmatmul.mubr.bf16.gmra.mrb[0].mxu0 %v2600
    %v3338 = vpop.f32.mrb[0].mxu0
    %v3339 = vadd.f32 0.0, %v3338
    %v3340 = vpop.f32.mrb[0].mxu0
    %v3341 = vpop.f32.mrb[0].mxu0
    %v3342 = vadd.f32 0.0, %v3341
    %v3343 = vpop.f32.mrb[0].mxu0
    %3344 = vmatprep.mubr.bf16.mxu0 %v2619
    %3345 = vmatmul.mubr.bf16.gmra.mrb[0].mxu0 %v2618
    %v3346 = vpop.f32.mrb[0].mxu0
    %v3347 = vadd.f32 0.0, %v3346
    %v3348 = vpop.f32.mrb[0].mxu0
    %v3349 = vpop.f32.mrb[0].mxu0
    %v3350 = vadd.f32 0.0, %v3349
    %v3351 = vpop.f32.mrb[0].mxu0
    %3352 = vmatprep.mubr.bf16.mxu0 %v2637
    %3353 = vmatmul.mubr.bf16.gmra.mrb[0].mxu0 %v2636
    %v3354 = vpop.f32.mrb[0].mxu0
    %v3355 = vadd.f32 0.0, %v3354
    %v3356 = vpop.f32.mrb[0].mxu0
    %v3357 = vpop.f32.mrb[0].mxu0
    %v3358 = vadd.f32 0.0, %v3357
    %v3359 = vpop.f32.mrb[0].mxu0
    %3360 = vmatprep.mubr.bf16.mxu0 %v2655
    %3361 = vmatmul.mubr.bf16.gmra.mrb[0].mxu0 %v2654
    %v3362 = vpop.f32.mrb[0].mxu0
    %v3363 = vadd.f32 0.0, %v3362
    %v3364 = vpop.f32.mrb[0].mxu0
    %v3365 = vpop.f32.mrb[0].mxu0
    %v3366 = vadd.f32 0.0, %v3365
    %v3367 = vpop.f32.mrb[0].mxu0
    %3368 = vmatprep.mubr.bf16.mxu0 %v2673
    %3369 = vmatmul.mubr.bf16.gmra.mrb[0].mxu0 %v2672
    %v3370 = vpop.f32.mrb[0].mxu0
    %v3371 = vadd.f32 0.0, %v3370
    %v3372 = vpop.f32.mrb[0].mxu0
    %v3373 = vpop.f32.mrb[0].mxu0
    %v3374 = vadd.f32 0.0, %v3373
    %v3375 = vpop.f32.mrb[0].mxu0
    %3376 = vmatprep.mubr.bf16.mxu0 %v2691
    %3377 = vmatmul.mubr.bf16.gmra.mrb[0].mxu0 %v2690
    %v3378 = vpop.f32.mrb[0].mxu0
    %v3379 = vadd.f32 0.0, %v3378
    %v3380 = vpop.f32.mrb[0].mxu0
    %v3381 = vpop.f32.mrb[0].mxu0
    %v3382 = vadd.f32 0.0, %v3381
    %v3383 = vpop.f32.mrb[0].mxu0
    %3384 = vmatprep.mubr.bf16.mxu0 %v2709
    %3385 = vmatmul.mubr.bf16.gmra.mrb[0].mxu0 %v2708
    %v3386 = vpop.f32.mrb[0].mxu0
    %v3387 = vadd.f32 0.0, %v3386
    %v3388 = vpop.f32.mrb[0].mxu0
    %v3389 = vpop.f32.mrb[0].mxu0
    %v3390 = vadd.f32 0.0, %v3389
    %v3391 = vpop.f32.mrb[0].mxu0
    %3392 = vmatprep.mubr.bf16.mxu0 %v2727
    %3393 = vmatmul.mubr.bf16.gmra.mrb[0].mxu0 %v2726
    %v3394 = vpop.f32.mrb[0].mxu0
    %v3395 = vadd.f32 0.0, %v3394
    %v3396 = vpop.f32.mrb[0].mxu0
    %v3397 = vpop.f32.mrb[0].mxu0
    %v3398 = vadd.f32 0.0, %v3397
    %v3399 = vpop.f32.mrb[0].mxu0
    %3400 = vdwg.mxu0
    %3401 = vmatprep.subr.bf16.mxu0 0
    %3402 = vmatpush1.bf16.msra.mxu0 %v3048
    %3403 = vmatprep.subr.bf16.mxu0 0
    %3404 = vmatpush1.bf16.msra.mxu0 %v3049
    %3405 = vmatprep.subr.bf16.mxu0 0
    %3406 = vmatpush1.bf16.msra.mxu0 %v3050
    %3407 = vmatprep.subr.bf16.mxu0 0
    %3408 = vmatpush1.bf16.msra.mxu0 %v3051
    %3409 = vmatprep.subr.bf16.mxu0 0
    %3410 = vmatpush1.bf16.msra.mxu0 %v3052
    %3411 = vmatprep.subr.bf16.mxu0 0
    %3412 = vmatpush1.bf16.msra.mxu0 %v3053
    %3413 = vmatprep.subr.bf16.mxu0 0
    %3414 = vmatpush1.bf16.msra.mxu0 %v3054
    %3415 = vmatprep.subr.bf16.mxu0 0
    %3416 = vmatpush1.bf16.msra.mxu0 %v3055
    %3417 = vmatprep.subr.bf16.mxu0 0
    %3418 = vmatpush1.bf16.msra.mxu0 %v3056
    %3419 = vmatprep.subr.bf16.mxu0 0
    %3420 = vmatpush1.bf16.msra.mxu0 %v3057
    %3421 = vmatprep.subr.bf16.mxu0 0
    %3422 = vmatpush1.bf16.msra.mxu0 %v3058
    %3423 = vmatprep.subr.bf16.mxu0 0
    %3424 = vmatpush1.bf16.msra.mxu0 %v3059
    %3425 = vmatprep.subr.bf16.mxu0 0
    %3426 = vmatpush1.bf16.msra.mxu0 %v3060
    %3427 = vmatprep.subr.bf16.mxu0 0
    %3428 = vmatpush1.bf16.msra.mxu0 %v3061
    %3429 = vmatprep.subr.bf16.mxu0 0
    %3430 = vmatpush1.bf16.msra.mxu0 %v3062
    %3431 = vmatprep.subr.bf16.mxu0 0
    %3432 = vmatpush1.bf16.msra.mxu0 %v3063
    %3433 = vmatprep.mubr.bf16.mxu0 %v2315
    %3434 = vmatmul.mubr.bf16.gmra.mrb[0].mxu0 %v2314
    %v3435 = vpop.f32.mrb[0].mxu0
    %v3436 = vadd.f32 %v3211, %v3435
    %v3437 = vpop.f32.mrb[0].mxu0
    %v3438 = vpop.f32.mrb[0].mxu0
    %v3439 = vadd.f32 %v3214, %v3438
    %v3440 = vpop.f32.mrb[0].mxu0
    %3441 = vmatprep.mubr.bf16.mxu0 %v2333
    %3442 = vmatmul.mubr.bf16.gmra.mrb[0].mxu0 %v2332
    %v3443 = vpop.f32.mrb[0].mxu0
    %v3444 = vadd.f32 %v3219, %v3443
    %v3445 = vpop.f32.mrb[0].mxu0
    %v3446 = vpop.f32.mrb[0].mxu0
    %v3447 = vadd.f32 %v3222, %v3446
    %v3448 = vpop.f32.mrb[0].mxu0
    %3449 = vmatprep.mubr.bf16.mxu0 %v2351
    %3450 = vmatmul.mubr.bf16.gmra.mrb[0].mxu0 %v2350
    %v3451 = vpop.f32.mrb[0].mxu0
    %v3452 = vadd.f32 %v3227, %v3451
    %v3453 = vpop.f32.mrb[0].mxu0
    %v3454 = vpop.f32.mrb[0].mxu0
    %v3455 = vadd.f32 %v3230, %v3454
    %v3456 = vpop.f32.mrb[0].mxu0
    %3457 = vmatprep.mubr.bf16.mxu0 %v2369
    %3458 = vmatmul.mubr.bf16.gmra.mrb[0].mxu0 %v2368
    %v3459 = vpop.f32.mrb[0].mxu0
    %v3460 = vadd.f32 %v3235, %v3459
    %v3461 = vpop.f32.mrb[0].mxu0
    %v3462 = vpop.f32.mrb[0].mxu0
    %v3463 = vadd.f32 %v3238, %v3462
    %v3464 = vpop.f32.mrb[0].mxu0
    %3465 = vmatprep.mubr.bf16.mxu0 %v2387
    %3466 = vmatmul.mubr.bf16.gmra.mrb[0].mxu0 %v2386
    %v3467 = vpop.f32.mrb[0].mxu0
    %v3468 = vadd.f32 %v3243, %v3467
    %v3469 = vpop.f32.mrb[0].mxu0
    %v3470 = vpop.f32.mrb[0].mxu0
    %v3471 = vadd.f32 %v3246, %v3470
    %v3472 = vpop.f32.mrb[0].mxu0
    %3473 = vmatprep.mubr.bf16.mxu0 %v2405
    %3474 = vmatmul.mubr.bf16.gmra.mrb[0].mxu0 %v2404
    %v3475 = vpop.f32.mrb[0].mxu0
    %v3476 = vadd.f32 %v3251, %v3475
    %v3477 = vpop.f32.mrb[0].mxu0
    %v3478 = vpop.f32.mrb[0].mxu0
    %v3479 = vadd.f32 %v3254, %v3478
    %v3480 = vpop.f32.mrb[0].mxu0
    %3481 = vmatprep.mubr.bf16.mxu0 %v2423
    %3482 = vmatmul.mubr.bf16.gmra.mrb[0].mxu0 %v2422
    %v3483 = vpop.f32.mrb[0].mxu0
    %v3484 = vadd.f32 %v3259, %v3483
    %v3485 = vpop.f32.mrb[0].mxu0
    %v3486 = vpop.f32.mrb[0].mxu0
    %v3487 = vadd.f32 %v3262, %v3486
    %v3488 = vpop.f32.mrb[0].mxu0
    %3489 = vmatprep.mubr.bf16.mxu0 %v2441
    %3490 = vmatmul.mubr.bf16.gmra.mrb[0].mxu0 %v2440
    %v3491 = vpop.f32.mrb[0].mxu0
    %v3492 = vadd.f32 %v3267, %v3491
    %v3493 = vpop.f32.mrb[0].mxu0
    %v3494 = vpop.f32.mrb[0].mxu0
    %v3495 = vadd.f32 %v3270, %v3494
    %v3496 = vpop.f32.mrb[0].mxu0
    %3497 = vmatprep.mubr.bf16.mxu0 %v2459
    %3498 = vmatmul.mubr.bf16.gmra.mrb[0].mxu0 %v2458
    %v3499 = vpop.f32.mrb[0].mxu0
    %v3500 = vadd.f32 %v3275, %v3499
    %v3501 = vpop.f32.mrb[0].mxu0
    %v3502 = vpop.f32.mrb[0].mxu0
    %v3503 = vadd.f32 %v3278, %v3502
    %v3504 = vpop.f32.mrb[0].mxu0
    %3505 = vmatprep.mubr.bf16.mxu0 %v2477
    %3506 = vmatmul.mubr.bf16.gmra.mrb[0].mxu0 %v2476
    %v3507 = vpop.f32.mrb[0].mxu0
    %v3508 = vadd.f32 %v3283, %v3507
    %v3509 = vpop.f32.mrb[0].mxu0
    %v3510 = vpop.f32.mrb[0].mxu0
    %v3511 = vadd.f32 %v3286, %v3510
    %v3512 = vpop.f32.mrb[0].mxu0
    %3513 = vmatprep.mubr.bf16.mxu0 %v2495
    %3514 = vmatmul.mubr.bf16.gmra.mrb[0].mxu0 %v2494
    %v3515 = vpop.f32.mrb[0].mxu0
    %v3516 = vadd.f32 %v3291, %v3515
    %v3517 = vpop.f32.mrb[0].mxu0
    %v3518 = vpop.f32.mrb[0].mxu0
    %v3519 = vadd.f32 %v3294, %v3518
    %v3520 = vpop.f32.mrb[0].mxu0
    %3521 = vmatprep.mubr.bf16.mxu0 %v2513
    %3522 = vmatmul.mubr.bf16.gmra.mrb[0].mxu0 %v2512
    %v3523 = vpop.f32.mrb[0].mxu0
    %v3524 = vadd.f32 %v3299, %v3523
    %v3525 = vpop.f32.mrb[0].mxu0
    %v3526 = vpop.f32.mrb[0].mxu0
    %v3527 = vadd.f32 %v3302, %v3526
    %v3528 = vpop.f32.mrb[0].mxu0
    %3529 = vmatprep.mubr.bf16.mxu0 %v2531
    %3530 = vmatmul.mubr.bf16.gmra.mrb[0].mxu0 %v2530
    %v3531 = vpop.f32.mrb[0].mxu0
    %v3532 = vadd.f32 %v3307, %v3531
    %v3533 = vpop.f32.mrb[0].mxu0
    %v3534 = vpop.f32.mrb[0].mxu0
    %v3535 = vadd.f32 %v3310, %v3534
    %v3536 = vpop.f32.mrb[0].mxu0
    %3537 = vmatprep.mubr.bf16.mxu0 %v2549
    %3538 = vmatmul.mubr.bf16.gmra.mrb[0].mxu0 %v2548
    %v3539 = vpop.f32.mrb[0].mxu0
    %v3540 = vadd.f32 %v3315, %v3539
    %v3541 = vpop.f32.mrb[0].mxu0
    %v3542 = vpop.f32.mrb[0].mxu0
    %v3543 = vadd.f32 %v3318, %v3542
    %v3544 = vpop.f32.mrb[0].mxu0
    %3545 = vmatprep.mubr.bf16.mxu0 %v2567
    %3546 = vmatmul.mubr.bf16.gmra.mrb[0].mxu0 %v2566
    %v3547 = vpop.f32.mrb[0].mxu0
    %v3548 = vadd.f32 %v3323, %v3547
    %v3549 = vpop.f32.mrb[0].mxu0
    %v3550 = vpop.f32.mrb[0].mxu0
    %v3551 = vadd.f32 %v3326, %v3550
    %v3552 = vpop.f32.mrb[0].mxu0
    %3553 = vmatprep.mubr.bf16.mxu0 %v2585
    %3554 = vmatmul.mubr.bf16.gmra.mrb[0].mxu0 %v2584
    %v3555 = vpop.f32.mrb[0].mxu0
    %v3556 = vadd.f32 %v3331, %v3555
    %v3557 = vpop.f32.mrb[0].mxu0
    %v3558 = vpop.f32.mrb[0].mxu0
    %v3559 = vadd.f32 %v3334, %v3558
    %v3560 = vpop.f32.mrb[0].mxu0
    %3561 = vmatprep.mubr.bf16.mxu0 %v2603
    %3562 = vmatmul.mubr.bf16.gmra.mrb[0].mxu0 %v2602
    %v3563 = vpop.f32.mrb[0].mxu0
    %v3564 = vadd.f32 %v3339, %v3563
    %v3565 = vpop.f32.mrb[0].mxu0
    %v3566 = vpop.f32.mrb[0].mxu0
    %v3567 = vadd.f32 %v3342, %v3566
    %v3568 = vpop.f32.mrb[0].mxu0
    %3569 = vmatprep.mubr.bf16.mxu0 %v2621
    %3570 = vmatmul.mubr.bf16.gmra.mrb[0].mxu0 %v2620
    %v3571 = vpop.f32.mrb[0].mxu0
    %v3572 = vadd.f32 %v3347, %v3571
    %v3573 = vpop.f32.mrb[0].mxu0
    %v3574 = vpop.f32.mrb[0].mxu0
    %v3575 = vadd.f32 %v3350, %v3574
    %v3576 = vpop.f32.mrb[0].mxu0
    %3577 = vmatprep.mubr.bf16.mxu0 %v2639
    %3578 = vmatmul.mubr.bf16.gmra.mrb[0].mxu0 %v2638
    %v3579 = vpop.f32.mrb[0].mxu0
    %v3580 = vadd.f32 %v3355, %v3579
    %v3581 = vpop.f32.mrb[0].mxu0
    %v3582 = vpop.f32.mrb[0].mxu0
    %v3583 = vadd.f32 %v3358, %v3582
    %v3584 = vpop.f32.mrb[0].mxu0
    %3585 = vmatprep.mubr.bf16.mxu0 %v2657
    %3586 = vmatmul.mubr.bf16.gmra.mrb[0].mxu0 %v2656
    %v3587 = vpop.f32.mrb[0].mxu0
    %v3588 = vadd.f32 %v3363, %v3587
    %v3589 = vpop.f32.mrb[0].mxu0
    %v3590 = vpop.f32.mrb[0].mxu0
    %v3591 = vadd.f32 %v3366, %v3590
    %v3592 = vpop.f32.mrb[0].mxu0
    %3593 = vmatprep.mubr.bf16.mxu0 %v2675
    %3594 = vmatmul.mubr.bf16.gmra.mrb[0].mxu0 %v2674
    %v3595 = vpop.f32.mrb[0].mxu0
    %v3596 = vadd.f32 %v3371, %v3595
    %v3597 = vpop.f32.mrb[0].mxu0
    %v3598 = vpop.f32.mrb[0].mxu0
    %v3599 = vadd.f32 %v3374, %v3598
    %v3600 = vpop.f32.mrb[0].mxu0
    %3601 = vmatprep.mubr.bf16.mxu0 %v2693
    %3602 = vmatmul.mubr.bf16.gmra.mrb[0].mxu0 %v2692
    %v3603 = vpop.f32.mrb[0].mxu0
    %v3604 = vadd.f32 %v3379, %v3603
    %v3605 = vpop.f32.mrb[0].mxu0
    %v3606 = vpop.f32.mrb[0].mxu0
    %v3607 = vadd.f32 %v3382, %v3606
    %v3608 = vpop.f32.mrb[0].mxu0
    %3609 = vmatprep.mubr.bf16.mxu0 %v2711
    %3610 = vmatmul.mubr.bf16.gmra.mrb[0].mxu0 %v2710
    %v3611 = vpop.f32.mrb[0].mxu0
    %v3612 = vadd.f32 %v3387, %v3611
    %v3613 = vpop.f32.mrb[0].mxu0
    %v3614 = vpop.f32.mrb[0].mxu0
    %v3615 = vadd.f32 %v3390, %v3614
    %v3616 = vpop.f32.mrb[0].mxu0
    %3617 = vmatprep.mubr.bf16.mxu0 %v2729
    %3618 = vmatmul.mubr.bf16.gmra.mrb[0].mxu0 %v2728
    %v3619 = vpop.f32.mrb[0].mxu0
    %v3620 = vadd.f32 %v3395, %v3619
    %v3621 = vpop.f32.mrb[0].mxu0
    %v3622 = vpop.f32.mrb[0].mxu0
    %v3623 = vadd.f32 %v3398, %v3622
    %v3624 = vpop.f32.mrb[0].mxu0
    %3625 = vdwg.mxu0
    %3626 = vmatprep.subr.bf16.mxu0 0
    %3627 = vmatpush1.bf16.msra.mxu0 %v3064
    %3628 = vmatprep.subr.bf16.mxu0 0
    %3629 = vmatpush1.bf16.msra.mxu0 %v3065
    %3630 = vmatprep.subr.bf16.mxu0 0
    %3631 = vmatpush1.bf16.msra.mxu0 %v3066
    %3632 = vmatprep.subr.bf16.mxu0 0
    %3633 = vmatpush1.bf16.msra.mxu0 %v3067
    %3634 = vmatprep.subr.bf16.mxu0 0
    %3635 = vmatpush1.bf16.msra.mxu0 %v3068
    %3636 = vmatprep.subr.bf16.mxu0 0
    %3637 = vmatpush1.bf16.msra.mxu0 %v3069
    %3638 = vmatprep.subr.bf16.mxu0 0
    %3639 = vmatpush1.bf16.msra.mxu0 %v3070
    %3640 = vmatprep.subr.bf16.mxu0 0
    %3641 = vmatpush1.bf16.msra.mxu0 %v3071
    %3642 = vmatprep.subr.bf16.mxu0 0
    %3643 = vmatpush1.bf16.msra.mxu0 %v3072
    %3644 = vmatprep.subr.bf16.mxu0 0
    %3645 = vmatpush1.bf16.msra.mxu0 %v3073
    %3646 = vmatprep.subr.bf16.mxu0 0
    %3647 = vmatpush1.bf16.msra.mxu0 %v3074
    %3648 = vmatprep.subr.bf16.mxu0 0
    %3649 = vmatpush1.bf16.msra.mxu0 %v3075
    %3650 = vmatprep.subr.bf16.mxu0 0
    %3651 = vmatpush1.bf16.msra.mxu0 %v3076
    %3652 = vmatprep.subr.bf16.mxu0 0
    %3653 = vmatpush1.bf16.msra.mxu0 %v3077
    %3654 = vmatprep.subr.bf16.mxu0 0
    %3655 = vmatpush1.bf16.msra.mxu0 %v3078
    %3656 = vmatprep.subr.bf16.mxu0 0
    %3657 = vmatpush1.bf16.msra.mxu0 %v3079
    %3658 = vmatprep.mubr.bf16.mxu0 %v2317
    %3659 = vmatmul.mubr.bf16.gmra.mrb[0].mxu0 %v2316
    %v3660 = vpop.f32.mrb[0].mxu0
    %v3661 = vadd.f32 %v3436, %v3660
    %v3662 = vpop.f32.mrb[0].mxu0
    %v3663 = vpop.f32.mrb[0].mxu0
    %v3664 = vadd.f32 %v3439, %v3663
    %v3665 = vpop.f32.mrb[0].mxu0
    %3666 = vmatprep.mubr.bf16.mxu0 %v2335
    %3667 = vmatmul.mubr.bf16.gmra.mrb[0].mxu0 %v2334
    %v3668 = vpop.f32.mrb[0].mxu0
    %v3669 = vadd.f32 %v3444, %v3668
    %v3670 = vpop.f32.mrb[0].mxu0
    %v3671 = vpop.f32.mrb[0].mxu0
    %v3672 = vadd.f32 %v3447, %v3671
    %v3673 = vpop.f32.mrb[0].mxu0
    %3674 = vmatprep.mubr.bf16.mxu0 %v2353
    %3675 = vmatmul.mubr.bf16.gmra.mrb[0].mxu0 %v2352
    %v3676 = vpop.f32.mrb[0].mxu0
    %v3677 = vadd.f32 %v3452, %v3676
    %v3678 = vpop.f32.mrb[0].mxu0
    %v3679 = vpop.f32.mrb[0].mxu0
    %v3680 = vadd.f32 %v3455, %v3679
    %v3681 = vpop.f32.mrb[0].mxu0
    %3682 = vmatprep.mubr.bf16.mxu0 %v2371
    %3683 = vmatmul.mubr.bf16.gmra.mrb[0].mxu0 %v2370
    %v3684 = vpop.f32.mrb[0].mxu0
    %v3685 = vadd.f32 %v3460, %v3684
    %v3686 = vpop.f32.mrb[0].mxu0
    %v3687 = vpop.f32.mrb[0].mxu0
    %v3688 = vadd.f32 %v3463, %v3687
    %v3689 = vpop.f32.mrb[0].mxu0
    %3690 = vmatprep.mubr.bf16.mxu0 %v2389
    %3691 = vmatmul.mubr.bf16.gmra.mrb[0].mxu0 %v2388
    %v3692 = vpop.f32.mrb[0].mxu0
    %v3693 = vadd.f32 %v3468, %v3692
    %v3694 = vpop.f32.mrb[0].mxu0
    %v3695 = vpop.f32.mrb[0].mxu0
    %v3696 = vadd.f32 %v3471, %v3695
    %v3697 = vpop.f32.mrb[0].mxu0
    %3698 = vmatprep.mubr.bf16.mxu0 %v2407
    %3699 = vmatmul.mubr.bf16.gmra.mrb[0].mxu0 %v2406
    %v3700 = vpop.f32.mrb[0].mxu0
    %v3701 = vadd.f32 %v3476, %v3700
    %v3702 = vpop.f32.mrb[0].mxu0
    %v3703 = vpop.f32.mrb[0].mxu0
    %v3704 = vadd.f32 %v3479, %v3703
    %v3705 = vpop.f32.mrb[0].mxu0
    %3706 = vmatprep.mubr.bf16.mxu0 %v2425
    %3707 = vmatmul.mubr.bf16.gmra.mrb[0].mxu0 %v2424
    %v3708 = vpop.f32.mrb[0].mxu0
    %v3709 = vadd.f32 %v3484, %v3708
    %v3710 = vpop.f32.mrb[0].mxu0
    %v3711 = vpop.f32.mrb[0].mxu0
    %v3712 = vadd.f32 %v3487, %v3711
    %v3713 = vpop.f32.mrb[0].mxu0
    %3714 = vmatprep.mubr.bf16.mxu0 %v2443
    %3715 = vmatmul.mubr.bf16.gmra.mrb[0].mxu0 %v2442
    %v3716 = vpop.f32.mrb[0].mxu0
    %v3717 = vadd.f32 %v3492, %v3716
    %v3718 = vpop.f32.mrb[0].mxu0
    %v3719 = vpop.f32.mrb[0].mxu0
    %v3720 = vadd.f32 %v3495, %v3719
    %v3721 = vpop.f32.mrb[0].mxu0
    %3722 = vmatprep.mubr.bf16.mxu0 %v2461
    %3723 = vmatmul.mubr.bf16.gmra.mrb[0].mxu0 %v2460
    %v3724 = vpop.f32.mrb[0].mxu0
    %v3725 = vadd.f32 %v3500, %v3724
    %v3726 = vpop.f32.mrb[0].mxu0
    %v3727 = vpop.f32.mrb[0].mxu0
    %v3728 = vadd.f32 %v3503, %v3727
    %v3729 = vpop.f32.mrb[0].mxu0
    %3730 = vmatprep.mubr.bf16.mxu0 %v2479
    %3731 = vmatmul.mubr.bf16.gmra.mrb[0].mxu0 %v2478
    %v3732 = vpop.f32.mrb[0].mxu0
    %v3733 = vadd.f32 %v3508, %v3732
    %v3734 = vpop.f32.mrb[0].mxu0
    %v3735 = vpop.f32.mrb[0].mxu0
    %v3736 = vadd.f32 %v3511, %v3735
    %v3737 = vpop.f32.mrb[0].mxu0
    %3738 = vmatprep.mubr.bf16.mxu0 %v2497
    %3739 = vmatmul.mubr.bf16.gmra.mrb[0].mxu0 %v2496
    %v3740 = vpop.f32.mrb[0].mxu0
    %v3741 = vadd.f32 %v3516, %v3740
    %v3742 = vpop.f32.mrb[0].mxu0
    %v3743 = vpop.f32.mrb[0].mxu0
    %v3744 = vadd.f32 %v3519, %v3743
    %v3745 = vpop.f32.mrb[0].mxu0
    %3746 = vmatprep.mubr.bf16.mxu0 %v2515
    %3747 = vmatmul.mubr.bf16.gmra.mrb[0].mxu0 %v2514
    %v3748 = vpop.f32.mrb[0].mxu0
    %v3749 = vadd.f32 %v3524, %v3748
    %v3750 = vpop.f32.mrb[0].mxu0
    %v3751 = vpop.f32.mrb[0].mxu0
    %v3752 = vadd.f32 %v3527, %v3751
    %v3753 = vpop.f32.mrb[0].mxu0
    %3754 = vmatprep.mubr.bf16.mxu0 %v2533
    %3755 = vmatmul.mubr.bf16.gmra.mrb[0].mxu0 %v2532
    %v3756 = vpop.f32.mrb[0].mxu0
    %v3757 = vadd.f32 %v3532, %v3756
    %v3758 = vpop.f32.mrb[0].mxu0
    %v3759 = vpop.f32.mrb[0].mxu0
    %v3760 = vadd.f32 %v3535, %v3759
    %v3761 = vpop.f32.mrb[0].mxu0
    %3762 = vmatprep.mubr.bf16.mxu0 %v2551
    %3763 = vmatmul.mubr.bf16.gmra.mrb[0].mxu0 %v2550
    %v3764 = vpop.f32.mrb[0].mxu0
    %v3765 = vadd.f32 %v3540, %v3764
    %v3766 = vpop.f32.mrb[0].mxu0
    %v3767 = vpop.f32.mrb[0].mxu0
    %v3768 = vadd.f32 %v3543, %v3767
    %v3769 = vpop.f32.mrb[0].mxu0
    %3770 = vmatprep.mubr.bf16.mxu0 %v2569
    %3771 = vmatmul.mubr.bf16.gmra.mrb[0].mxu0 %v2568
    %v3772 = vpop.f32.mrb[0].mxu0
    %v3773 = vadd.f32 %v3548, %v3772
    %v3774 = vpop.f32.mrb[0].mxu0
    %v3775 = vpop.f32.mrb[0].mxu0
    %v3776 = vadd.f32 %v3551, %v3775
    %v3777 = vpop.f32.mrb[0].mxu0
    %3778 = vmatprep.mubr.bf16.mxu0 %v2587
    %3779 = vmatmul.mubr.bf16.gmra.mrb[0].mxu0 %v2586
    %v3780 = vpop.f32.mrb[0].mxu0
    %v3781 = vadd.f32 %v3556, %v3780
    %v3782 = vpop.f32.mrb[0].mxu0
    %v3783 = vpop.f32.mrb[0].mxu0
    %v3784 = vadd.f32 %v3559, %v3783
    %v3785 = vpop.f32.mrb[0].mxu0
    %3786 = vmatprep.mubr.bf16.mxu0 %v2605
    %3787 = vmatmul.mubr.bf16.gmra.mrb[0].mxu0 %v2604
    %v3788 = vpop.f32.mrb[0].mxu0
    %v3789 = vadd.f32 %v3564, %v3788
    %v3790 = vpop.f32.mrb[0].mxu0
    %v3791 = vpop.f32.mrb[0].mxu0
    %v3792 = vadd.f32 %v3567, %v3791
    %v3793 = vpop.f32.mrb[0].mxu0
    %3794 = vmatprep.mubr.bf16.mxu0 %v2623
    %3795 = vmatmul.mubr.bf16.gmra.mrb[0].mxu0 %v2622
    %v3796 = vpop.f32.mrb[0].mxu0
    %v3797 = vadd.f32 %v3572, %v3796
    %v3798 = vpop.f32.mrb[0].mxu0
    %v3799 = vpop.f32.mrb[0].mxu0
    %v3800 = vadd.f32 %v3575, %v3799
    %v3801 = vpop.f32.mrb[0].mxu0
    %3802 = vmatprep.mubr.bf16.mxu0 %v2641
    %3803 = vmatmul.mubr.bf16.gmra.mrb[0].mxu0 %v2640
    %v3804 = vpop.f32.mrb[0].mxu0
    %v3805 = vadd.f32 %v3580, %v3804
    %v3806 = vpop.f32.mrb[0].mxu0
    %v3807 = vpop.f32.mrb[0].mxu0
    %v3808 = vadd.f32 %v3583, %v3807
    %v3809 = vpop.f32.mrb[0].mxu0
    %3810 = vmatprep.mubr.bf16.mxu0 %v2659
    %3811 = vmatmul.mubr.bf16.gmra.mrb[0].mxu0 %v2658
    %v3812 = vpop.f32.mrb[0].mxu0
    %v3813 = vadd.f32 %v3588, %v3812
    %v3814 = vpop.f32.mrb[0].mxu0
    %v3815 = vpop.f32.mrb[0].mxu0
    %v3816 = vadd.f32 %v3591, %v3815
    %v3817 = vpop.f32.mrb[0].mxu0
    %3818 = vmatprep.mubr.bf16.mxu0 %v2677
    %3819 = vmatmul.mubr.bf16.gmra.mrb[0].mxu0 %v2676
    %v3820 = vpop.f32.mrb[0].mxu0
    %v3821 = vadd.f32 %v3596, %v3820
    %v3822 = vpop.f32.mrb[0].mxu0
    %v3823 = vpop.f32.mrb[0].mxu0
    %v3824 = vadd.f32 %v3599, %v3823
    %v3825 = vpop.f32.mrb[0].mxu0
    %3826 = vmatprep.mubr.bf16.mxu0 %v2695
    %3827 = vmatmul.mubr.bf16.gmra.mrb[0].mxu0 %v2694
    %v3828 = vpop.f32.mrb[0].mxu0
    %v3829 = vadd.f32 %v3604, %v3828
    %v3830 = vpop.f32.mrb[0].mxu0
    %v3831 = vpop.f32.mrb[0].mxu0
    %v3832 = vadd.f32 %v3607, %v3831
    %v3833 = vpop.f32.mrb[0].mxu0
    %3834 = vmatprep.mubr.bf16.mxu0 %v2713
    %3835 = vmatmul.mubr.bf16.gmra.mrb[0].mxu0 %v2712
    %v3836 = vpop.f32.mrb[0].mxu0
    %v3837 = vadd.f32 %v3612, %v3836
    %v3838 = vpop.f32.mrb[0].mxu0
    %v3839 = vpop.f32.mrb[0].mxu0
    %v3840 = vadd.f32 %v3615, %v3839
    %v3841 = vpop.f32.mrb[0].mxu0
    %3842 = vmatprep.mubr.bf16.mxu0 %v2731
    %3843 = vmatmul.mubr.bf16.gmra.mrb[0].mxu0 %v2730
    %v3844 = vpop.f32.mrb[0].mxu0
    %v3845 = vadd.f32 %v3620, %v3844
    %v3846 = vpop.f32.mrb[0].mxu0
    %v3847 = vpop.f32.mrb[0].mxu0
    %v3848 = vadd.f32 %v3623, %v3847
    %v3849 = vpop.f32.mrb[0].mxu0
    %3850 = vdwg.mxu0
    %3851 = vmatprep.subr.bf16.mxu0 0
    %3852 = vmatpush1.bf16.msra.mxu0 %v3080
    %3853 = vmatprep.subr.bf16.mxu0 0
    %3854 = vmatpush1.bf16.msra.mxu0 %v3081
    %3855 = vmatprep.subr.bf16.mxu0 0
    %3856 = vmatpush1.bf16.msra.mxu0 %v3082
    %3857 = vmatprep.subr.bf16.mxu0 0
    %3858 = vmatpush1.bf16.msra.mxu0 %v3083
    %3859 = vmatprep.subr.bf16.mxu0 0
    %3860 = vmatpush1.bf16.msra.mxu0 %v3084
    %3861 = vmatprep.subr.bf16.mxu0 0
    %3862 = vmatpush1.bf16.msra.mxu0 %v3085
    %3863 = vmatprep.subr.bf16.mxu0 0
    %3864 = vmatpush1.bf16.msra.mxu0 %v3086
    %3865 = vmatprep.subr.bf16.mxu0 0
    %3866 = vmatpush1.bf16.msra.mxu0 %v3087
    %3867 = vmatprep.subr.bf16.mxu0 0
    %3868 = vmatpush1.bf16.msra.mxu0 %v3088
    %3869 = vmatprep.subr.bf16.mxu0 0
    %3870 = vmatpush1.bf16.msra.mxu0 %v3089
    %3871 = vmatprep.subr.bf16.mxu0 0
    %3872 = vmatpush1.bf16.msra.mxu0 %v3090
    %3873 = vmatprep.subr.bf16.mxu0 0
    %3874 = vmatpush1.bf16.msra.mxu0 %v3091
    %3875 = vmatprep.subr.bf16.mxu0 0
    %3876 = vmatpush1.bf16.msra.mxu0 %v3092
    %3877 = vmatprep.subr.bf16.mxu0 0
    %3878 = vmatpush1.bf16.msra.mxu0 %v3093
    %3879 = vmatprep.subr.bf16.mxu0 0
    %3880 = vmatpush1.bf16.msra.mxu0 %v3094
    %3881 = vmatprep.subr.bf16.mxu0 0
    %3882 = vmatpush1.bf16.msra.mxu0 %v3095
    %3883 = vmatprep.mubr.bf16.mxu0 %v2319
    %3884 = vmatmul.mubr.bf16.gmra.mrb[0].mxu0 %v2318
    %v3885 = vpop.f32.mrb[0].mxu0
    %v3886 = vadd.f32 %v3661, %v3885
    %v3887 = vpop.f32.mrb[0].mxu0
    %v3888 = vpop.f32.mrb[0].mxu0
    %v3889 = vadd.f32 %v3664, %v3888
    %v3890 = vpop.f32.mrb[0].mxu0
    %3891 = vmatprep.mubr.bf16.mxu0 %v2337
    %3892 = vmatmul.mubr.bf16.gmra.mrb[0].mxu0 %v2336
    %v3893 = vpop.f32.mrb[0].mxu0
    %v3894 = vadd.f32 %v3669, %v3893
    %v3895 = vpop.f32.mrb[0].mxu0
    %v3896 = vpop.f32.mrb[0].mxu0
    %v3897 = vadd.f32 %v3672, %v3896
    %v3898 = vpop.f32.mrb[0].mxu0
    %3899 = vmatprep.mubr.bf16.mxu0 %v2355
    %3900 = vmatmul.mubr.bf16.gmra.mrb[0].mxu0 %v2354
    %v3901 = vpop.f32.mrb[0].mxu0
    %v3902 = vadd.f32 %v3677, %v3901
    %v3903 = vpop.f32.mrb[0].mxu0
    %v3904 = vpop.f32.mrb[0].mxu0
    %v3905 = vadd.f32 %v3680, %v3904
    %v3906 = vpop.f32.mrb[0].mxu0
    %3907 = vmatprep.mubr.bf16.mxu0 %v2373
    %3908 = vmatmul.mubr.bf16.gmra.mrb[0].mxu0 %v2372
    %v3909 = vpop.f32.mrb[0].mxu0
    %v3910 = vadd.f32 %v3685, %v3909
    %v3911 = vpop.f32.mrb[0].mxu0
    %v3912 = vpop.f32.mrb[0].mxu0
    %v3913 = vadd.f32 %v3688, %v3912
    %v3914 = vpop.f32.mrb[0].mxu0
    %3915 = vmatprep.mubr.bf16.mxu0 %v2391
    %3916 = vmatmul.mubr.bf16.gmra.mrb[0].mxu0 %v2390
    %v3917 = vpop.f32.mrb[0].mxu0
    %v3918 = vadd.f32 %v3693, %v3917
    %v3919 = vpop.f32.mrb[0].mxu0
    %v3920 = vpop.f32.mrb[0].mxu0
    %v3921 = vadd.f32 %v3696, %v3920
    %v3922 = vpop.f32.mrb[0].mxu0
    %3923 = vmatprep.mubr.bf16.mxu0 %v2409
    %3924 = vmatmul.mubr.bf16.gmra.mrb[0].mxu0 %v2408
    %v3925 = vpop.f32.mrb[0].mxu0
    %v3926 = vadd.f32 %v3701, %v3925
    %v3927 = vpop.f32.mrb[0].mxu0
    %v3928 = vpop.f32.mrb[0].mxu0
    %v3929 = vadd.f32 %v3704, %v3928
    %v3930 = vpop.f32.mrb[0].mxu0
    %3931 = vmatprep.mubr.bf16.mxu0 %v2427
    %3932 = vmatmul.mubr.bf16.gmra.mrb[0].mxu0 %v2426
    %v3933 = vpop.f32.mrb[0].mxu0
    %v3934 = vadd.f32 %v3709, %v3933
    %v3935 = vpop.f32.mrb[0].mxu0
    %v3936 = vpop.f32.mrb[0].mxu0
    %v3937 = vadd.f32 %v3712, %v3936
    %v3938 = vpop.f32.mrb[0].mxu0
    %3939 = vmatprep.mubr.bf16.mxu0 %v2445
    %3940 = vmatmul.mubr.bf16.gmra.mrb[0].mxu0 %v2444
    %v3941 = vpop.f32.mrb[0].mxu0
    %v3942 = vadd.f32 %v3717, %v3941
    %v3943 = vpop.f32.mrb[0].mxu0
    %v3944 = vpop.f32.mrb[0].mxu0
    %v3945 = vadd.f32 %v3720, %v3944
    %v3946 = vpop.f32.mrb[0].mxu0
    %3947 = vmatprep.mubr.bf16.mxu0 %v2463
    %3948 = vmatmul.mubr.bf16.gmra.mrb[0].mxu0 %v2462
    %v3949 = vpop.f32.mrb[0].mxu0
    %v3950 = vadd.f32 %v3725, %v3949
    %v3951 = vpop.f32.mrb[0].mxu0
    %v3952 = vpop.f32.mrb[0].mxu0
    %v3953 = vadd.f32 %v3728, %v3952
    %v3954 = vpop.f32.mrb[0].mxu0
    %3955 = vmatprep.mubr.bf16.mxu0 %v2481
    %3956 = vmatmul.mubr.bf16.gmra.mrb[0].mxu0 %v2480
    %v3957 = vpop.f32.mrb[0].mxu0
    %v3958 = vadd.f32 %v3733, %v3957
    %v3959 = vpop.f32.mrb[0].mxu0
    %v3960 = vpop.f32.mrb[0].mxu0
    %v3961 = vadd.f32 %v3736, %v3960
    %v3962 = vpop.f32.mrb[0].mxu0
    %3963 = vmatprep.mubr.bf16.mxu0 %v2499
    %3964 = vmatmul.mubr.bf16.gmra.mrb[0].mxu0 %v2498
    %v3965 = vpop.f32.mrb[0].mxu0
    %v3966 = vadd.f32 %v3741, %v3965
    %v3967 = vpop.f32.mrb[0].mxu0
    %v3968 = vpop.f32.mrb[0].mxu0
    %v3969 = vadd.f32 %v3744, %v3968
    %v3970 = vpop.f32.mrb[0].mxu0
    %3971 = vmatprep.mubr.bf16.mxu0 %v2517
    %3972 = vmatmul.mubr.bf16.gmra.mrb[0].mxu0 %v2516
    %v3973 = vpop.f32.mrb[0].mxu0
    %v3974 = vadd.f32 %v3749, %v3973
    %v3975 = vpop.f32.mrb[0].mxu0
    %v3976 = vpop.f32.mrb[0].mxu0
    %v3977 = vadd.f32 %v3752, %v3976
    %v3978 = vpop.f32.mrb[0].mxu0
    %3979 = vmatprep.mubr.bf16.mxu0 %v2535
    %3980 = vmatmul.mubr.bf16.gmra.mrb[0].mxu0 %v2534
    %v3981 = vpop.f32.mrb[0].mxu0
    %v3982 = vadd.f32 %v3757, %v3981
    %v3983 = vpop.f32.mrb[0].mxu0
    %v3984 = vpop.f32.mrb[0].mxu0
    %v3985 = vadd.f32 %v3760, %v3984
    %v3986 = vpop.f32.mrb[0].mxu0
    %3987 = vmatprep.mubr.bf16.mxu0 %v2553
    %3988 = vmatmul.mubr.bf16.gmra.mrb[0].mxu0 %v2552
    %v3989 = vpop.f32.mrb[0].mxu0
    %v3990 = vadd.f32 %v3765, %v3989
    %v3991 = vpop.f32.mrb[0].mxu0
    %v3992 = vpop.f32.mrb[0].mxu0
    %v3993 = vadd.f32 %v3768, %v3992
    %v3994 = vpop.f32.mrb[0].mxu0
    %3995 = vmatprep.mubr.bf16.mxu0 %v2571
    %3996 = vmatmul.mubr.bf16.gmra.mrb[0].mxu0 %v2570
    %v3997 = vpop.f32.mrb[0].mxu0
    %v3998 = vadd.f32 %v3773, %v3997
    %v3999 = vpop.f32.mrb[0].mxu0
    %v4000 = vpop.f32.mrb[0].mxu0
    %v4001 = vadd.f32 %v3776, %v4000
    %v4002 = vpop.f32.mrb[0].mxu0
    %4003 = vmatprep.mubr.bf16.mxu0 %v2589
    %4004 = vmatmul.mubr.bf16.gmra.mrb[0].mxu0 %v2588
    %v4005 = vpop.f32.mrb[0].mxu0
    %v4006 = vadd.f32 %v3781, %v4005
    %v4007 = vpop.f32.mrb[0].mxu0
    %v4008 = vpop.f32.mrb[0].mxu0
    %v4009 = vadd.f32 %v3784, %v4008
    %v4010 = vpop.f32.mrb[0].mxu0
    %4011 = vmatprep.mubr.bf16.mxu0 %v2607
    %4012 = vmatmul.mubr.bf16.gmra.mrb[0].mxu0 %v2606
    %v4013 = vpop.f32.mrb[0].mxu0
    %v4014 = vadd.f32 %v3789, %v4013
    %v4015 = vpop.f32.mrb[0].mxu0
    %v4016 = vpop.f32.mrb[0].mxu0
    %v4017 = vadd.f32 %v3792, %v4016
    %v4018 = vpop.f32.mrb[0].mxu0
    %4019 = vmatprep.mubr.bf16.mxu0 %v2625
    %4020 = vmatmul.mubr.bf16.gmra.mrb[0].mxu0 %v2624
    %v4021 = vpop.f32.mrb[0].mxu0
    %v4022 = vadd.f32 %v3797, %v4021
    %v4023 = vpop.f32.mrb[0].mxu0
    %v4024 = vpop.f32.mrb[0].mxu0
    %v4025 = vadd.f32 %v3800, %v4024
    %v4026 = vpop.f32.mrb[0].mxu0
    %4027 = vmatprep.mubr.bf16.mxu0 %v2643
    %4028 = vmatmul.mubr.bf16.gmra.mrb[0].mxu0 %v2642
    %v4029 = vpop.f32.mrb[0].mxu0
    %v4030 = vadd.f32 %v3805, %v4029
    %v4031 = vpop.f32.mrb[0].mxu0
    %v4032 = vpop.f32.mrb[0].mxu0
    %v4033 = vadd.f32 %v3808, %v4032
    %v4034 = vpop.f32.mrb[0].mxu0
    %4035 = vmatprep.mubr.bf16.mxu0 %v2661
    %4036 = vmatmul.mubr.bf16.gmra.mrb[0].mxu0 %v2660
    %v4037 = vpop.f32.mrb[0].mxu0
    %v4038 = vadd.f32 %v3813, %v4037
    %v4039 = vpop.f32.mrb[0].mxu0
    %v4040 = vpop.f32.mrb[0].mxu0
    %v4041 = vadd.f32 %v3816, %v4040
    %v4042 = vpop.f32.mrb[0].mxu0
    %4043 = vmatprep.mubr.bf16.mxu0 %v2679
    %4044 = vmatmul.mubr.bf16.gmra.mrb[0].mxu0 %v2678
    %v4045 = vpop.f32.mrb[0].mxu0
    %v4046 = vadd.f32 %v3821, %v4045
    %v4047 = vpop.f32.mrb[0].mxu0
    %v4048 = vpop.f32.mrb[0].mxu0
    %v4049 = vadd.f32 %v3824, %v4048
    %v4050 = vpop.f32.mrb[0].mxu0
    %4051 = vmatprep.mubr.bf16.mxu0 %v2697
    %4052 = vmatmul.mubr.bf16.gmra.mrb[0].mxu0 %v2696
    %v4053 = vpop.f32.mrb[0].mxu0
    %v4054 = vadd.f32 %v3829, %v4053
    %v4055 = vpop.f32.mrb[0].mxu0
    %v4056 = vpop.f32.mrb[0].mxu0
    %v4057 = vadd.f32 %v3832, %v4056
    %v4058 = vpop.f32.mrb[0].mxu0
    %4059 = vmatprep.mubr.bf16.mxu0 %v2715
    %4060 = vmatmul.mubr.bf16.gmra.mrb[0].mxu0 %v2714
    %v4061 = vpop.f32.mrb[0].mxu0
    %v4062 = vadd.f32 %v3837, %v4061
    %v4063 = vpop.f32.mrb[0].mxu0
    %v4064 = vpop.f32.mrb[0].mxu0
    %v4065 = vadd.f32 %v3840, %v4064
    %v4066 = vpop.f32.mrb[0].mxu0
    %4067 = vmatprep.mubr.bf16.mxu0 %v2733
    %4068 = vmatmul.mubr.bf16.gmra.mrb[0].mxu0 %v2732
    %v4069 = vpop.f32.mrb[0].mxu0
    %v4070 = vadd.f32 %v3845, %v4069
    %v4071 = vpop.f32.mrb[0].mxu0
    %v4072 = vpop.f32.mrb[0].mxu0
    %v4073 = vadd.f32 %v3848, %v4072
    %v4074 = vpop.f32.mrb[0].mxu0
    %4075 = vdwg.mxu0
    %4076 = vmatprep.subr.bf16.mxu0 0
    %4077 = vmatpush1.bf16.msra.mxu0 %v3096
    %4078 = vmatprep.subr.bf16.mxu0 0
    %4079 = vmatpush1.bf16.msra.mxu0 %v3097
    %4080 = vmatprep.subr.bf16.mxu0 0
    %4081 = vmatpush1.bf16.msra.mxu0 %v3098
    %4082 = vmatprep.subr.bf16.mxu0 0
    %4083 = vmatpush1.bf16.msra.mxu0 %v3099
    %4084 = vmatprep.subr.bf16.mxu0 0
    %4085 = vmatpush1.bf16.msra.mxu0 %v3100
    %4086 = vmatprep.subr.bf16.mxu0 0
    %4087 = vmatpush1.bf16.msra.mxu0 %v3101
    %4088 = vmatprep.subr.bf16.mxu0 0
    %4089 = vmatpush1.bf16.msra.mxu0 %v3102
    %4090 = vmatprep.subr.bf16.mxu0 0
    %4091 = vmatpush1.bf16.msra.mxu0 %v3103
    %4092 = vmatprep.subr.bf16.mxu0 0
    %4093 = vmatpush1.bf16.msra.mxu0 %v3104
    %4094 = vmatprep.subr.bf16.mxu0 0
    %4095 = vmatpush1.bf16.msra.mxu0 %v3105
    %4096 = vmatprep.subr.bf16.mxu0 0
    %4097 = vmatpush1.bf16.msra.mxu0 %v3106
    %4098 = vmatprep.subr.bf16.mxu0 0
    %4099 = vmatpush1.bf16.msra.mxu0 %v3107
    %4100 = vmatprep.subr.bf16.mxu0 0
    %4101 = vmatpush1.bf16.msra.mxu0 %v3108
    %4102 = vmatprep.subr.bf16.mxu0 0
    %4103 = vmatpush1.bf16.msra.mxu0 %v3109
    %4104 = vmatprep.subr.bf16.mxu0 0
    %4105 = vmatpush1.bf16.msra.mxu0 %v3110
    %4106 = vmatprep.subr.bf16.mxu0 0
    %4107 = vmatpush1.bf16.msra.mxu0 %v3111
    %4108 = vmatprep.mubr.bf16.mxu0 %v2321
    %4109 = vmatmul.mubr.bf16.gmra.mrb[0].mxu0 %v2320
    %v4110 = vpop.f32.mrb[0].mxu0
    %v4111 = vadd.f32 %v3886, %v4110
    %v4112 = vpop.f32.mrb[0].mxu0
    %v4113 = vpop.f32.mrb[0].mxu0
    %v4114 = vadd.f32 %v3889, %v4113
    %v4115 = vpop.f32.mrb[0].mxu0
    %4116 = vmatprep.mubr.bf16.mxu0 %v2339
    %4117 = vmatmul.mubr.bf16.gmra.mrb[0].mxu0 %v2338
    %v4118 = vpop.f32.mrb[0].mxu0
    %v4119 = vadd.f32 %v3894, %v4118
    %v4120 = vpop.f32.mrb[0].mxu0
    %v4121 = vpop.f32.mrb[0].mxu0
    %v4122 = vadd.f32 %v3897, %v4121
    %v4123 = vpop.f32.mrb[0].mxu0
    %4124 = vmatprep.mubr.bf16.mxu0 %v2357
    %4125 = vmatmul.mubr.bf16.gmra.mrb[0].mxu0 %v2356
    %v4126 = vpop.f32.mrb[0].mxu0
    %v4127 = vadd.f32 %v3902, %v4126
    %v4128 = vpop.f32.mrb[0].mxu0
    %v4129 = vpop.f32.mrb[0].mxu0
    %v4130 = vadd.f32 %v3905, %v4129
    %v4131 = vpop.f32.mrb[0].mxu0
    %4132 = vmatprep.mubr.bf16.mxu0 %v2375
    %4133 = vmatmul.mubr.bf16.gmra.mrb[0].mxu0 %v2374
    %v4134 = vpop.f32.mrb[0].mxu0
    %v4135 = vadd.f32 %v3910, %v4134
    %v4136 = vpop.f32.mrb[0].mxu0
    %v4137 = vpop.f32.mrb[0].mxu0
    %v4138 = vadd.f32 %v3913, %v4137
    %v4139 = vpop.f32.mrb[0].mxu0
    %4140 = vmatprep.mubr.bf16.mxu0 %v2393
    %4141 = vmatmul.mubr.bf16.gmra.mrb[0].mxu0 %v2392
    %v4142 = vpop.f32.mrb[0].mxu0
    %v4143 = vadd.f32 %v3918, %v4142
    %v4144 = vpop.f32.mrb[0].mxu0
    %v4145 = vpop.f32.mrb[0].mxu0
    %v4146 = vadd.f32 %v3921, %v4145
    %v4147 = vpop.f32.mrb[0].mxu0
    %4148 = vmatprep.mubr.bf16.mxu0 %v2411
    %4149 = vmatmul.mubr.bf16.gmra.mrb[0].mxu0 %v2410
    %v4150 = vpop.f32.mrb[0].mxu0
    %v4151 = vadd.f32 %v3926, %v4150
    %v4152 = vpop.f32.mrb[0].mxu0
    %v4153 = vpop.f32.mrb[0].mxu0
    %v4154 = vadd.f32 %v3929, %v4153
    %v4155 = vpop.f32.mrb[0].mxu0
    %4156 = vmatprep.mubr.bf16.mxu0 %v2429
    %4157 = vmatmul.mubr.bf16.gmra.mrb[0].mxu0 %v2428
    %v4158 = vpop.f32.mrb[0].mxu0
    %v4159 = vadd.f32 %v3934, %v4158
    %v4160 = vpop.f32.mrb[0].mxu0
    %v4161 = vpop.f32.mrb[0].mxu0
    %v4162 = vadd.f32 %v3937, %v4161
    %v4163 = vpop.f32.mrb[0].mxu0
    %4164 = vmatprep.mubr.bf16.mxu0 %v2447
    %4165 = vmatmul.mubr.bf16.gmra.mrb[0].mxu0 %v2446
    %v4166 = vpop.f32.mrb[0].mxu0
    %v4167 = vadd.f32 %v3942, %v4166
    %v4168 = vpop.f32.mrb[0].mxu0
    %v4169 = vpop.f32.mrb[0].mxu0
    %v4170 = vadd.f32 %v3945, %v4169
    %v4171 = vpop.f32.mrb[0].mxu0
    %4172 = vmatprep.mubr.bf16.mxu0 %v2465
    %4173 = vmatmul.mubr.bf16.gmra.mrb[0].mxu0 %v2464
    %v4174 = vpop.f32.mrb[0].mxu0
    %v4175 = vadd.f32 %v3950, %v4174
    %v4176 = vpop.f32.mrb[0].mxu0
    %v4177 = vpop.f32.mrb[0].mxu0
    %v4178 = vadd.f32 %v3953, %v4177
    %v4179 = vpop.f32.mrb[0].mxu0
    %4180 = vmatprep.mubr.bf16.mxu0 %v2483
    %4181 = vmatmul.mubr.bf16.gmra.mrb[0].mxu0 %v2482
    %v4182 = vpop.f32.mrb[0].mxu0
    %v4183 = vadd.f32 %v3958, %v4182
    %v4184 = vpop.f32.mrb[0].mxu0
    %v4185 = vpop.f32.mrb[0].mxu0
    %v4186 = vadd.f32 %v3961, %v4185
    %v4187 = vpop.f32.mrb[0].mxu0
    %4188 = vmatprep.mubr.bf16.mxu0 %v2501
    %4189 = vmatmul.mubr.bf16.gmra.mrb[0].mxu0 %v2500
    %v4190 = vpop.f32.mrb[0].mxu0
    %v4191 = vadd.f32 %v3966, %v4190
    %v4192 = vpop.f32.mrb[0].mxu0
    %v4193 = vpop.f32.mrb[0].mxu0
    %v4194 = vadd.f32 %v3969, %v4193
    %v4195 = vpop.f32.mrb[0].mxu0
    %4196 = vmatprep.mubr.bf16.mxu0 %v2519
    %4197 = vmatmul.mubr.bf16.gmra.mrb[0].mxu0 %v2518
    %v4198 = vpop.f32.mrb[0].mxu0
    %v4199 = vadd.f32 %v3974, %v4198
    %v4200 = vpop.f32.mrb[0].mxu0
    %v4201 = vpop.f32.mrb[0].mxu0
    %v4202 = vadd.f32 %v3977, %v4201
    %v4203 = vpop.f32.mrb[0].mxu0
    %4204 = vmatprep.mubr.bf16.mxu0 %v2537
    %4205 = vmatmul.mubr.bf16.gmra.mrb[0].mxu0 %v2536
    %v4206 = vpop.f32.mrb[0].mxu0
    %v4207 = vadd.f32 %v3982, %v4206
    %v4208 = vpop.f32.mrb[0].mxu0
    %v4209 = vpop.f32.mrb[0].mxu0
    %v4210 = vadd.f32 %v3985, %v4209
    %v4211 = vpop.f32.mrb[0].mxu0
    %4212 = vmatprep.mubr.bf16.mxu0 %v2555
    %4213 = vmatmul.mubr.bf16.gmra.mrb[0].mxu0 %v2554
    %v4214 = vpop.f32.mrb[0].mxu0
    %v4215 = vadd.f32 %v3990, %v4214
    %v4216 = vpop.f32.mrb[0].mxu0
    %v4217 = vpop.f32.mrb[0].mxu0
    %v4218 = vadd.f32 %v3993, %v4217
    %v4219 = vpop.f32.mrb[0].mxu0
    %4220 = vmatprep.mubr.bf16.mxu0 %v2573
    %4221 = vmatmul.mubr.bf16.gmra.mrb[0].mxu0 %v2572
    %v4222 = vpop.f32.mrb[0].mxu0
    %v4223 = vadd.f32 %v3998, %v4222
    %v4224 = vpop.f32.mrb[0].mxu0
    %v4225 = vpop.f32.mrb[0].mxu0
    %v4226 = vadd.f32 %v4001, %v4225
    %v4227 = vpop.f32.mrb[0].mxu0
    %4228 = vmatprep.mubr.bf16.mxu0 %v2591
    %4229 = vmatmul.mubr.bf16.gmra.mrb[0].mxu0 %v2590
    %v4230 = vpop.f32.mrb[0].mxu0
    %v4231 = vadd.f32 %v4006, %v4230
    %v4232 = vpop.f32.mrb[0].mxu0
    %v4233 = vpop.f32.mrb[0].mxu0
    %v4234 = vadd.f32 %v4009, %v4233
    %v4235 = vpop.f32.mrb[0].mxu0
    %4236 = vmatprep.mubr.bf16.mxu0 %v2609
    %4237 = vmatmul.mubr.bf16.gmra.mrb[0].mxu0 %v2608
    %v4238 = vpop.f32.mrb[0].mxu0
    %v4239 = vadd.f32 %v4014, %v4238
    %v4240 = vpop.f32.mrb[0].mxu0
    %v4241 = vpop.f32.mrb[0].mxu0
    %v4242 = vadd.f32 %v4017, %v4241
    %v4243 = vpop.f32.mrb[0].mxu0
    %4244 = vmatprep.mubr.bf16.mxu0 %v2627
    %4245 = vmatmul.mubr.bf16.gmra.mrb[0].mxu0 %v2626
    %v4246 = vpop.f32.mrb[0].mxu0
    %v4247 = vadd.f32 %v4022, %v4246
    %v4248 = vpop.f32.mrb[0].mxu0
    %v4249 = vpop.f32.mrb[0].mxu0
    %v4250 = vadd.f32 %v4025, %v4249
    %v4251 = vpop.f32.mrb[0].mxu0
    %4252 = vmatprep.mubr.bf16.mxu0 %v2645
    %4253 = vmatmul.mubr.bf16.gmra.mrb[0].mxu0 %v2644
    %v4254 = vpop.f32.mrb[0].mxu0
    %v4255 = vadd.f32 %v4030, %v4254
    %v4256 = vpop.f32.mrb[0].mxu0
    %v4257 = vpop.f32.mrb[0].mxu0
    %v4258 = vadd.f32 %v4033, %v4257
    %v4259 = vpop.f32.mrb[0].mxu0
    %4260 = vmatprep.mubr.bf16.mxu0 %v2663
    %4261 = vmatmul.mubr.bf16.gmra.mrb[0].mxu0 %v2662
    %v4262 = vpop.f32.mrb[0].mxu0
    %v4263 = vadd.f32 %v4038, %v4262
    %v4264 = vpop.f32.mrb[0].mxu0
    %v4265 = vpop.f32.mrb[0].mxu0
    %v4266 = vadd.f32 %v4041, %v4265
    %v4267 = vpop.f32.mrb[0].mxu0
    %4268 = vmatprep.mubr.bf16.mxu0 %v2681
    %4269 = vmatmul.mubr.bf16.gmra.mrb[0].mxu0 %v2680
    %v4270 = vpop.f32.mrb[0].mxu0
    %v4271 = vadd.f32 %v4046, %v4270
    %v4272 = vpop.f32.mrb[0].mxu0
    %v4273 = vpop.f32.mrb[0].mxu0
    %v4274 = vadd.f32 %v4049, %v4273
    %v4275 = vpop.f32.mrb[0].mxu0
    %4276 = vmatprep.mubr.bf16.mxu0 %v2699
    %4277 = vmatmul.mubr.bf16.gmra.mrb[0].mxu0 %v2698
    %v4278 = vpop.f32.mrb[0].mxu0
    %v4279 = vadd.f32 %v4054, %v4278
    %v4280 = vpop.f32.mrb[0].mxu0
    %v4281 = vpop.f32.mrb[0].mxu0
    %v4282 = vadd.f32 %v4057, %v4281
    %v4283 = vpop.f32.mrb[0].mxu0
    %4284 = vmatprep.mubr.bf16.mxu0 %v2717
    %4285 = vmatmul.mubr.bf16.gmra.mrb[0].mxu0 %v2716
    %v4286 = vpop.f32.mrb[0].mxu0
    %v4287 = vadd.f32 %v4062, %v4286
    %v4288 = vpop.f32.mrb[0].mxu0
    %v4289 = vpop.f32.mrb[0].mxu0
    %v4290 = vadd.f32 %v4065, %v4289
    %v4291 = vpop.f32.mrb[0].mxu0
    %4292 = vmatprep.mubr.bf16.mxu0 %v2735
    %4293 = vmatmul.mubr.bf16.gmra.mrb[0].mxu0 %v2734
    %v4294 = vpop.f32.mrb[0].mxu0
    %v4295 = vadd.f32 %v4070, %v4294
    %v4296 = vpop.f32.mrb[0].mxu0
    %v4297 = vpop.f32.mrb[0].mxu0
    %v4298 = vadd.f32 %v4073, %v4297
    %v4299 = vpop.f32.mrb[0].mxu0
    %4300 = vdwg.mxu0
    %4301 = vmatprep.subr.bf16.mxu0 0
    %4302 = vmatpush1.bf16.msra.mxu0 %v3112
    %4303 = vmatprep.subr.bf16.mxu0 0
    %4304 = vmatpush1.bf16.msra.mxu0 %v3113
    %4305 = vmatprep.subr.bf16.mxu0 0
    %4306 = vmatpush1.bf16.msra.mxu0 %v3114
    %4307 = vmatprep.subr.bf16.mxu0 0
    %4308 = vmatpush1.bf16.msra.mxu0 %v3115
    %4309 = vmatprep.subr.bf16.mxu0 0
    %4310 = vmatpush1.bf16.msra.mxu0 %v3116
    %4311 = vmatprep.subr.bf16.mxu0 0
    %4312 = vmatpush1.bf16.msra.mxu0 %v3117
    %4313 = vmatprep.subr.bf16.mxu0 0
    %4314 = vmatpush1.bf16.msra.mxu0 %v3118
    %4315 = vmatprep.subr.bf16.mxu0 0
    %4316 = vmatpush1.bf16.msra.mxu0 %v3119
    %4317 = vmatprep.subr.bf16.mxu0 0
    %4318 = vmatpush1.bf16.msra.mxu0 %v3120
    %4319 = vmatprep.subr.bf16.mxu0 0
    %4320 = vmatpush1.bf16.msra.mxu0 %v3121
    %4321 = vmatprep.subr.bf16.mxu0 0
    %4322 = vmatpush1.bf16.msra.mxu0 %v3122
    %4323 = vmatprep.subr.bf16.mxu0 0
    %4324 = vmatpush1.bf16.msra.mxu0 %v3123
    %4325 = vmatprep.subr.bf16.mxu0 0
    %4326 = vmatpush1.bf16.msra.mxu0 %v3124
    %4327 = vmatprep.subr.bf16.mxu0 0
    %4328 = vmatpush1.bf16.msra.mxu0 %v3125
    %4329 = vmatprep.subr.bf16.mxu0 0
    %4330 = vmatpush1.bf16.msra.mxu0 %v3126
    %4331 = vmatprep.subr.bf16.mxu0 0
    %4332 = vmatpush1.bf16.msra.mxu0 %v3127
    %4333 = vmatprep.mubr.bf16.mxu0 %v2323
    %4334 = vmatmul.mubr.bf16.gmra.mrb[0].mxu0 %v2322
    %v4335 = vpop.f32.mrb[0].mxu0
    %v4336 = vadd.f32 %v4111, %v4335
    %v4337 = vpop.f32.mrb[0].mxu0
    %v4338 = vpop.f32.mrb[0].mxu0
    %v4339 = vadd.f32 %v4114, %v4338
    %v4340 = vpop.f32.mrb[0].mxu0
    %4341 = vmatprep.mubr.bf16.mxu0 %v2341
    %4342 = vmatmul.mubr.bf16.gmra.mrb[0].mxu0 %v2340
    %v4343 = vpop.f32.mrb[0].mxu0
    %v4344 = vadd.f32 %v4119, %v4343
    %v4345 = vpop.f32.mrb[0].mxu0
    %v4346 = vpop.f32.mrb[0].mxu0
    %v4347 = vadd.f32 %v4122, %v4346
    %v4348 = vpop.f32.mrb[0].mxu0
    %4349 = vmatprep.mubr.bf16.mxu0 %v2359
    %4350 = vmatmul.mubr.bf16.gmra.mrb[0].mxu0 %v2358
    %v4351 = vpop.f32.mrb[0].mxu0
    %v4352 = vadd.f32 %v4127, %v4351
    %v4353 = vpop.f32.mrb[0].mxu0
    %v4354 = vpop.f32.mrb[0].mxu0
    %v4355 = vadd.f32 %v4130, %v4354
    %v4356 = vpop.f32.mrb[0].mxu0
    %4357 = vmatprep.mubr.bf16.mxu0 %v2377
    %4358 = vmatmul.mubr.bf16.gmra.mrb[0].mxu0 %v2376
    %v4359 = vpop.f32.mrb[0].mxu0
    %v4360 = vadd.f32 %v4135, %v4359
    %v4361 = vpop.f32.mrb[0].mxu0
    %v4362 = vpop.f32.mrb[0].mxu0
    %v4363 = vadd.f32 %v4138, %v4362
    %v4364 = vpop.f32.mrb[0].mxu0
    %4365 = vmatprep.mubr.bf16.mxu0 %v2395
    %4366 = vmatmul.mubr.bf16.gmra.mrb[0].mxu0 %v2394
    %v4367 = vpop.f32.mrb[0].mxu0
    %v4368 = vadd.f32 %v4143, %v4367
    %v4369 = vpop.f32.mrb[0].mxu0
    %v4370 = vpop.f32.mrb[0].mxu0
    %v4371 = vadd.f32 %v4146, %v4370
    %v4372 = vpop.f32.mrb[0].mxu0
    %4373 = vmatprep.mubr.bf16.mxu0 %v2413
    %4374 = vmatmul.mubr.bf16.gmra.mrb[0].mxu0 %v2412
    %v4375 = vpop.f32.mrb[0].mxu0
    %v4376 = vadd.f32 %v4151, %v4375
    %v4377 = vpop.f32.mrb[0].mxu0
    %v4378 = vpop.f32.mrb[0].mxu0
    %v4379 = vadd.f32 %v4154, %v4378
    %v4380 = vpop.f32.mrb[0].mxu0
    %4381 = vmatprep.mubr.bf16.mxu0 %v2431
    %4382 = vmatmul.mubr.bf16.gmra.mrb[0].mxu0 %v2430
    %v4383 = vpop.f32.mrb[0].mxu0
    %v4384 = vadd.f32 %v4159, %v4383
    %v4385 = vpop.f32.mrb[0].mxu0
    %v4386 = vpop.f32.mrb[0].mxu0
    %v4387 = vadd.f32 %v4162, %v4386
    %v4388 = vpop.f32.mrb[0].mxu0
    %4389 = vmatprep.mubr.bf16.mxu0 %v2449
    %4390 = vmatmul.mubr.bf16.gmra.mrb[0].mxu0 %v2448
    %v4391 = vpop.f32.mrb[0].mxu0
    %v4392 = vadd.f32 %v4167, %v4391
    %v4393 = vpop.f32.mrb[0].mxu0
    %v4394 = vpop.f32.mrb[0].mxu0
    %v4395 = vadd.f32 %v4170, %v4394
    %v4396 = vpop.f32.mrb[0].mxu0
    %4397 = vmatprep.mubr.bf16.mxu0 %v2467
    %4398 = vmatmul.mubr.bf16.gmra.mrb[0].mxu0 %v2466
    %v4399 = vpop.f32.mrb[0].mxu0
    %v4400 = vadd.f32 %v4175, %v4399
    %v4401 = vpop.f32.mrb[0].mxu0
    %v4402 = vpop.f32.mrb[0].mxu0
    %v4403 = vadd.f32 %v4178, %v4402
    %v4404 = vpop.f32.mrb[0].mxu0
    %4405 = vmatprep.mubr.bf16.mxu0 %v2485
    %4406 = vmatmul.mubr.bf16.gmra.mrb[0].mxu0 %v2484
    %v4407 = vpop.f32.mrb[0].mxu0
    %v4408 = vadd.f32 %v4183, %v4407
    %v4409 = vpop.f32.mrb[0].mxu0
    %v4410 = vpop.f32.mrb[0].mxu0
    %v4411 = vadd.f32 %v4186, %v4410
    %v4412 = vpop.f32.mrb[0].mxu0
    %4413 = vmatprep.mubr.bf16.mxu0 %v2503
    %4414 = vmatmul.mubr.bf16.gmra.mrb[0].mxu0 %v2502
    %v4415 = vpop.f32.mrb[0].mxu0
    %v4416 = vadd.f32 %v4191, %v4415
    %v4417 = vpop.f32.mrb[0].mxu0
    %v4418 = vpop.f32.mrb[0].mxu0
    %v4419 = vadd.f32 %v4194, %v4418
    %v4420 = vpop.f32.mrb[0].mxu0
    %4421 = vmatprep.mubr.bf16.mxu0 %v2521
    %4422 = vmatmul.mubr.bf16.gmra.mrb[0].mxu0 %v2520
    %v4423 = vpop.f32.mrb[0].mxu0
    %v4424 = vadd.f32 %v4199, %v4423
    %v4425 = vpop.f32.mrb[0].mxu0
    %v4426 = vpop.f32.mrb[0].mxu0
    %v4427 = vadd.f32 %v4202, %v4426
    %v4428 = vpop.f32.mrb[0].mxu0
    %4429 = vmatprep.mubr.bf16.mxu0 %v2539
    %4430 = vmatmul.mubr.bf16.gmra.mrb[0].mxu0 %v2538
    %v4431 = vpop.f32.mrb[0].mxu0
    %v4432 = vadd.f32 %v4207, %v4431
    %v4433 = vpop.f32.mrb[0].mxu0
    %v4434 = vpop.f32.mrb[0].mxu0
    %v4435 = vadd.f32 %v4210, %v4434
    %v4436 = vpop.f32.mrb[0].mxu0
    %4437 = vmatprep.mubr.bf16.mxu0 %v2557
    %4438 = vmatmul.mubr.bf16.gmra.mrb[0].mxu0 %v2556
    %v4439 = vpop.f32.mrb[0].mxu0
    %v4440 = vadd.f32 %v4215, %v4439
    %v4441 = vpop.f32.mrb[0].mxu0
    %v4442 = vpop.f32.mrb[0].mxu0
    %v4443 = vadd.f32 %v4218, %v4442
    %v4444 = vpop.f32.mrb[0].mxu0
    %4445 = vmatprep.mubr.bf16.mxu0 %v2575
    %4446 = vmatmul.mubr.bf16.gmra.mrb[0].mxu0 %v2574
    %v4447 = vpop.f32.mrb[0].mxu0
    %v4448 = vadd.f32 %v4223, %v4447
    %v4449 = vpop.f32.mrb[0].mxu0
    %v4450 = vpop.f32.mrb[0].mxu0
    %v4451 = vadd.f32 %v4226, %v4450
    %v4452 = vpop.f32.mrb[0].mxu0
    %4453 = vmatprep.mubr.bf16.mxu0 %v2593
    %4454 = vmatmul.mubr.bf16.gmra.mrb[0].mxu0 %v2592
    %v4455 = vpop.f32.mrb[0].mxu0
    %v4456 = vadd.f32 %v4231, %v4455
    %v4457 = vpop.f32.mrb[0].mxu0
    %v4458 = vpop.f32.mrb[0].mxu0
    %v4459 = vadd.f32 %v4234, %v4458
    %v4460 = vpop.f32.mrb[0].mxu0
    %4461 = vmatprep.mubr.bf16.mxu0 %v2611
    %4462 = vmatmul.mubr.bf16.gmra.mrb[0].mxu0 %v2610
    %v4463 = vpop.f32.mrb[0].mxu0
    %v4464 = vadd.f32 %v4239, %v4463
    %v4465 = vpop.f32.mrb[0].mxu0
    %v4466 = vpop.f32.mrb[0].mxu0
    %v4467 = vadd.f32 %v4242, %v4466
    %v4468 = vpop.f32.mrb[0].mxu0
    %4469 = vmatprep.mubr.bf16.mxu0 %v2629
    %4470 = vmatmul.mubr.bf16.gmra.mrb[0].mxu0 %v2628
    %v4471 = vpop.f32.mrb[0].mxu0
    %v4472 = vadd.f32 %v4247, %v4471
    %v4473 = vpop.f32.mrb[0].mxu0
    %v4474 = vpop.f32.mrb[0].mxu0
    %v4475 = vadd.f32 %v4250, %v4474
    %v4476 = vpop.f32.mrb[0].mxu0
    %4477 = vmatprep.mubr.bf16.mxu0 %v2647
    %4478 = vmatmul.mubr.bf16.gmra.mrb[0].mxu0 %v2646
    %v4479 = vpop.f32.mrb[0].mxu0
    %v4480 = vadd.f32 %v4255, %v4479
    %v4481 = vpop.f32.mrb[0].mxu0
    %v4482 = vpop.f32.mrb[0].mxu0
    %v4483 = vadd.f32 %v4258, %v4482
    %v4484 = vpop.f32.mrb[0].mxu0
    %4485 = vmatprep.mubr.bf16.mxu0 %v2665
    %4486 = vmatmul.mubr.bf16.gmra.mrb[0].mxu0 %v2664
    %v4487 = vpop.f32.mrb[0].mxu0
    %v4488 = vadd.f32 %v4263, %v4487
    %v4489 = vpop.f32.mrb[0].mxu0
    %v4490 = vpop.f32.mrb[0].mxu0
    %v4491 = vadd.f32 %v4266, %v4490
    %v4492 = vpop.f32.mrb[0].mxu0
    %4493 = vmatprep.mubr.bf16.mxu0 %v2683
    %4494 = vmatmul.mubr.bf16.gmra.mrb[0].mxu0 %v2682
    %v4495 = vpop.f32.mrb[0].mxu0
    %v4496 = vadd.f32 %v4271, %v4495
    %v4497 = vpop.f32.mrb[0].mxu0
    %v4498 = vpop.f32.mrb[0].mxu0
    %v4499 = vadd.f32 %v4274, %v4498
    %v4500 = vpop.f32.mrb[0].mxu0
    %4501 = vmatprep.mubr.bf16.mxu0 %v2701
    %4502 = vmatmul.mubr.bf16.gmra.mrb[0].mxu0 %v2700
    %v4503 = vpop.f32.mrb[0].mxu0
    %v4504 = vadd.f32 %v4279, %v4503
    %v4505 = vpop.f32.mrb[0].mxu0
    %v4506 = vpop.f32.mrb[0].mxu0
    %v4507 = vadd.f32 %v4282, %v4506
    %v4508 = vpop.f32.mrb[0].mxu0
    %4509 = vmatprep.mubr.bf16.mxu0 %v2719
    %4510 = vmatmul.mubr.bf16.gmra.mrb[0].mxu0 %v2718
    %v4511 = vpop.f32.mrb[0].mxu0
    %v4512 = vadd.f32 %v4287, %v4511
    %v4513 = vpop.f32.mrb[0].mxu0
    %v4514 = vpop.f32.mrb[0].mxu0
    %v4515 = vadd.f32 %v4290, %v4514
    %v4516 = vpop.f32.mrb[0].mxu0
    %4517 = vmatprep.mubr.bf16.mxu0 %v2737
    %4518 = vmatmul.mubr.bf16.gmra.mrb[0].mxu0 %v2736
    %v4519 = vpop.f32.mrb[0].mxu0
    %v4520 = vadd.f32 %v4295, %v4519
    %v4521 = vpop.f32.mrb[0].mxu0
    %v4522 = vpop.f32.mrb[0].mxu0
    %v4523 = vadd.f32 %v4298, %v4522
    %v4524 = vpop.f32.mrb[0].mxu0
    %4525 = vdwg.mxu0
    %4526 = vmatprep.subr.bf16.mxu0 0
    %4527 = vmatpush1.bf16.msra.mxu0 %v3128
    %4528 = vmatprep.subr.bf16.mxu0 0
    %4529 = vmatpush1.bf16.msra.mxu0 %v3129
    %4530 = vmatprep.subr.bf16.mxu0 0
    %4531 = vmatpush1.bf16.msra.mxu0 %v3130
    %4532 = vmatprep.subr.bf16.mxu0 0
    %4533 = vmatpush1.bf16.msra.mxu0 %v3131
    %4534 = vmatprep.subr.bf16.mxu0 0
    %4535 = vmatpush1.bf16.msra.mxu0 %v3132
    %4536 = vmatprep.subr.bf16.mxu0 0
    %4537 = vmatpush1.bf16.msra.mxu0 %v3133
    %4538 = vmatprep.subr.bf16.mxu0 0
    %4539 = vmatpush1.bf16.msra.mxu0 %v3134
    %4540 = vmatprep.subr.bf16.mxu0 0
    %4541 = vmatpush1.bf16.msra.mxu0 %v3135
    %4542 = vmatprep.subr.bf16.mxu0 0
    %4543 = vmatpush1.bf16.msra.mxu0 %v3136
    %4544 = vmatprep.subr.bf16.mxu0 0
    %4545 = vmatpush1.bf16.msra.mxu0 %v3137
    %4546 = vmatprep.subr.bf16.mxu0 0
    %4547 = vmatpush1.bf16.msra.mxu0 %v3138
    %4548 = vmatprep.subr.bf16.mxu0 0
    %4549 = vmatpush1.bf16.msra.mxu0 %v3139
    %4550 = vmatprep.subr.bf16.mxu0 0
    %4551 = vmatpush1.bf16.msra.mxu0 %v3140
    %4552 = vmatprep.subr.bf16.mxu0 0
    %4553 = vmatpush1.bf16.msra.mxu0 %v3141
    %4554 = vmatprep.subr.bf16.mxu0 0
    %4555 = vmatpush1.bf16.msra.mxu0 %v3142
    %4556 = vmatprep.subr.bf16.mxu0 0
    %4557 = vmatpush1.bf16.msra.mxu0 %v3143
    %4558 = vmatprep.mubr.bf16.mxu0 %v2325
    %4559 = vmatmul.mubr.bf16.gmra.mrb[0].mxu0 %v2324
    %v4560 = vpop.f32.mrb[0].mxu0
    %v4561 = vadd.f32 %v4336, %v4560
    %v4562 = vpop.f32.mrb[0].mxu0
    %v4563 = vpop.f32.mrb[0].mxu0
    %v4564 = vadd.f32 %v4339, %v4563
    %v4565 = vpop.f32.mrb[0].mxu0
    %4566 = vmatprep.mubr.bf16.mxu0 %v2343
    %4567 = vmatmul.mubr.bf16.gmra.mrb[0].mxu0 %v2342
    %v4568 = vpop.f32.mrb[0].mxu0
    %v4569 = vadd.f32 %v4344, %v4568
    %v4570 = vpop.f32.mrb[0].mxu0
    %v4571 = vpop.f32.mrb[0].mxu0
    %v4572 = vadd.f32 %v4347, %v4571
    %v4573 = vpop.f32.mrb[0].mxu0
    %4574 = vmatprep.mubr.bf16.mxu0 %v2361
    %4575 = vmatmul.mubr.bf16.gmra.mrb[0].mxu0 %v2360
    %v4576 = vpop.f32.mrb[0].mxu0
    %v4577 = vadd.f32 %v4352, %v4576
    %v4578 = vpop.f32.mrb[0].mxu0
    %v4579 = vpop.f32.mrb[0].mxu0
    %v4580 = vadd.f32 %v4355, %v4579
    %v4581 = vpop.f32.mrb[0].mxu0
    %4582 = vmatprep.mubr.bf16.mxu0 %v2379
    %4583 = vmatmul.mubr.bf16.gmra.mrb[0].mxu0 %v2378
    %v4584 = vpop.f32.mrb[0].mxu0
    %v4585 = vadd.f32 %v4360, %v4584
    %v4586 = vpop.f32.mrb[0].mxu0
    %v4587 = vpop.f32.mrb[0].mxu0
    %v4588 = vadd.f32 %v4363, %v4587
    %v4589 = vpop.f32.mrb[0].mxu0
    %4590 = vmatprep.mubr.bf16.mxu0 %v2397
    %4591 = vmatmul.mubr.bf16.gmra.mrb[0].mxu0 %v2396
    %v4592 = vpop.f32.mrb[0].mxu0
    %v4593 = vadd.f32 %v4368, %v4592
    %v4594 = vpop.f32.mrb[0].mxu0
    %v4595 = vpop.f32.mrb[0].mxu0
    %v4596 = vadd.f32 %v4371, %v4595
    %v4597 = vpop.f32.mrb[0].mxu0
    %4598 = vmatprep.mubr.bf16.mxu0 %v2415
    %4599 = vmatmul.mubr.bf16.gmra.mrb[0].mxu0 %v2414
    %v4600 = vpop.f32.mrb[0].mxu0
    %v4601 = vadd.f32 %v4376, %v4600
    %v4602 = vpop.f32.mrb[0].mxu0
    %v4603 = vpop.f32.mrb[0].mxu0
    %v4604 = vadd.f32 %v4379, %v4603
    %v4605 = vpop.f32.mrb[0].mxu0
    %4606 = vmatprep.mubr.bf16.mxu0 %v2433
    %4607 = vmatmul.mubr.bf16.gmra.mrb[0].mxu0 %v2432
    %v4608 = vpop.f32.mrb[0].mxu0
    %v4609 = vadd.f32 %v4384, %v4608
    %v4610 = vpop.f32.mrb[0].mxu0
    %v4611 = vpop.f32.mrb[0].mxu0
    %v4612 = vadd.f32 %v4387, %v4611
    %v4613 = vpop.f32.mrb[0].mxu0
    %4614 = vmatprep.mubr.bf16.mxu0 %v2451
    %4615 = vmatmul.mubr.bf16.gmra.mrb[0].mxu0 %v2450
    %v4616 = vpop.f32.mrb[0].mxu0
    %v4617 = vadd.f32 %v4392, %v4616
    %v4618 = vpop.f32.mrb[0].mxu0
    %v4619 = vpop.f32.mrb[0].mxu0
    %v4620 = vadd.f32 %v4395, %v4619
    %v4621 = vpop.f32.mrb[0].mxu0
    %4622 = vmatprep.mubr.bf16.mxu0 %v2469
    %4623 = vmatmul.mubr.bf16.gmra.mrb[0].mxu0 %v2468
    %v4624 = vpop.f32.mrb[0].mxu0
    %v4625 = vadd.f32 %v4400, %v4624
    %v4626 = vpop.f32.mrb[0].mxu0
    %v4627 = vpop.f32.mrb[0].mxu0
    %v4628 = vadd.f32 %v4403, %v4627
    %v4629 = vpop.f32.mrb[0].mxu0
    %4630 = vmatprep.mubr.bf16.mxu0 %v2487
    %4631 = vmatmul.mubr.bf16.gmra.mrb[0].mxu0 %v2486
    %v4632 = vpop.f32.mrb[0].mxu0
    %v4633 = vadd.f32 %v4408, %v4632
    %v4634 = vpop.f32.mrb[0].mxu0
    %v4635 = vpop.f32.mrb[0].mxu0
    %v4636 = vadd.f32 %v4411, %v4635
    %v4637 = vpop.f32.mrb[0].mxu0
    %4638 = vmatprep.mubr.bf16.mxu0 %v2505
    %4639 = vmatmul.mubr.bf16.gmra.mrb[0].mxu0 %v2504
    %v4640 = vpop.f32.mrb[0].mxu0
    %v4641 = vadd.f32 %v4416, %v4640
    %v4642 = vpop.f32.mrb[0].mxu0
    %v4643 = vpop.f32.mrb[0].mxu0
    %v4644 = vadd.f32 %v4419, %v4643
    %v4645 = vpop.f32.mrb[0].mxu0
    %4646 = vmatprep.mubr.bf16.mxu0 %v2523
    %4647 = vmatmul.mubr.bf16.gmra.mrb[0].mxu0 %v2522
    %v4648 = vpop.f32.mrb[0].mxu0
    %v4649 = vadd.f32 %v4424, %v4648
    %v4650 = vpop.f32.mrb[0].mxu0
    %v4651 = vpop.f32.mrb[0].mxu0
    %v4652 = vadd.f32 %v4427, %v4651
    %v4653 = vpop.f32.mrb[0].mxu0
    %4654 = vmatprep.mubr.bf16.mxu0 %v2541
    %4655 = vmatmul.mubr.bf16.gmra.mrb[0].mxu0 %v2540
    %v4656 = vpop.f32.mrb[0].mxu0
    %v4657 = vadd.f32 %v4432, %v4656
    %v4658 = vpop.f32.mrb[0].mxu0
    %v4659 = vpop.f32.mrb[0].mxu0
    %v4660 = vadd.f32 %v4435, %v4659
    %v4661 = vpop.f32.mrb[0].mxu0
    %4662 = vmatprep.mubr.bf16.mxu0 %v2559
    %4663 = vmatmul.mubr.bf16.gmra.mrb[0].mxu0 %v2558
    %v4664 = vpop.f32.mrb[0].mxu0
    %v4665 = vadd.f32 %v4440, %v4664
    %v4666 = vpop.f32.mrb[0].mxu0
    %v4667 = vpop.f32.mrb[0].mxu0
    %v4668 = vadd.f32 %v4443, %v4667
    %v4669 = vpop.f32.mrb[0].mxu0
    %4670 = vmatprep.mubr.bf16.mxu0 %v2577
    %4671 = vmatmul.mubr.bf16.gmra.mrb[0].mxu0 %v2576
    %v4672 = vpop.f32.mrb[0].mxu0
    %v4673 = vadd.f32 %v4448, %v4672
    %v4674 = vpop.f32.mrb[0].mxu0
    %v4675 = vpop.f32.mrb[0].mxu0
    %v4676 = vadd.f32 %v4451, %v4675
    %v4677 = vpop.f32.mrb[0].mxu0
    %4678 = vmatprep.mubr.bf16.mxu0 %v2595
    %4679 = vmatmul.mubr.bf16.gmra.mrb[0].mxu0 %v2594
    %v4680 = vpop.f32.mrb[0].mxu0
    %v4681 = vadd.f32 %v4456, %v4680
    %v4682 = vpop.f32.mrb[0].mxu0
    %v4683 = vpop.f32.mrb[0].mxu0
    %v4684 = vadd.f32 %v4459, %v4683
    %v4685 = vpop.f32.mrb[0].mxu0
    %4686 = vmatprep.mubr.bf16.mxu0 %v2613
    %4687 = vmatmul.mubr.bf16.gmra.mrb[0].mxu0 %v2612
    %v4688 = vpop.f32.mrb[0].mxu0
    %v4689 = vadd.f32 %v4464, %v4688
    %v4690 = vpop.f32.mrb[0].mxu0
    %v4691 = vpop.f32.mrb[0].mxu0
    %v4692 = vadd.f32 %v4467, %v4691
    %v4693 = vpop.f32.mrb[0].mxu0
    %4694 = vmatprep.mubr.bf16.mxu0 %v2631
    %4695 = vmatmul.mubr.bf16.gmra.mrb[0].mxu0 %v2630
    %v4696 = vpop.f32.mrb[0].mxu0
    %v4697 = vadd.f32 %v4472, %v4696
    %v4698 = vpop.f32.mrb[0].mxu0
    %v4699 = vpop.f32.mrb[0].mxu0
    %v4700 = vadd.f32 %v4475, %v4699
    %v4701 = vpop.f32.mrb[0].mxu0
    %4702 = vmatprep.mubr.bf16.mxu0 %v2649
    %4703 = vmatmul.mubr.bf16.gmra.mrb[0].mxu0 %v2648
    %v4704 = vpop.f32.mrb[0].mxu0
    %v4705 = vadd.f32 %v4480, %v4704
    %v4706 = vpop.f32.mrb[0].mxu0
    %v4707 = vpop.f32.mrb[0].mxu0
    %v4708 = vadd.f32 %v4483, %v4707
    %v4709 = vpop.f32.mrb[0].mxu0
    %4710 = vmatprep.mubr.bf16.mxu0 %v2667
    %4711 = vmatmul.mubr.bf16.gmra.mrb[0].mxu0 %v2666
    %v4712 = vpop.f32.mrb[0].mxu0
    %v4713 = vadd.f32 %v4488, %v4712
    %v4714 = vpop.f32.mrb[0].mxu0
    %v4715 = vpop.f32.mrb[0].mxu0
    %v4716 = vadd.f32 %v4491, %v4715
    %v4717 = vpop.f32.mrb[0].mxu0
    %4718 = vmatprep.mubr.bf16.mxu0 %v2685
    %4719 = vmatmul.mubr.bf16.gmra.mrb[0].mxu0 %v2684
    %v4720 = vpop.f32.mrb[0].mxu0
    %v4721 = vadd.f32 %v4496, %v4720
    %v4722 = vpop.f32.mrb[0].mxu0
    %v4723 = vpop.f32.mrb[0].mxu0
    %v4724 = vadd.f32 %v4499, %v4723
    %v4725 = vpop.f32.mrb[0].mxu0
    %4726 = vmatprep.mubr.bf16.mxu0 %v2703
    %4727 = vmatmul.mubr.bf16.gmra.mrb[0].mxu0 %v2702
    %v4728 = vpop.f32.mrb[0].mxu0
    %v4729 = vadd.f32 %v4504, %v4728
    %v4730 = vpop.f32.mrb[0].mxu0
    %v4731 = vpop.f32.mrb[0].mxu0
    %v4732 = vadd.f32 %v4507, %v4731
    %v4733 = vpop.f32.mrb[0].mxu0
    %4734 = vmatprep.mubr.bf16.mxu0 %v2721
    %4735 = vmatmul.mubr.bf16.gmra.mrb[0].mxu0 %v2720
    %v4736 = vpop.f32.mrb[0].mxu0
    %v4737 = vadd.f32 %v4512, %v4736
    %v4738 = vpop.f32.mrb[0].mxu0
    %v4739 = vpop.f32.mrb[0].mxu0
    %v4740 = vadd.f32 %v4515, %v4739
    %v4741 = vpop.f32.mrb[0].mxu0
    %4742 = vmatprep.mubr.bf16.mxu0 %v2739
    %4743 = vmatmul.mubr.bf16.gmra.mrb[0].mxu0 %v2738
    %v4744 = vpop.f32.mrb[0].mxu0
    %v4745 = vadd.f32 %v4520, %v4744
    %v4746 = vpop.f32.mrb[0].mxu0
    %v4747 = vpop.f32.mrb[0].mxu0
    %v4748 = vadd.f32 %v4523, %v4747
    %v4749 = vpop.f32.mrb[0].mxu0
    %4750 = vdwg.mxu0
    %4751 = vmatprep.subr.bf16.mxu0 0
    %4752 = vmatpush1.bf16.msra.mxu0 %v3144
    %4753 = vmatprep.subr.bf16.mxu0 0
    %4754 = vmatpush1.bf16.msra.mxu0 %v3145
    %4755 = vmatprep.subr.bf16.mxu0 0
    %4756 = vmatpush1.bf16.msra.mxu0 %v3146
    %4757 = vmatprep.subr.bf16.mxu0 0
    %4758 = vmatpush1.bf16.msra.mxu0 %v3147
    %4759 = vmatprep.subr.bf16.mxu0 0
    %4760 = vmatpush1.bf16.msra.mxu0 %v3148
    %4761 = vmatprep.subr.bf16.mxu0 0
    %4762 = vmatpush1.bf16.msra.mxu0 %v3149
    %4763 = vmatprep.subr.bf16.mxu0 0
    %4764 = vmatpush1.bf16.msra.mxu0 %v3150
    %4765 = vmatprep.subr.bf16.mxu0 0
    %4766 = vmatpush1.bf16.msra.mxu0 %v3151
    %4767 = vmatprep.subr.bf16.mxu0 0
    %4768 = vmatpush1.bf16.msra.mxu0 %v3152
    %4769 = vmatprep.subr.bf16.mxu0 0
    %4770 = vmatpush1.bf16.msra.mxu0 %v3153
    %4771 = vmatprep.subr.bf16.mxu0 0
    %4772 = vmatpush1.bf16.msra.mxu0 %v3154
    %4773 = vmatprep.subr.bf16.mxu0 0
    %4774 = vmatpush1.bf16.msra.mxu0 %v3155
    %4775 = vmatprep.subr.bf16.mxu0 0
    %4776 = vmatpush1.bf16.msra.mxu0 %v3156
    %4777 = vmatprep.subr.bf16.mxu0 0
    %4778 = vmatpush1.bf16.msra.mxu0 %v3157
    %4779 = vmatprep.subr.bf16.mxu0 0
    %4780 = vmatpush1.bf16.msra.mxu0 %v3158
    %4781 = vmatprep.subr.bf16.mxu0 0
    %4782 = vmatpush1.bf16.msra.mxu0 %v3159
    %4783 = vmatprep.mubr.bf16.mxu0 %v2327
    %4784 = vmatmul.mubr.bf16.gmra.mrb[0].mxu0 %v2326
    %v4785 = vpop.f32.mrb[0].mxu0
    %v4786 = vadd.f32 %v4561, %v4785
    %v4787 = vpop.f32.mrb[0].mxu0
    %v4788 = vpop.f32.mrb[0].mxu0
    %v4789 = vadd.f32 %v4564, %v4788
    %v4790 = vpop.f32.mrb[0].mxu0
    %4791 = vmatprep.mubr.bf16.mxu0 %v2345
    %4792 = vmatmul.mubr.bf16.gmra.mrb[0].mxu0 %v2344
    %v4793 = vpop.f32.mrb[0].mxu0
    %v4794 = vadd.f32 %v4569, %v4793
    %v4795 = vpop.f32.mrb[0].mxu0
    %v4796 = vpop.f32.mrb[0].mxu0
    %v4797 = vadd.f32 %v4572, %v4796
    %v4798 = vpop.f32.mrb[0].mxu0
    %4799 = vmatprep.mubr.bf16.mxu0 %v2363
    %4800 = vmatmul.mubr.bf16.gmra.mrb[0].mxu0 %v2362
    %v4801 = vpop.f32.mrb[0].mxu0
    %v4802 = vadd.f32 %v4577, %v4801
    %v4803 = vpop.f32.mrb[0].mxu0
    %v4804 = vpop.f32.mrb[0].mxu0
    %v4805 = vadd.f32 %v4580, %v4804
    %v4806 = vpop.f32.mrb[0].mxu0
    %4807 = vmatprep.mubr.bf16.mxu0 %v2381
    %4808 = vmatmul.mubr.bf16.gmra.mrb[0].mxu0 %v2380
    %v4809 = vpop.f32.mrb[0].mxu0
    %v4810 = vadd.f32 %v4585, %v4809
    %v4811 = vpop.f32.mrb[0].mxu0
    %v4812 = vpop.f32.mrb[0].mxu0
    %v4813 = vadd.f32 %v4588, %v4812
    %v4814 = vpop.f32.mrb[0].mxu0
    %4815 = vmatprep.mubr.bf16.mxu0 %v2399
    %4816 = vmatmul.mubr.bf16.gmra.mrb[0].mxu0 %v2398
    %v4817 = vpop.f32.mrb[0].mxu0
    %v4818 = vadd.f32 %v4593, %v4817
    %v4819 = vpop.f32.mrb[0].mxu0
    %v4820 = vpop.f32.mrb[0].mxu0
    %v4821 = vadd.f32 %v4596, %v4820
    %v4822 = vpop.f32.mrb[0].mxu0
    %4823 = vmatprep.mubr.bf16.mxu0 %v2417
    %4824 = vmatmul.mubr.bf16.gmra.mrb[0].mxu0 %v2416
    %v4825 = vpop.f32.mrb[0].mxu0
    %v4826 = vadd.f32 %v4601, %v4825
    %v4827 = vpop.f32.mrb[0].mxu0
    %v4828 = vpop.f32.mrb[0].mxu0
    %v4829 = vadd.f32 %v4604, %v4828
    %v4830 = vpop.f32.mrb[0].mxu0
    %4831 = vmatprep.mubr.bf16.mxu0 %v2435
    %4832 = vmatmul.mubr.bf16.gmra.mrb[0].mxu0 %v2434
    %v4833 = vpop.f32.mrb[0].mxu0
    %v4834 = vadd.f32 %v4609, %v4833
    %v4835 = vpop.f32.mrb[0].mxu0
    %v4836 = vpop.f32.mrb[0].mxu0
    %v4837 = vadd.f32 %v4612, %v4836
    %v4838 = vpop.f32.mrb[0].mxu0
    %4839 = vmatprep.mubr.bf16.mxu0 %v2453
    %4840 = vmatmul.mubr.bf16.gmra.mrb[0].mxu0 %v2452
    %v4841 = vpop.f32.mrb[0].mxu0
    %v4842 = vadd.f32 %v4617, %v4841
    %v4843 = vpop.f32.mrb[0].mxu0
    %v4844 = vpop.f32.mrb[0].mxu0
    %v4845 = vadd.f32 %v4620, %v4844
    %v4846 = vpop.f32.mrb[0].mxu0
    %4847 = vmatprep.mubr.bf16.mxu0 %v2471
    %4848 = vmatmul.mubr.bf16.gmra.mrb[0].mxu0 %v2470
    %v4849 = vpop.f32.mrb[0].mxu0
    %v4850 = vadd.f32 %v4625, %v4849
    %v4851 = vpop.f32.mrb[0].mxu0
    %v4852 = vpop.f32.mrb[0].mxu0
    %v4853 = vadd.f32 %v4628, %v4852
    %v4854 = vpop.f32.mrb[0].mxu0
    %4855 = vmatprep.mubr.bf16.mxu0 %v2489
    %4856 = vmatmul.mubr.bf16.gmra.mrb[0].mxu0 %v2488
    %v4857 = vpop.f32.mrb[0].mxu0
    %v4858 = vadd.f32 %v4633, %v4857
    %v4859 = vpop.f32.mrb[0].mxu0
    %v4860 = vpop.f32.mrb[0].mxu0
    %v4861 = vadd.f32 %v4636, %v4860
    %v4862 = vpop.f32.mrb[0].mxu0
    %4863 = vmatprep.mubr.bf16.mxu0 %v2507
    %4864 = vmatmul.mubr.bf16.gmra.mrb[0].mxu0 %v2506
    %v4865 = vpop.f32.mrb[0].mxu0
    %v4866 = vadd.f32 %v4641, %v4865
    %v4867 = vpop.f32.mrb[0].mxu0
    %v4868 = vpop.f32.mrb[0].mxu0
    %v4869 = vadd.f32 %v4644, %v4868
    %v4870 = vpop.f32.mrb[0].mxu0
    %4871 = vmatprep.mubr.bf16.mxu0 %v2525
    %4872 = vmatmul.mubr.bf16.gmra.mrb[0].mxu0 %v2524
    %v4873 = vpop.f32.mrb[0].mxu0
    %v4874 = vadd.f32 %v4649, %v4873
    %v4875 = vpop.f32.mrb[0].mxu0
    %v4876 = vpop.f32.mrb[0].mxu0
    %v4877 = vadd.f32 %v4652, %v4876
    %v4878 = vpop.f32.mrb[0].mxu0
    %4879 = vmatprep.mubr.bf16.mxu0 %v2543
    %4880 = vmatmul.mubr.bf16.gmra.mrb[0].mxu0 %v2542
    %v4881 = vpop.f32.mrb[0].mxu0
    %v4882 = vadd.f32 %v4657, %v4881
    %v4883 = vpop.f32.mrb[0].mxu0
    %v4884 = vpop.f32.mrb[0].mxu0
    %v4885 = vadd.f32 %v4660, %v4884
    %v4886 = vpop.f32.mrb[0].mxu0
    %4887 = vmatprep.mubr.bf16.mxu0 %v2561
    %4888 = vmatmul.mubr.bf16.gmra.mrb[0].mxu0 %v2560
    %v4889 = vpop.f32.mrb[0].mxu0
    %v4890 = vadd.f32 %v4665, %v4889
    %v4891 = vpop.f32.mrb[0].mxu0
    %v4892 = vpop.f32.mrb[0].mxu0
    %v4893 = vadd.f32 %v4668, %v4892
    %v4894 = vpop.f32.mrb[0].mxu0
    %4895 = vmatprep.mubr.bf16.mxu0 %v2579
    %4896 = vmatmul.mubr.bf16.gmra.mrb[0].mxu0 %v2578
    %v4897 = vpop.f32.mrb[0].mxu0
    %v4898 = vadd.f32 %v4673, %v4897
    %v4899 = vpop.f32.mrb[0].mxu0
    %v4900 = vpop.f32.mrb[0].mxu0
    %v4901 = vadd.f32 %v4676, %v4900
    %v4902 = vpop.f32.mrb[0].mxu0
    %4903 = vmatprep.mubr.bf16.mxu0 %v2597
    %4904 = vmatmul.mubr.bf16.gmra.mrb[0].mxu0 %v2596
    %v4905 = vpop.f32.mrb[0].mxu0
    %v4906 = vadd.f32 %v4681, %v4905
    %v4907 = vpop.f32.mrb[0].mxu0
    %v4908 = vpop.f32.mrb[0].mxu0
    %v4909 = vadd.f32 %v4684, %v4908
    %v4910 = vpop.f32.mrb[0].mxu0
    %4911 = vmatprep.mubr.bf16.mxu0 %v2615
    %4912 = vmatmul.mubr.bf16.gmra.mrb[0].mxu0 %v2614
    %v4913 = vpop.f32.mrb[0].mxu0
    %v4914 = vadd.f32 %v4689, %v4913
    %v4915 = vpop.f32.mrb[0].mxu0
    %v4916 = vpop.f32.mrb[0].mxu0
    %v4917 = vadd.f32 %v4692, %v4916
    %v4918 = vpop.f32.mrb[0].mxu0
    %4919 = vmatprep.mubr.bf16.mxu0 %v2633
    %4920 = vmatmul.mubr.bf16.gmra.mrb[0].mxu0 %v2632
    %v4921 = vpop.f32.mrb[0].mxu0
    %v4922 = vadd.f32 %v4697, %v4921
    %v4923 = vpop.f32.mrb[0].mxu0
    %v4924 = vpop.f32.mrb[0].mxu0
    %v4925 = vadd.f32 %v4700, %v4924
    %v4926 = vpop.f32.mrb[0].mxu0
    %4927 = vmatprep.mubr.bf16.mxu0 %v2651
    %4928 = vmatmul.mubr.bf16.gmra.mrb[0].mxu0 %v2650
    %v4929 = vpop.f32.mrb[0].mxu0
    %v4930 = vadd.f32 %v4705, %v4929
    %v4931 = vpop.f32.mrb[0].mxu0
    %v4932 = vpop.f32.mrb[0].mxu0
    %v4933 = vadd.f32 %v4708, %v4932
    %v4934 = vpop.f32.mrb[0].mxu0
    %4935 = vmatprep.mubr.bf16.mxu0 %v2669
    %4936 = vmatmul.mubr.bf16.gmra.mrb[0].mxu0 %v2668
    %v4937 = vpop.f32.mrb[0].mxu0
    %v4938 = vadd.f32 %v4713, %v4937
    %v4939 = vpop.f32.mrb[0].mxu0
    %v4940 = vpop.f32.mrb[0].mxu0
    %v4941 = vadd.f32 %v4716, %v4940
    %v4942 = vpop.f32.mrb[0].mxu0
    %4943 = vmatprep.mubr.bf16.mxu0 %v2687
    %4944 = vmatmul.mubr.bf16.gmra.mrb[0].mxu0 %v2686
    %v4945 = vpop.f32.mrb[0].mxu0
    %v4946 = vadd.f32 %v4721, %v4945
    %v4947 = vpop.f32.mrb[0].mxu0
    %v4948 = vpop.f32.mrb[0].mxu0
    %v4949 = vadd.f32 %v4724, %v4948
    %v4950 = vpop.f32.mrb[0].mxu0
    %4951 = vmatprep.mubr.bf16.mxu0 %v2705
    %4952 = vmatmul.mubr.bf16.gmra.mrb[0].mxu0 %v2704
    %v4953 = vpop.f32.mrb[0].mxu0
    %v4954 = vadd.f32 %v4729, %v4953
    %v4955 = vpop.f32.mrb[0].mxu0
    %v4956 = vpop.f32.mrb[0].mxu0
    %v4957 = vadd.f32 %v4732, %v4956
    %v4958 = vpop.f32.mrb[0].mxu0
    %4959 = vmatprep.mubr.bf16.mxu0 %v2723
    %4960 = vmatmul.mubr.bf16.gmra.mrb[0].mxu0 %v2722
    %v4961 = vpop.f32.mrb[0].mxu0
    %v4962 = vadd.f32 %v4737, %v4961
    %v4963 = vpop.f32.mrb[0].mxu0
    %v4964 = vpop.f32.mrb[0].mxu0
    %v4965 = vadd.f32 %v4740, %v4964
    %v4966 = vpop.f32.mrb[0].mxu0
    %4967 = vmatprep.mubr.bf16.mxu0 %v2741
    %4968 = vmatmul.mubr.bf16.gmra.mrb[0].mxu0 %v2740
    %v4969 = vpop.f32.mrb[0].mxu0
    %v4970 = vadd.f32 %v4745, %v4969
    %v4971 = vpop.f32.mrb[0].mxu0
    %v4972 = vpop.f32.mrb[0].mxu0
    %v4973 = vadd.f32 %v4748, %v4972
    %v4974 = vpop.f32.mrb[0].mxu0
    %4975 = vdwg.mxu0
    %4976 = vmatprep.subr.bf16.mxu0 0
    %4977 = vmatpush1.bf16.msra.mxu0 %v3160
    %4978 = vmatprep.subr.bf16.mxu0 0
    %4979 = vmatpush1.bf16.msra.mxu0 %v3161
    %4980 = vmatprep.subr.bf16.mxu0 0
    %4981 = vmatpush1.bf16.msra.mxu0 %v3162
    %4982 = vmatprep.subr.bf16.mxu0 0
    %4983 = vmatpush1.bf16.msra.mxu0 %v3163
    %4984 = vmatprep.subr.bf16.mxu0 0
    %4985 = vmatpush1.bf16.msra.mxu0 %v3164
    %4986 = vmatprep.subr.bf16.mxu0 0
    %4987 = vmatpush1.bf16.msra.mxu0 %v3165
    %4988 = vmatprep.subr.bf16.mxu0 0
    %4989 = vmatpush1.bf16.msra.mxu0 %v3166
    %4990 = vmatprep.subr.bf16.mxu0 0
    %4991 = vmatpush1.bf16.msra.mxu0 %v3167
    %4992 = vmatprep.subr.bf16.mxu0 0
    %4993 = vmatpush1.bf16.msra.mxu0 %v3168
    %4994 = vmatprep.subr.bf16.mxu0 0
    %4995 = vmatpush1.bf16.msra.mxu0 %v3169
    %4996 = vmatprep.subr.bf16.mxu0 0
    %4997 = vmatpush1.bf16.msra.mxu0 %v3170
    %4998 = vmatprep.subr.bf16.mxu0 0
    %4999 = vmatpush1.bf16.msra.mxu0 %v3171
    %5000 = vmatprep.subr.bf16.mxu0 0
    %5001 = vmatpush1.bf16.msra.mxu0 %v3172
    %5002 = vmatprep.subr.bf16.mxu0 0
    %5003 = vmatpush1.bf16.msra.mxu0 %v3173
    %5004 = vmatprep.subr.bf16.mxu0 0
    %5005 = vmatpush1.bf16.msra.mxu0 %v3174
    %5006 = vmatprep.subr.bf16.mxu0 0
    %5007 = vmatpush1.bf16.msra.mxu0 %v3175
    %5008 = vmatprep.mubr.bf16.mxu0 %v2329
    %5009 = vmatmul.mubr.bf16.gmra.mrb[0].mxu0 %v2328
    %v5010 = vpop.f32.mrb[0].mxu0
    %v5011 = vadd.f32 %v4786, %v5010
    %v5012 = vpop.f32.mrb[0].mxu0
    %v5013 = vpop.f32.mrb[0].mxu0
    %v5014 = vadd.f32 %v4789, %v5013
    %v5015 = vpop.f32.mrb[0].mxu0
    %5016 = vmatprep.mubr.bf16.mxu0 %v2347
    %5017 = vmatmul.mubr.bf16.gmra.mrb[0].mxu0 %v2346
    %v5018 = vpop.f32.mrb[0].mxu0
    %v5019 = vadd.f32 %v4794, %v5018
    %v5020 = vpop.f32.mrb[0].mxu0
    %v5021 = vpop.f32.mrb[0].mxu0
    %v5022 = vadd.f32 %v4797, %v5021
    %v5023 = vpop.f32.mrb[0].mxu0
    %5024 = vmatprep.mubr.bf16.mxu0 %v2365
    %5025 = vmatmul.mubr.bf16.gmra.mrb[0].mxu0 %v2364
    %v5026 = vpop.f32.mrb[0].mxu0
    %v5027 = vadd.f32 %v4802, %v5026
    %v5028 = vpop.f32.mrb[0].mxu0
    %v5029 = vpop.f32.mrb[0].mxu0
    %v5030 = vadd.f32 %v4805, %v5029
    %v5031 = vpop.f32.mrb[0].mxu0
    %5032 = vmatprep.mubr.bf16.mxu0 %v2383
    %5033 = vmatmul.mubr.bf16.gmra.mrb[0].mxu0 %v2382
    %v5034 = vpop.f32.mrb[0].mxu0
    %v5035 = vadd.f32 %v4810, %v5034
    %v5036 = vpop.f32.mrb[0].mxu0
    %v5037 = vpop.f32.mrb[0].mxu0
    %v5038 = vadd.f32 %v4813, %v5037
    %v5039 = vpop.f32.mrb[0].mxu0
    %5040 = vmatprep.mubr.bf16.mxu0 %v2401
    %5041 = vmatmul.mubr.bf16.gmra.mrb[0].mxu0 %v2400
    %v5042 = vpop.f32.mrb[0].mxu0
    %v5043 = vadd.f32 %v4818, %v5042
    %v5044 = vpop.f32.mrb[0].mxu0
    %v5045 = vpop.f32.mrb[0].mxu0
    %v5046 = vadd.f32 %v4821, %v5045
    %v5047 = vpop.f32.mrb[0].mxu0
    %5048 = vmatprep.mubr.bf16.mxu0 %v2419
    %5049 = vmatmul.mubr.bf16.gmra.mrb[0].mxu0 %v2418
    %v5050 = vpop.f32.mrb[0].mxu0
    %v5051 = vadd.f32 %v4826, %v5050
    %v5052 = vpop.f32.mrb[0].mxu0
    %v5053 = vpop.f32.mrb[0].mxu0
    %v5054 = vadd.f32 %v4829, %v5053
    %v5055 = vpop.f32.mrb[0].mxu0
    %5056 = vmatprep.mubr.bf16.mxu0 %v2437
    %5057 = vmatmul.mubr.bf16.gmra.mrb[0].mxu0 %v2436
    %v5058 = vpop.f32.mrb[0].mxu0
    %v5059 = vadd.f32 %v4834, %v5058
    %v5060 = vpop.f32.mrb[0].mxu0
    %v5061 = vpop.f32.mrb[0].mxu0
    %v5062 = vadd.f32 %v4837, %v5061
    %v5063 = vpop.f32.mrb[0].mxu0
    %5064 = vmatprep.mubr.bf16.mxu0 %v2455
    %5065 = vmatmul.mubr.bf16.gmra.mrb[0].mxu0 %v2454
    %v5066 = vpop.f32.mrb[0].mxu0
    %v5067 = vadd.f32 %v4842, %v5066
    %v5068 = vpop.f32.mrb[0].mxu0
    %v5069 = vpop.f32.mrb[0].mxu0
    %v5070 = vadd.f32 %v4845, %v5069
    %v5071 = vpop.f32.mrb[0].mxu0
    %5072 = vmatprep.mubr.bf16.mxu0 %v2473
    %5073 = vmatmul.mubr.bf16.gmra.mrb[0].mxu0 %v2472
    %v5074 = vpop.f32.mrb[0].mxu0
    %v5075 = vadd.f32 %v4850, %v5074
    %v5076 = vpop.f32.mrb[0].mxu0
    %v5077 = vpop.f32.mrb[0].mxu0
    %v5078 = vadd.f32 %v4853, %v5077
    %v5079 = vpop.f32.mrb[0].mxu0
    %5080 = vmatprep.mubr.bf16.mxu0 %v2491
    %5081 = vmatmul.mubr.bf16.gmra.mrb[0].mxu0 %v2490
    %v5082 = vpop.f32.mrb[0].mxu0
    %v5083 = vadd.f32 %v4858, %v5082
    %v5084 = vpop.f32.mrb[0].mxu0
    %v5085 = vpop.f32.mrb[0].mxu0
    %v5086 = vadd.f32 %v4861, %v5085
    %v5087 = vpop.f32.mrb[0].mxu0
    %5088 = vmatprep.mubr.bf16.mxu0 %v2509
    %5089 = vmatmul.mubr.bf16.gmra.mrb[0].mxu0 %v2508
    %v5090 = vpop.f32.mrb[0].mxu0
    %v5091 = vadd.f32 %v4866, %v5090
    %v5092 = vpop.f32.mrb[0].mxu0
    %v5093 = vpop.f32.mrb[0].mxu0
    %v5094 = vadd.f32 %v4869, %v5093
    %v5095 = vpop.f32.mrb[0].mxu0
    %5096 = vmatprep.mubr.bf16.mxu0 %v2527
    %5097 = vmatmul.mubr.bf16.gmra.mrb[0].mxu0 %v2526
    %v5098 = vpop.f32.mrb[0].mxu0
    %v5099 = vadd.f32 %v4874, %v5098
    %v5100 = vpop.f32.mrb[0].mxu0
    %v5101 = vpop.f32.mrb[0].mxu0
    %v5102 = vadd.f32 %v4877, %v5101
    %v5103 = vpop.f32.mrb[0].mxu0
    %5104 = vmatprep.mubr.bf16.mxu0 %v2545
    %5105 = vmatmul.mubr.bf16.gmra.mrb[0].mxu0 %v2544
    %v5106 = vpop.f32.mrb[0].mxu0
    %v5107 = vadd.f32 %v4882, %v5106
    %v5108 = vpop.f32.mrb[0].mxu0
    %v5109 = vpop.f32.mrb[0].mxu0
    %v5110 = vadd.f32 %v4885, %v5109
    %v5111 = vpop.f32.mrb[0].mxu0
    %5112 = vmatprep.mubr.bf16.mxu0 %v2563
    %5113 = vmatmul.mubr.bf16.gmra.mrb[0].mxu0 %v2562
    %v5114 = vpop.f32.mrb[0].mxu0
    %v5115 = vadd.f32 %v4890, %v5114
    %v5116 = vpop.f32.mrb[0].mxu0
    %v5117 = vpop.f32.mrb[0].mxu0
    %v5118 = vadd.f32 %v4893, %v5117
    %v5119 = vpop.f32.mrb[0].mxu0
    %5120 = vmatprep.mubr.bf16.mxu0 %v2581
    %5121 = vmatmul.mubr.bf16.gmra.mrb[0].mxu0 %v2580
    %v5122 = vpop.f32.mrb[0].mxu0
    %v5123 = vadd.f32 %v4898, %v5122
    %v5124 = vpop.f32.mrb[0].mxu0
    %v5125 = vpop.f32.mrb[0].mxu0
    %v5126 = vadd.f32 %v4901, %v5125
    %v5127 = vpop.f32.mrb[0].mxu0
    %5128 = vmatprep.mubr.bf16.mxu0 %v2599
    %5129 = vmatmul.mubr.bf16.gmra.mrb[0].mxu0 %v2598
    %v5130 = vpop.f32.mrb[0].mxu0
    %v5131 = vadd.f32 %v4906, %v5130
    %v5132 = vpop.f32.mrb[0].mxu0
    %v5133 = vpop.f32.mrb[0].mxu0
    %v5134 = vadd.f32 %v4909, %v5133
    %v5135 = vpop.f32.mrb[0].mxu0
    %5136 = vmatprep.mubr.bf16.mxu0 %v2617
    %5137 = vmatmul.mubr.bf16.gmra.mrb[0].mxu0 %v2616
    %v5138 = vpop.f32.mrb[0].mxu0
    %v5139 = vadd.f32 %v4914, %v5138
    %v5140 = vpop.f32.mrb[0].mxu0
    %v5141 = vpop.f32.mrb[0].mxu0
    %v5142 = vadd.f32 %v4917, %v5141
    %v5143 = vpop.f32.mrb[0].mxu0
    %5144 = vmatprep.mubr.bf16.mxu0 %v2635
    %5145 = vmatmul.mubr.bf16.gmra.mrb[0].mxu0 %v2634
    %v5146 = vpop.f32.mrb[0].mxu0
    %v5147 = vadd.f32 %v4922, %v5146
    %v5148 = vpop.f32.mrb[0].mxu0
    %v5149 = vpop.f32.mrb[0].mxu0
    %v5150 = vadd.f32 %v4925, %v5149
    %v5151 = vpop.f32.mrb[0].mxu0
    %5152 = vmatprep.mubr.bf16.mxu0 %v2653
    %5153 = vmatmul.mubr.bf16.gmra.mrb[0].mxu0 %v2652
    %v5154 = vpop.f32.mrb[0].mxu0
    %v5155 = vadd.f32 %v4930, %v5154
    %v5156 = vpop.f32.mrb[0].mxu0
    %v5157 = vpop.f32.mrb[0].mxu0
    %v5158 = vadd.f32 %v4933, %v5157
    %v5159 = vpop.f32.mrb[0].mxu0
    %5160 = vmatprep.mubr.bf16.mxu0 %v2671
    %5161 = vmatmul.mubr.bf16.gmra.mrb[0].mxu0 %v2670
    %v5162 = vpop.f32.mrb[0].mxu0
    %v5163 = vadd.f32 %v4938, %v5162
    %v5164 = vpop.f32.mrb[0].mxu0
    %v5165 = vpop.f32.mrb[0].mxu0
    %v5166 = vadd.f32 %v4941, %v5165
    %v5167 = vpop.f32.mrb[0].mxu0
    %5168 = vmatprep.mubr.bf16.mxu0 %v2689
    %5169 = vmatmul.mubr.bf16.gmra.mrb[0].mxu0 %v2688
    %v5170 = vpop.f32.mrb[0].mxu0
    %v5171 = vadd.f32 %v4946, %v5170
    %v5172 = vpop.f32.mrb[0].mxu0
    %v5173 = vpop.f32.mrb[0].mxu0
    %v5174 = vadd.f32 %v4949, %v5173
    %v5175 = vpop.f32.mrb[0].mxu0
    %5176 = vmatprep.mubr.bf16.mxu0 %v2707
    %5177 = vmatmul.mubr.bf16.gmra.mrb[0].mxu0 %v2706
    %v5178 = vpop.f32.mrb[0].mxu0
    %v5179 = vadd.f32 %v4954, %v5178
    %v5180 = vpop.f32.mrb[0].mxu0
    %v5181 = vpop.f32.mrb[0].mxu0
    %v5182 = vadd.f32 %v4957, %v5181
    %v5183 = vpop.f32.mrb[0].mxu0
    %5184 = vmatprep.mubr.bf16.mxu0 %v2725
    %5185 = vmatmul.mubr.bf16.gmra.mrb[0].mxu0 %v2724
    %v5186 = vpop.f32.mrb[0].mxu0
    %v5187 = vadd.f32 %v4962, %v5186
    %v5188 = vpop.f32.mrb[0].mxu0
    %v5189 = vpop.f32.mrb[0].mxu0
    %v5190 = vadd.f32 %v4965, %v5189
    %v5191 = vpop.f32.mrb[0].mxu0
    %5192 = vmatprep.mubr.bf16.mxu0 %v2743
    %5193 = vmatmul.mubr.bf16.gmra.mrb[0].mxu0 %v2742
    %v5194 = vpop.f32.mrb[0].mxu0
    %v5195 = vadd.f32 %v4970, %v5194
    %v5196 = vpop.f32.mrb[0].mxu0
    %v5197 = vpop.f32.mrb[0].mxu0
    %v5198 = vadd.f32 %v4973, %v5197
    %v5199 = vpop.f32.mrb[0].mxu0
    %5200 = vdwg.mxu0
    %vm5201 = vcmask 400384
    %5202 = vst.msk [vmem:[%s3] sm:$0xff] %vm5201, %v5011
    %5203 = vst.msk [vmem:[%s3 + $0x8] sm:$0xff] %vm5201, %v5014
    %5204 = vst.msk [vmem:[%s3 + $0x10] sm:$0xff] %vm5201, %v5019
    %5205 = vst.msk [vmem:[%s3 + $0x18] sm:$0xff] %vm5201, %v5022
    %5206 = vst.msk [vmem:[%s3 + $0x20] sm:$0xff] %vm5201, %v5027
    %5207 = vst.msk [vmem:[%s3 + $0x28] sm:$0xff] %vm5201, %v5030
    %5208 = vst.msk [vmem:[%s3 + $0x30] sm:$0xff] %vm5201, %v5035
    %5209 = vst.msk [vmem:[%s3 + $0x38] sm:$0xff] %vm5201, %v5038
    %5210 = vst.msk [vmem:[%s3 + $0x40] sm:$0xff] %vm5201, %v5043
    %5211 = vst.msk [vmem:[%s3 + $0x48] sm:$0xff] %vm5201, %v5046
    %5212 = vst.msk [vmem:[%s3 + $0x50] sm:$0xff] %vm5201, %v5051
    %5213 = vst.msk [vmem:[%s3 + $0x58] sm:$0xff] %vm5201, %v5054
    %5214 = vst.msk [vmem:[%s3 + $0x60] sm:$0xff] %vm5201, %v5059
    %5215 = vst.msk [vmem:[%s3 + $0x68] sm:$0xff] %vm5201, %v5062
    %5216 = vst.msk [vmem:[%s3 + $0x70] sm:$0xff] %vm5201, %v5067
    %5217 = vst.msk [vmem:[%s3 + $0x78] sm:$0xff] %vm5201, %v5070
    %5218 = vst.msk [vmem:[%s3 + $0x80] sm:$0xff] %vm5201, %v5075
    %5219 = vst.msk [vmem:[%s3 + $0x88] sm:$0xff] %vm5201, %v5078
    %5220 = vst.msk [vmem:[%s3 + $0x90] sm:$0xff] %vm5201, %v5083
    %5221 = vst.msk [vmem:[%s3 + $0x98] sm:$0xff] %vm5201, %v5086
    %5222 = vst.msk [vmem:[%s3 + $0xa0] sm:$0xff] %vm5201, %v5091
    %5223 = vst.msk [vmem:[%s3 + $0xa8] sm:$0xff] %vm5201, %v5094
    %5224 = vst.msk [vmem:[%s3 + $0xb0] sm:$0xff] %vm5201, %v5099
    %5225 = vst.msk [vmem:[%s3 + $0xb8] sm:$0xff] %vm5201, %v5102
    %5226 = vst.msk [vmem:[%s3 + $0xc0] sm:$0xff] %vm5201, %v5107
    %5227 = vst.msk [vmem:[%s3 + $0xc8] sm:$0xff] %vm5201, %v5110
    %5228 = vst.msk [vmem:[%s3 + $0xd0] sm:$0xff] %vm5201, %v5115
    %5229 = vst.msk [vmem:[%s3 + $0xd8] sm:$0xff] %vm5201, %v5118
    %5230 = vst.msk [vmem:[%s3 + $0xe0] sm:$0xff] %vm5201, %v5123
    %5231 = vst.msk [vmem:[%s3 + $0xe8] sm:$0xff] %vm5201, %v5126
    %5232 = vst.msk [vmem:[%s3 + $0xf0] sm:$0xff] %vm5201, %v5131
    %5233 = vst.msk [vmem:[%s3 + $0xf8] sm:$0xff] %vm5201, %v5134
    %5234 = vst.msk [vmem:[%s3 + $0x100] sm:$0xff] %vm5201, %v5139
    %5235 = vst.msk [vmem:[%s3 + $0x108] sm:$0xff] %vm5201, %v5142
    %5236 = vst.msk [vmem:[%s3 + $0x110] sm:$0xff] %vm5201, %v5147
    %5237 = vst.msk [vmem:[%s3 + $0x118] sm:$0xff] %vm5201, %v5150
    %5238 = vst.msk [vmem:[%s3 + $0x120] sm:$0xff] %vm5201, %v5155
    %5239 = vst.msk [vmem:[%s3 + $0x128] sm:$0xff] %vm5201, %v5158
    %5240 = vst.msk [vmem:[%s3 + $0x130] sm:$0xff] %vm5201, %v5163
    %5241 = vst.msk [vmem:[%s3 + $0x138] sm:$0xff] %vm5201, %v5166
    %5242 = vst.msk [vmem:[%s3 + $0x140] sm:$0xff] %vm5201, %v5171
    %5243 = vst.msk [vmem:[%s3 + $0x148] sm:$0xff] %vm5201, %v5174
    %5244 = vst.msk [vmem:[%s3 + $0x150] sm:$0xff] %vm5201, %v5179
    %5245 = vst.msk [vmem:[%s3 + $0x158] sm:$0xff] %vm5201, %v5182
    %5246 = vst.msk [vmem:[%s3 + $0x160] sm:$0xff] %vm5201, %v5187
    %5247 = vst.msk [vmem:[%s3 + $0x168] sm:$0xff] %vm5201, %v5190
    %5248 = vst.msk [vmem:[%s3 + $0x170] sm:$0xff] %vm5201, %v5195
    %5249 = vst.msk [vmem:[%s3 + $0x178] sm:$0xff] %vm5201, %v5198
    // Predicated region
    $region22: #{tpu_custom_call.1} parent=1 // pred_check
      _
    $region23: #{tpu_custom_call.1} parent=1 // pred_check_branch
      %5251 = sbr.rel (0) target = $region25
    $region24: #{tpu_custom_call.1} parent=1 // pred_region
      _
    $region25: #{tpu_custom_call.1} parent=1 // pred_fallthru
      _
    // Predicated region
    $region26: #{tpu_custom_call.1} parent=1 // pred_check
      _
    $region27: #{tpu_custom_call.1} parent=1 // pred_check_branch
      %5253 = sbr.rel (0) target = $region29
    $region28: #{tpu_custom_call.1} parent=1 // pred_region
      _
    $region29: #{tpu_custom_call.1} parent=1 // pred_fallthru
      _
    %5254 = vsyncpa [#allocation3], 1
    %5255 = vsyncpa [#allocation5], 1

</llo_original>
